<compile_context>
chip_gen: v7x
topology: tpu7x:2x2x1
jax: 0.10.0
libtpu: 0.0.40
codegen_flags: <defaults>
</compile_context>

<pallas_src>
import functools

import jax
import jax.numpy as jnp
from jax.experimental import pallas as pl
from jax.experimental.pallas import tpu as pltpu

# ----------------------------- configuration --------------------------------
B = 2            # batch
C = 3            # image channels
IMG = 16         # image height/width
PATCH = 8        # patch size  -> 4 patches
DIM = 32         # model width
DEPTH = 2        # transformer layers
HEADS = 2
DIM_HEAD = 16
INNER = HEADS * DIM_HEAD          # 32
MLP_DIM = 64
NUM_CLASSES = 10
NUM_PATCHES = (IMG // PATCH) ** 2  # 4
SEQ = NUM_PATCHES + 1              # 5 (cls token)
PATCH_DIM = C * PATCH * PATCH      # 192

ATT_ROWS = DEPTH * HEADS * SEQ     # 20 rows of recorded attention per batch element
LANE = 128                         # lane-dense writeback width for the attn slab


# --------------------------- in-kernel helpers -------------------------------
def _ln(x, g, b):
    """LayerNorm over the last axis, eps=1e-5 (torch default). g/b broadcast (1, D)."""
    mean = jnp.mean(x, axis=-1, keepdims=True)
    var = jnp.mean(jnp.square(x - mean), axis=-1, keepdims=True)
    return (x - mean) * jax.lax.rsqrt(var + 1e-5) * g + b


# Abramowitz & Stegun 7.1.26 erf polynomial (max abs error ~1.5e-7, i.e. f32-exact
# for practical purposes).  Uses only exp / mul / add / select, all guaranteed to
# lower on Mosaic; avoids relying on a lax.erf lowering rule.
_ERF_P = 0.3275911
_ERF_A1 = 0.254829592
_ERF_A2 = -0.284496736
_ERF_A3 = 1.421413741
_ERF_A4 = -1.453152027
_ERF_A5 = 1.061405429


def _erf(x):
    sign = jnp.where(x < 0.0, -1.0, 1.0)
    a = jnp.abs(x)
    t = 1.0 / (1.0 + _ERF_P * a)
    poly = t * (_ERF_A1 + t * (_ERF_A2 + t * (_ERF_A3 + t * (_ERF_A4 + t * _ERF_A5))))
    return sign * (1.0 - poly * jnp.exp(-a * a))


def _gelu_exact(x):
    # matches torch.nn.GELU() (erf form) to ~1e-7 absolute
    return 0.5 * x * (1.0 + _erf(x * (2.0 ** -0.5)))


# ------------------------------ fused kernel ---------------------------------
def _vit_fused_kernel(
    patches_ref,
    patch_ln1_g_ref, patch_ln1_b_ref, patch_w_ref, patch_b_ref,
    patch_ln2_g_ref, patch_ln2_b_ref,
    cls_ref, pos_ref,
    final_ln_g_ref, final_ln_b_ref,
    head_w_ref, head_b_ref,
    attn_ln_g_ref, attn_ln_b_ref, qkv_w_ref, out_w_ref, out_b_ref,
    ff_ln_g_ref, ff_ln_b_ref, ff_w1_ref, ff_b1_ref, ff_w2_ref, ff_b2_ref,
    pred_ref, attn_rec_ref,
    *, scale,
):
    f32 = jnp.float32

    # --- patch embedding: LN -> Linear -> LN ---------------------------------
    # patches row 0 is a dummy slot (zeros) that will be overwritten by the cls
    # token below, so we can run the whole (SEQ, PATCH_DIM) block through the
    # embedding without any in-kernel concatenation.
    px = patches_ref[0].astype(f32)                                   # (SEQ, PATCH_DIM)
    x = _ln(px, patch_ln1_g_ref[...], patch_ln1_b_ref[...])
    x = jnp.dot(x, patch_w_ref[...], preferred_element_type=f32) + patch_b_ref[...]
    x = _ln(x, patch_ln2_g_ref[...], patch_ln2_b_ref[...])            # (SEQ, DIM)

    # --- cls token (row 0) + positional embedding (dropout p=0 -> identity) --
    row = jax.lax.broadcasted_iota(jnp.int32, (SEQ, DIM), 0)
    x = jnp.where(row == 0, cls_ref[...], x)
    x = x + pos_ref[...]

    # zero the lane-padded recording slab once (pad lanes stay deterministic)
    attn_rec_ref[...] = jnp.zeros_like(attn_rec_ref)

    # --- transformer layers (fully unrolled; DEPTH=2, HEADS=2) ---------------
    for l in range(DEPTH):
        # ---- Attention block (pre-norm, residual) ----
        y = _ln(x, attn_ln_g_ref[pl.ds(l, 1), :], attn_ln_b_ref[pl.ds(l, 1), :])
        # to_qkv has NO bias -> no synthetic zero bias
        qkv = jnp.dot(y, qkv_w_ref[l], preferred_element_type=f32)    # (SEQ, 3*INNER)

        attn_out = jnp.zeros((SEQ, DIM), f32)
        for h in range(HEADS):
            q = qkv[:, h * DIM_HEAD:(h + 1) * DIM_HEAD]               # (SEQ, Dh)
            k = qkv[:, INNER + h * DIM_HEAD:INNER + (h + 1) * DIM_HEAD]
            v = qkv[:, 2 * INNER + h * DIM_HEAD:2 * INNER + (h + 1) * DIM_HEAD]

            # q @ k^T without an explicit transpose: contract last axes of both
            dots = jax.lax.dot_general(
                q, k, dimension_numbers=(((1,), (1,)), ((), ())),
                preferred_element_type=f32) * scale                   # (SEQ, SEQ)

            m = jnp.max(dots, axis=-1, keepdims=True)
            e = jnp.exp(dots - m)
            attn = e / jnp.sum(e, axis=-1, keepdims=True)             # == torch.softmax

            # Recorder hook on Softmax output: store into the lane-dense slab.
            off = (l * HEADS + h) * SEQ
            attn_rec_ref[0, pl.ds(off, SEQ), pl.ds(0, SEQ)] = attn

            # per-head output, folded straight into the out-projection
            o_h = jnp.dot(attn, v, preferred_element_type=f32)        # (SEQ, Dh)
            w_o = out_w_ref[l, pl.ds(h * DIM_HEAD, DIM_HEAD), :]      # (Dh, DIM)
            attn_out = attn_out + jnp.dot(o_h, w_o, preferred_element_type=f32)

        x = x + attn_out + out_b_ref[pl.ds(l, 1), :]                  # residual

        # ---- FeedForward block (pre-norm, residual) ----
        y = _ln(x, ff_ln_g_ref[pl.ds(l, 1), :], ff_ln_b_ref[pl.ds(l, 1), :])
        h1 = jnp.dot(y, ff_w1_ref[l], preferred_element_type=f32) + ff_b1_ref[pl.ds(l, 1), :]
        h1 = _gelu_exact(h1)
        y2 = jnp.dot(h1, ff_w2_ref[l], preferred_element_type=f32) + ff_b2_ref[pl.ds(l, 1), :]
        x = x + y2                                                    # residual

    # --- final LN, cls pooling, mlp head --------------------------------------
    x = _ln(x, final_ln_g_ref[...], final_ln_b_ref[...])
    pooled = x[0:1, :]                                                # (1, DIM)
    pred = jnp.dot(pooled, head_w_ref[...], preferred_element_type=f32) + head_b_ref[...]
    pred_ref[0] = pred.astype(pred_ref.dtype)


# ------------------------------ parameter init --------------------------------
def init_params(key):
    keys = iter(jax.random.split(key, 32))

    def dense(k, fan_in, fan_out):
        return jax.random.normal(k, (fan_in, fan_out), jnp.float32) / jnp.sqrt(
            jnp.float32(fan_in))

    def dense_stack(k, fan_in, fan_out):
        ks = jax.random.split(k, DEPTH)
        return jnp.stack([dense(kk, fan_in, fan_out) for kk in ks])

    ones2 = lambda d: jnp.ones((1, d), jnp.float32)
    zeros2 = lambda d: jnp.zeros((1, d), jnp.float32)
    onesL = lambda d: jnp.ones((DEPTH, d), jnp.float32)
    zerosL = lambda d: jnp.zeros((DEPTH, d), jnp.float32)

    return {
        # patch embedding
        "patch_ln1_g": ones2(PATCH_DIM), "patch_ln1_b": zeros2(PATCH_DIM),
        "patch_w": dense(next(keys), PATCH_DIM, DIM), "patch_b": zeros2(DIM),
        "patch_ln2_g": ones2(DIM), "patch_ln2_b": zeros2(DIM),
        # tokens
        "cls": 0.02 * jax.random.normal(next(keys), (1, DIM), jnp.float32),
        "pos_emb": 0.02 * jax.random.normal(next(keys), (SEQ, DIM), jnp.float32),
        # head
        "final_ln_g": ones2(DIM), "final_ln_b": zeros2(DIM),
        "head_w": dense(next(keys), DIM, NUM_CLASSES), "head_b": zeros2(NUM_CLASSES),
        # per-layer (stacked over DEPTH)
        "attn_ln_g": onesL(DIM), "attn_ln_b": zerosL(DIM),
        "qkv_w": dense_stack(next(keys), DIM, 3 * INNER),              # bias-free
        "out_w": dense_stack(next(keys), INNER, DIM), "out_b": zerosL(DIM),
        "ff_ln_g": onesL(DIM), "ff_ln_b": zerosL(DIM),
        "ff_w1": dense_stack(next(keys), DIM, MLP_DIM), "ff_b1": zerosL(MLP_DIM),
        "ff_w2": dense_stack(next(keys), MLP_DIM, DIM), "ff_b2": zerosL(DIM),
    }


_PARAM_ORDER = (
    "patch_ln1_g", "patch_ln1_b", "patch_w", "patch_b", "patch_ln2_g", "patch_ln2_b",
    "cls", "pos_emb", "final_ln_g", "final_ln_b", "head_w", "head_b",
    "attn_ln_g", "attn_ln_b", "qkv_w", "out_w", "out_b",
    "ff_ln_g", "ff_ln_b", "ff_w1", "ff_b1", "ff_w2", "ff_b2",
)


def _const_spec(arr):
    """Whole-array block, resident for every grid step."""
    if arr.ndim == 2:
        return pl.BlockSpec(arr.shape, lambda i: (0, 0))
    return pl.BlockSpec(arr.shape, lambda i: (0, 0, 0))


# ------------------------------ Recorder forward ------------------------------
def recorder_forward(params, img):
    # layout: img is NCHW (B, C, H, W), same axis convention as the PyTorch module.
    b, c, h, w = img.shape
    ph, pw = h // PATCH, w // PATCH

    # rearrange 'b c (h p1) (w p2) -> b (h w) (p1 p2 c)'  (pure layout, done once)
    x = img.reshape(b, c, ph, PATCH, pw, PATCH)
    x = jnp.transpose(x, (0, 2, 4, 3, 5, 1)).reshape(b, ph * pw, PATCH * PATCH * c)
    # prepend a dummy zero row: row 0 is replaced by the cls token inside the kernel
    patches = jnp.pad(x, ((0, 0), (1, 0), (0, 0)))                    # (B, SEQ, PATCH_DIM)

    args = [patches] + [params[k] for k in _PARAM_ORDER]
    in_specs = [pl.BlockSpec((1, SEQ, PATCH_DIM), lambda i: (i, 0, 0))]
    in_specs += [_const_spec(params[k]) for k in _PARAM_ORDER]

    out_shapes = (
        jax.ShapeDtypeStruct((b, 1, NUM_CLASSES), jnp.float32),
        jax.ShapeDtypeStruct((b, ATT_ROWS, LANE), jnp.float32),        # lane-dense slab
    )
    out_specs = (
        pl.BlockSpec((1, 1, NUM_CLASSES), lambda i: (i, 0, 0)),
        pl.BlockSpec((1, ATT_ROWS, LANE), lambda i: (i, 0, 0)),
    )

    pred3, slab = pl.pallas_call(
        functools.partial(_vit_fused_kernel, scale=DIM_HEAD ** -0.5),
        out_shape=out_shapes,
        grid=(b,),
        in_specs=in_specs,
        out_specs=out_specs,
        compiler_params=pltpu.CompilerParams(
            # batch axis is independent -> both v7x TensorCores get work
            dimension_semantics=("parallel",),
        ),
    )(*args)

    pred = pred3[:, 0, :]                                              # (B, NUM_CLASSES)
    # Recorder: torch.stack(recordings, dim=1) -> (B, depth, heads, N, N)
    attns = slab[:, :, :SEQ].reshape(b, DEPTH, HEADS, SEQ, SEQ)
    return pred, attns


# ------------------------------------ main ------------------------------------
if __name__ == "__main__":
    key = jax.random.PRNGKey(0)
    k_img, k_par = jax.random.split(key)
    img = jax.random.normal(k_img, (B, C, IMG, IMG), jnp.float32)
    params = init_params(k_par)

    fwd = jax.jit(recorder_forward)
    pred, attns = fwd(params, img)
    jax.block_until_ready((pred, attns))

    assert pred.shape == (B, NUM_CLASSES), pred.shape
    assert attns.shape == (B, DEPTH, HEADS, SEQ, SEQ), attns.shape
    # recorded attention rows are probability distributions
    row_sums = jnp.sum(attns, axis=-1)
    assert jnp.allclose(row_sums, jnp.ones_like(row_sums), atol=1e-5)
    assert bool(jnp.all(jnp.isfinite(pred)))

    print("KERNEL_OK")
</pallas_src>

<mosaic_0001>
module attributes {stable_mosaic.version = 11 : i64} {
  func.func @_vit_fused_kernel(%arg0: i32, %arg1: memref<1x5x192xf32, #tpu.memory_space<vmem>>, %arg2: memref<1x192xf32, #tpu.memory_space<vmem>>, %arg3: memref<1x192xf32, #tpu.memory_space<vmem>>, %arg4: memref<192x32xf32, #tpu.memory_space<vmem>>, %arg5: memref<1x32xf32, #tpu.memory_space<vmem>>, %arg6: memref<1x32xf32, #tpu.memory_space<vmem>>, %arg7: memref<1x32xf32, #tpu.memory_space<vmem>>, %arg8: memref<1x32xf32, #tpu.memory_space<vmem>>, %arg9: memref<5x32xf32, #tpu.memory_space<vmem>>, %arg10: memref<1x32xf32, #tpu.memory_space<vmem>>, %arg11: memref<1x32xf32, #tpu.memory_space<vmem>>, %arg12: memref<32x10xf32, #tpu.memory_space<vmem>>, %arg13: memref<1x10xf32, #tpu.memory_space<vmem>>, %arg14: memref<2x32xf32, #tpu.memory_space<vmem>>, %arg15: memref<2x32xf32, #tpu.memory_space<vmem>>, %arg16: memref<2x32x96xf32, #tpu.memory_space<vmem>>, %arg17: memref<2x32x32xf32, #tpu.memory_space<vmem>>, %arg18: memref<2x32xf32, #tpu.memory_space<vmem>>, %arg19: memref<2x32xf32, #tpu.memory_space<vmem>>, %arg20: memref<2x32xf32, #tpu.memory_space<vmem>>, %arg21: memref<2x32x64xf32, #tpu.memory_space<vmem>>, %arg22: memref<2x64xf32, #tpu.memory_space<vmem>>, %arg23: memref<2x64x32xf32, #tpu.memory_space<vmem>>, %arg24: memref<2x32xf32, #tpu.memory_space<vmem>>, %arg25: memref<1x1x10xf32, #tpu.memory_space<vmem>>, %arg26: memref<1x20x128xf32, #tpu.memory_space<vmem>>) attributes {dimension_semantics = [#tpu.dimension_semantics<parallel>], iteration_bounds = array<i64: 2>, scalar_prefetch = 0 : i64, scratch_operands = 0 : i64, tpu.core_type = #tpu.core_type<tc>, window_params = [{transform_indices = @transform_0, window_bounds = array<i64: 1, 5, 192>}, {pipeline_mode = #tpu.pipeline_mode<synchronous>, transform_indices = @transform_1, window_bounds = array<i64: 1, 192>}, {pipeline_mode = #tpu.pipeline_mode<synchronous>, transform_indices = @transform_2, window_bounds = array<i64: 1, 192>}, {pipeline_mode = #tpu.pipeline_mode<synchronous>, transform_indices = @transform_3, window_bounds = array<i64: 192, 32>}, {pipeline_mode = #tpu.pipeline_mode<synchronous>, transform_indices = @transform_4, window_bounds = array<i64: 1, 32>}, {pipeline_mode = #tpu.pipeline_mode<synchronous>, transform_indices = @transform_5, window_bounds = array<i64: 1, 32>}, {pipeline_mode = #tpu.pipeline_mode<synchronous>, transform_indices = @transform_6, window_bounds = array<i64: 1, 32>}, {pipeline_mode = #tpu.pipeline_mode<synchronous>, transform_indices = @transform_7, window_bounds = array<i64: 1, 32>}, {pipeline_mode = #tpu.pipeline_mode<synchronous>, transform_indices = @transform_8, window_bounds = array<i64: 5, 32>}, {pipeline_mode = #tpu.pipeline_mode<synchronous>, transform_indices = @transform_9, window_bounds = array<i64: 1, 32>}, {pipeline_mode = #tpu.pipeline_mode<synchronous>, transform_indices = @transform_10, window_bounds = array<i64: 1, 32>}, {pipeline_mode = #tpu.pipeline_mode<synchronous>, transform_indices = @transform_11, window_bounds = array<i64: 32, 10>}, {pipeline_mode = #tpu.pipeline_mode<synchronous>, transform_indices = @transform_12, window_bounds = array<i64: 1, 10>}, {pipeline_mode = #tpu.pipeline_mode<synchronous>, transform_indices = @transform_13, window_bounds = array<i64: 2, 32>}, {pipeline_mode = #tpu.pipeline_mode<synchronous>, transform_indices = @transform_14, window_bounds = array<i64: 2, 32>}, {pipeline_mode = #tpu.pipeline_mode<synchronous>, transform_indices = @transform_15, window_bounds = array<i64: 2, 32, 96>}, {pipeline_mode = #tpu.pipeline_mode<synchronous>, transform_indices = @transform_16, window_bounds = array<i64: 2, 32, 32>}, {pipeline_mode = #tpu.pipeline_mode<synchronous>, transform_indices = @transform_17, window_bounds = array<i64: 2, 32>}, {pipeline_mode = #tpu.pipeline_mode<synchronous>, transform_indices = @transform_18, window_bounds = array<i64: 2, 32>}, {pipeline_mode = #tpu.pipeline_mode<synchronous>, transform_indices = @transform_19, window_bounds = array<i64: 2, 32>}, {pipeline_mode = #tpu.pipeline_mode<synchronous>, transform_indices = @transform_20, window_bounds = array<i64: 2, 32, 64>}, {pipeline_mode = #tpu.pipeline_mode<synchronous>, transform_indices = @transform_21, window_bounds = array<i64: 2, 64>}, {pipeline_mode = #tpu.pipeline_mode<synchronous>, transform_indices = @transform_22, window_bounds = array<i64: 2, 64, 32>}, {pipeline_mode = #tpu.pipeline_mode<synchronous>, transform_indices = @transform_23, window_bounds = array<i64: 2, 32>}, {transform_indices = @transform_24, window_bounds = array<i64: 1, 1, 10>}, {transform_indices = @transform_25, window_bounds = array<i64: 1, 20, 128>}]} {
    %c0 = arith.constant 0 : index
    %c0_0 = arith.constant 0 : index
    %c0_1 = arith.constant 0 : index
    %0 = vector.load %arg1[%c0, %c0_0, %c0_1] : memref<1x5x192xf32, #tpu.memory_space<vmem>>, vector<1x5x192xf32>
    %1 = vector.shape_cast %0 : vector<1x5x192xf32> to vector<5x192xf32>
    %c0_2 = arith.constant 0 : index
    %c0_3 = arith.constant 0 : index
    %2 = vector.load %arg2[%c0_2, %c0_3] : memref<1x192xf32, #tpu.memory_space<vmem>>, vector<1x192xf32>
    %c0_4 = arith.constant 0 : index
    %c0_5 = arith.constant 0 : index
    %3 = vector.load %arg3[%c0_4, %c0_5] : memref<1x192xf32, #tpu.memory_space<vmem>>, vector<1x192xf32>
    %cst = arith.constant dense<0.000000e+00> : vector<5xf32>
    %4 = vector.multi_reduction <add>, %1, %cst [1] : vector<5x192xf32> to vector<5xf32>
    %5 = vector.shape_cast %4 : vector<5xf32> to vector<5x1xf32>
    %cst_6 = arith.constant 1.920000e+02 : f32
    %6 = vector.broadcast %cst_6 : f32 to vector<5x1xf32>
    %7 = arith.divf %5, %6 : vector<5x1xf32>
    %8 = vector.broadcast %7 : vector<5x1xf32> to vector<5x192xf32>
    %9 = arith.subf %1, %8 : vector<5x192xf32>
    %10 = arith.mulf %9, %9 : vector<5x192xf32>
    %cst_7 = arith.constant dense<0.000000e+00> : vector<5xf32>
    %11 = vector.multi_reduction <add>, %10, %cst_7 [1] : vector<5x192xf32> to vector<5xf32>
    %12 = vector.shape_cast %11 : vector<5xf32> to vector<5x1xf32>
    %cst_8 = arith.constant 1.920000e+02 : f32
    %13 = vector.broadcast %cst_8 : f32 to vector<5x1xf32>
    %14 = arith.divf %12, %13 : vector<5x1xf32>
    %15 = vector.broadcast %7 : vector<5x1xf32> to vector<5x192xf32>
    %16 = arith.subf %1, %15 : vector<5x192xf32>
    %cst_9 = arith.constant 9.99999974E-6 : f32
    %17 = vector.broadcast %cst_9 : f32 to vector<5x1xf32>
    %18 = arith.addf %14, %17 : vector<5x1xf32>
    %19 = math.rsqrt %18 : vector<5x1xf32>
    %20 = vector.broadcast %19 : vector<5x1xf32> to vector<5x192xf32>
    %21 = arith.mulf %16, %20 : vector<5x192xf32>
    %22 = vector.broadcast %2 : vector<1x192xf32> to vector<5x192xf32>
    %23 = arith.mulf %21, %22 : vector<5x192xf32>
    %24 = vector.broadcast %3 : vector<1x192xf32> to vector<5x192xf32>
    %25 = arith.addf %23, %24 : vector<5x192xf32>
    %c0_10 = arith.constant 0 : index
    %c0_11 = arith.constant 0 : index
    %26 = vector.load %arg4[%c0_10, %c0_11] : memref<192x32xf32, #tpu.memory_space<vmem>>, vector<192x32xf32>
    %cst_12 = arith.constant dense<0.000000e+00> : vector<5x32xf32>
    %27 = tpu.matmul %25, %26, %cst_12 {dimension_numbers = #tpu.dot_dimension_numbers<[1], [0], [0], [1], [0, 0, 1, 1], [], []>} : vector<5x192xf32>, vector<192x32xf32>, vector<5x32xf32> -> vector<5x32xf32>
    %c0_13 = arith.constant 0 : index
    %c0_14 = arith.constant 0 : index
    %28 = vector.load %arg5[%c0_13, %c0_14] : memref<1x32xf32, #tpu.memory_space<vmem>>, vector<1x32xf32>
    %29 = vector.broadcast %28 : vector<1x32xf32> to vector<5x32xf32>
    %30 = arith.addf %27, %29 : vector<5x32xf32>
    %c0_15 = arith.constant 0 : index
    %c0_16 = arith.constant 0 : index
    %31 = vector.load %arg6[%c0_15, %c0_16] : memref<1x32xf32, #tpu.memory_space<vmem>>, vector<1x32xf32>
    %c0_17 = arith.constant 0 : index
    %c0_18 = arith.constant 0 : index
    %32 = vector.load %arg7[%c0_17, %c0_18] : memref<1x32xf32, #tpu.memory_space<vmem>>, vector<1x32xf32>
    %cst_19 = arith.constant dense<0.000000e+00> : vector<5xf32>
    %33 = vector.multi_reduction <add>, %30, %cst_19 [1] : vector<5x32xf32> to vector<5xf32>
    %34 = vector.shape_cast %33 : vector<5xf32> to vector<5x1xf32>
    %cst_20 = arith.constant 3.200000e+01 : f32
    %35 = vector.broadcast %cst_20 : f32 to vector<5x1xf32>
    %36 = arith.divf %34, %35 : vector<5x1xf32>
    %37 = vector.broadcast %36 : vector<5x1xf32> to vector<5x32xf32>
    %38 = arith.subf %30, %37 : vector<5x32xf32>
    %39 = arith.mulf %38, %38 : vector<5x32xf32>
    %cst_21 = arith.constant dense<0.000000e+00> : vector<5xf32>
    %40 = vector.multi_reduction <add>, %39, %cst_21 [1] : vector<5x32xf32> to vector<5xf32>
    %41 = vector.shape_cast %40 : vector<5xf32> to vector<5x1xf32>
    %cst_22 = arith.constant 3.200000e+01 : f32
    %42 = vector.broadcast %cst_22 : f32 to vector<5x1xf32>
    %43 = arith.divf %41, %42 : vector<5x1xf32>
    %44 = vector.broadcast %36 : vector<5x1xf32> to vector<5x32xf32>
    %45 = arith.subf %30, %44 : vector<5x32xf32>
    %cst_23 = arith.constant 9.99999974E-6 : f32
    %46 = vector.broadcast %cst_23 : f32 to vector<5x1xf32>
    %47 = arith.addf %43, %46 : vector<5x1xf32>
    %48 = math.rsqrt %47 : vector<5x1xf32>
    %49 = vector.broadcast %48 : vector<5x1xf32> to vector<5x32xf32>
    %50 = arith.mulf %45, %49 : vector<5x32xf32>
    %51 = vector.broadcast %31 : vector<1x32xf32> to vector<5x32xf32>
    %52 = arith.mulf %50, %51 : vector<5x32xf32>
    %53 = vector.broadcast %32 : vector<1x32xf32> to vector<5x32xf32>
    %54 = arith.addf %52, %53 : vector<5x32xf32>
    %55 = tpu.iota {dimensions = array<i32: 0>} : vector<5x32xi32>
    %c0_i32 = arith.constant 0 : i32
    %56 = vector.broadcast %c0_i32 : i32 to vector<5x32xi32>
    %57 = arith.cmpi eq, %55, %56 : vector<5x32xi32>
    %c0_24 = arith.constant 0 : index
    %c0_25 = arith.constant 0 : index
    %58 = vector.load %arg8[%c0_24, %c0_25] : memref<1x32xf32, #tpu.memory_space<vmem>>, vector<1x32xf32>
    %59 = vector.shape_cast %58 : vector<1x32xf32> to vector<1x32xf32>
    %60 = vector.broadcast %59 : vector<1x32xf32> to vector<5x32xf32>
    %61 = arith.select %57, %60, %54 : vector<5x32xi1>, vector<5x32xf32>
    %c0_26 = arith.constant 0 : index
    %c0_27 = arith.constant 0 : index
    %62 = vector.load %arg9[%c0_26, %c0_27] : memref<5x32xf32, #tpu.memory_space<vmem>>, vector<5x32xf32>
    %63 = arith.addf %61, %62 : vector<5x32xf32>
    %cst_28 = arith.constant 0.000000e+00 : f32
    %64 = vector.broadcast %cst_28 : f32 to vector<1x20x128xf32>
    %c0_29 = arith.constant 0 : index
    %c0_30 = arith.constant 0 : index
    %c0_31 = arith.constant 0 : index
    %65 = vector.load %arg26[%c0_29, %c0_30, %c0_31] : memref<1x20x128xf32, #tpu.memory_space<vmem>>, vector<1x20x128xf32>
    tpu.vector_store %arg26[%c0_29, %c0_30, %c0_31], %64 {strides = array<i32>} : memref<1x20x128xf32, #tpu.memory_space<vmem>>, vector<1x20x128xf32>,
    %c0_32 = arith.constant 0 : index
    %c0_33 = arith.constant 0 : index
    %66 = vector.load %arg14[%c0_32, %c0_33] : memref<2x32xf32, #tpu.memory_space<vmem>>, vector<1x32xf32>
    %c0_34 = arith.constant 0 : index
    %c0_35 = arith.constant 0 : index
    %67 = vector.load %arg15[%c0_34, %c0_35] : memref<2x32xf32, #tpu.memory_space<vmem>>, vector<1x32xf32>
    %cst_36 = arith.constant dense<0.000000e+00> : vector<5xf32>
    %68 = vector.multi_reduction <add>, %63, %cst_36 [1] : vector<5x32xf32> to vector<5xf32>
    %69 = vector.shape_cast %68 : vector<5xf32> to vector<5x1xf32>
    %cst_37 = arith.constant 3.200000e+01 : f32
    %70 = vector.broadcast %cst_37 : f32 to vector<5x1xf32>
    %71 = arith.divf %69, %70 : vector<5x1xf32>
    %72 = vector.broadcast %71 : vector<5x1xf32> to vector<5x32xf32>
    %73 = arith.subf %63, %72 : vector<5x32xf32>
    %74 = arith.mulf %73, %73 : vector<5x32xf32>
    %cst_38 = arith.constant dense<0.000000e+00> : vector<5xf32>
    %75 = vector.multi_reduction <add>, %74, %cst_38 [1] : vector<5x32xf32> to vector<5xf32>
    %76 = vector.shape_cast %75 : vector<5xf32> to vector<5x1xf32>
    %cst_39 = arith.constant 3.200000e+01 : f32
    %77 = vector.broadcast %cst_39 : f32 to vector<5x1xf32>
    %78 = arith.divf %76, %77 : vector<5x1xf32>
    %79 = vector.broadcast %71 : vector<5x1xf32> to vector<5x32xf32>
    %80 = arith.subf %63, %79 : vector<5x32xf32>
    %cst_40 = arith.constant 9.99999974E-6 : f32
    %81 = vector.broadcast %cst_40 : f32 to vector<5x1xf32>
    %82 = arith.addf %78, %81 : vector<5x1xf32>
    %83 = math.rsqrt %82 : vector<5x1xf32>
    %84 = vector.broadcast %83 : vector<5x1xf32> to vector<5x32xf32>
    %85 = arith.mulf %80, %84 : vector<5x32xf32>
    %86 = vector.broadcast %66 : vector<1x32xf32> to vector<5x32xf32>
    %87 = arith.mulf %85, %86 : vector<5x32xf32>
    %88 = vector.broadcast %67 : vector<1x32xf32> to vector<5x32xf32>
    %89 = arith.addf %87, %88 : vector<5x32xf32>
    %c0_41 = arith.constant 0 : index
    %c0_42 = arith.constant 0 : index
    %c0_43 = arith.constant 0 : index
    %90 = vector.load %arg16[%c0_41, %c0_42, %c0_43] : memref<2x32x96xf32, #tpu.memory_space<vmem>>, vector<1x32x96xf32>
    %91 = vector.shape_cast %90 : vector<1x32x96xf32> to vector<32x96xf32>
    %cst_44 = arith.constant dense<0.000000e+00> : vector<5x96xf32>
    %92 = tpu.matmul %89, %91, %cst_44 {dimension_numbers = #tpu.dot_dimension_numbers<[1], [0], [0], [1], [0, 0, 1, 1], [], []>} : vector<5x32xf32>, vector<32x96xf32>, vector<5x96xf32> -> vector<5x96xf32>
    %cst_45 = arith.constant 0.000000e+00 : f32
    %93 = vector.broadcast %cst_45 : f32 to vector<5x32xf32>
    %94 = vector.extract_strided_slice %92 {offsets = [0, 0], sizes = [5, 16], strides = [1, 1]} : vector<5x96xf32> to vector<5x16xf32>
    %95 = vector.extract_strided_slice %92 {offsets = [0, 32], sizes = [5, 16], strides = [1, 1]} : vector<5x96xf32> to vector<5x16xf32>
    %96 = vector.extract_strided_slice %92 {offsets = [0, 64], sizes = [5, 16], strides = [1, 1]} : vector<5x96xf32> to vector<5x16xf32>
    %cst_46 = arith.constant dense<0.000000e+00> : vector<5x5xf32>
    %97 = tpu.matmul %94, %95, %cst_46 {dimension_numbers = #tpu.dot_dimension_numbers<[1], [1], [0], [0], [0, 0, 1, 0], [], []>} : vector<5x16xf32>, vector<5x16xf32>, vector<5x5xf32> -> vector<5x5xf32>
    %cst_47 = arith.constant 2.500000e-01 : f32
    %98 = vector.broadcast %cst_47 : f32 to vector<5x5xf32>
    %99 = arith.mulf %97, %98 : vector<5x5xf32>
    %cst_48 = arith.constant dense<0xFF800000> : vector<5xf32>
    %100 = vector.multi_reduction <maximumf>, %99, %cst_48 [1] : vector<5x5xf32> to vector<5xf32>
    %101 = vector.shape_cast %100 : vector<5xf32> to vector<5x1xf32>
    %102 = vector.broadcast %101 : vector<5x1xf32> to vector<5x5xf32>
    %103 = arith.subf %99, %102 : vector<5x5xf32>
    %104 = math.exp %103 : vector<5x5xf32>
    %cst_49 = arith.constant dense<0.000000e+00> : vector<5xf32>
    %105 = vector.multi_reduction <add>, %104, %cst_49 [1] : vector<5x5xf32> to vector<5xf32>
    %106 = vector.shape_cast %105 : vector<5xf32> to vector<5x1xf32>
    %107 = vector.broadcast %106 : vector<5x1xf32> to vector<5x5xf32>
    %108 = arith.divf %104, %107 : vector<5x5xf32>
    %c0_50 = arith.constant 0 : index
    %c0_51 = arith.constant 0 : index
    %c0_52 = arith.constant 0 : index
    %109 = vector.load %arg26[%c0_50, %c0_51, %c0_52] : memref<1x20x128xf32, #tpu.memory_space<vmem>>, vector<1x5x5xf32>
    %110 = vector.shape_cast %109 : vector<1x5x5xf32> to vector<5x5xf32>
    %111 = vector.shape_cast %108 : vector<5x5xf32> to vector<1x5x5xf32>
    tpu.vector_store %arg26[%c0_50, %c0_51, %c0_52], %111 {strides = array<i32>} : memref<1x20x128xf32, #tpu.memory_space<vmem>>, vector<1x5x5xf32>,
    %cst_53 = arith.constant dense<0.000000e+00> : vector<5x16xf32>
    %112 = tpu.matmul %108, %96, %cst_53 {dimension_numbers = #tpu.dot_dimension_numbers<[1], [0], [0], [1], [0, 0, 1, 1], [], []>} : vector<5x5xf32>, vector<5x16xf32>, vector<5x16xf32> -> vector<5x16xf32>
    %c0_54 = arith.constant 0 : index
    %c0_55 = arith.constant 0 : index
    %c0_56 = arith.constant 0 : index
    %113 = vector.load %arg17[%c0_54, %c0_55, %c0_56] : memref<2x32x32xf32, #tpu.memory_space<vmem>>, vector<1x16x32xf32>
    %114 = vector.shape_cast %113 : vector<1x16x32xf32> to vector<16x32xf32>
    %cst_57 = arith.constant dense<0.000000e+00> : vector<5x32xf32>
    %115 = tpu.matmul %112, %114, %cst_57 {dimension_numbers = #tpu.dot_dimension_numbers<[1], [0], [0], [1], [0, 0, 1, 1], [], []>} : vector<5x16xf32>, vector<16x32xf32>, vector<5x32xf32> -> vector<5x32xf32>
    %116 = arith.addf %93, %115 : vector<5x32xf32>
    %117 = vector.extract_strided_slice %92 {offsets = [0, 16], sizes = [5, 16], strides = [1, 1]} : vector<5x96xf32> to vector<5x16xf32>
    %118 = vector.extract_strided_slice %92 {offsets = [0, 48], sizes = [5, 16], strides = [1, 1]} : vector<5x96xf32> to vector<5x16xf32>
    %119 = vector.extract_strided_slice %92 {offsets = [0, 80], sizes = [5, 16], strides = [1, 1]} : vector<5x96xf32> to vector<5x16xf32>
    %cst_58 = arith.constant dense<0.000000e+00> : vector<5x5xf32>
    %120 = tpu.matmul %117, %118, %cst_58 {dimension_numbers = #tpu.dot_dimension_numbers<[1], [1], [0], [0], [0, 0, 1, 0], [], []>} : vector<5x16xf32>, vector<5x16xf32>, vector<5x5xf32> -> vector<5x5xf32>
    %cst_59 = arith.constant 2.500000e-01 : f32
    %121 = vector.broadcast %cst_59 : f32 to vector<5x5xf32>
    %122 = arith.mulf %120, %121 : vector<5x5xf32>
    %cst_60 = arith.constant dense<0xFF800000> : vector<5xf32>
    %123 = vector.multi_reduction <maximumf>, %122, %cst_60 [1] : vector<5x5xf32> to vector<5xf32>
    %124 = vector.shape_cast %123 : vector<5xf32> to vector<5x1xf32>
    %125 = vector.broadcast %124 : vector<5x1xf32> to vector<5x5xf32>
    %126 = arith.subf %122, %125 : vector<5x5xf32>
    %127 = math.exp %126 : vector<5x5xf32>
    %cst_61 = arith.constant dense<0.000000e+00> : vector<5xf32>
    %128 = vector.multi_reduction <add>, %127, %cst_61 [1] : vector<5x5xf32> to vector<5xf32>
    %129 = vector.shape_cast %128 : vector<5xf32> to vector<5x1xf32>
    %130 = vector.broadcast %129 : vector<5x1xf32> to vector<5x5xf32>
    %131 = arith.divf %127, %130 : vector<5x5xf32>
    %c0_62 = arith.constant 0 : index
    %c5 = arith.constant 5 : index
    %c0_63 = arith.constant 0 : index
    %132 = vector.load %arg26[%c0_62, %c5, %c0_63] : memref<1x20x128xf32, #tpu.memory_space<vmem>>, vector<1x5x5xf32>
    %133 = vector.shape_cast %132 : vector<1x5x5xf32> to vector<5x5xf32>
    %134 = vector.shape_cast %131 : vector<5x5xf32> to vector<1x5x5xf32>
    tpu.vector_store %arg26[%c0_62, %c5, %c0_63], %134 {strides = array<i32>} : memref<1x20x128xf32, #tpu.memory_space<vmem>>, vector<1x5x5xf32>,
    %cst_64 = arith.constant dense<0.000000e+00> : vector<5x16xf32>
    %135 = tpu.matmul %131, %119, %cst_64 {dimension_numbers = #tpu.dot_dimension_numbers<[1], [0], [0], [1], [0, 0, 1, 1], [], []>} : vector<5x5xf32>, vector<5x16xf32>, vector<5x16xf32> -> vector<5x16xf32>
    %c0_65 = arith.constant 0 : index
    %c16 = arith.constant 16 : index
    %c0_66 = arith.constant 0 : index
    %136 = vector.load %arg17[%c0_65, %c16, %c0_66] : memref<2x32x32xf32, #tpu.memory_space<vmem>>, vector<1x16x32xf32>
    %137 = vector.shape_cast %136 : vector<1x16x32xf32> to vector<16x32xf32>
    %cst_67 = arith.constant dense<0.000000e+00> : vector<5x32xf32>
    %138 = tpu.matmul %135, %137, %cst_67 {dimension_numbers = #tpu.dot_dimension_numbers<[1], [0], [0], [1], [0, 0, 1, 1], [], []>} : vector<5x16xf32>, vector<16x32xf32>, vector<5x32xf32> -> vector<5x32xf32>
    %139 = arith.addf %116, %138 : vector<5x32xf32>
    %140 = arith.addf %63, %139 : vector<5x32xf32>
    %c0_68 = arith.constant 0 : index
    %c0_69 = arith.constant 0 : index
    %141 = vector.load %arg18[%c0_68, %c0_69] : memref<2x32xf32, #tpu.memory_space<vmem>>, vector<1x32xf32>
    %142 = vector.broadcast %141 : vector<1x32xf32> to vector<5x32xf32>
    %143 = arith.addf %140, %142 : vector<5x32xf32>
    %c0_70 = arith.constant 0 : index
    %c0_71 = arith.constant 0 : index
    %144 = vector.load %arg19[%c0_70, %c0_71] : memref<2x32xf32, #tpu.memory_space<vmem>>, vector<1x32xf32>
    %c0_72 = arith.constant 0 : index
    %c0_73 = arith.constant 0 : index
    %145 = vector.load %arg20[%c0_72, %c0_73] : memref<2x32xf32, #tpu.memory_space<vmem>>, vector<1x32xf32>
    %cst_74 = arith.constant dense<0.000000e+00> : vector<5xf32>
    %146 = vector.multi_reduction <add>, %143, %cst_74 [1] : vector<5x32xf32> to vector<5xf32>
    %147 = vector.shape_cast %146 : vector<5xf32> to vector<5x1xf32>
    %cst_75 = arith.constant 3.200000e+01 : f32
    %148 = vector.broadcast %cst_75 : f32 to vector<5x1xf32>
    %149 = arith.divf %147, %148 : vector<5x1xf32>
    %150 = vector.broadcast %149 : vector<5x1xf32> to vector<5x32xf32>
    %151 = arith.subf %143, %150 : vector<5x32xf32>
    %152 = arith.mulf %151, %151 : vector<5x32xf32>
    %cst_76 = arith.constant dense<0.000000e+00> : vector<5xf32>
    %153 = vector.multi_reduction <add>, %152, %cst_76 [1] : vector<5x32xf32> to vector<5xf32>
    %154 = vector.shape_cast %153 : vector<5xf32> to vector<5x1xf32>
    %cst_77 = arith.constant 3.200000e+01 : f32
    %155 = vector.broadcast %cst_77 : f32 to vector<5x1xf32>
    %156 = arith.divf %154, %155 : vector<5x1xf32>
    %157 = vector.broadcast %149 : vector<5x1xf32> to vector<5x32xf32>
    %158 = arith.subf %143, %157 : vector<5x32xf32>
    %cst_78 = arith.constant 9.99999974E-6 : f32
    %159 = vector.broadcast %cst_78 : f32 to vector<5x1xf32>
    %160 = arith.addf %156, %159 : vector<5x1xf32>
    %161 = math.rsqrt %160 : vector<5x1xf32>
    %162 = vector.broadcast %161 : vector<5x1xf32> to vector<5x32xf32>
    %163 = arith.mulf %158, %162 : vector<5x32xf32>
    %164 = vector.broadcast %144 : vector<1x32xf32> to vector<5x32xf32>
    %165 = arith.mulf %163, %164 : vector<5x32xf32>
    %166 = vector.broadcast %145 : vector<1x32xf32> to vector<5x32xf32>
    %167 = arith.addf %165, %166 : vector<5x32xf32>
    %c0_79 = arith.constant 0 : index
    %c0_80 = arith.constant 0 : index
    %c0_81 = arith.constant 0 : index
    %168 = vector.load %arg21[%c0_79, %c0_80, %c0_81] : memref<2x32x64xf32, #tpu.memory_space<vmem>>, vector<1x32x64xf32>
    %169 = vector.shape_cast %168 : vector<1x32x64xf32> to vector<32x64xf32>
    %cst_82 = arith.constant dense<0.000000e+00> : vector<5x64xf32>
    %170 = tpu.matmul %167, %169, %cst_82 {dimension_numbers = #tpu.dot_dimension_numbers<[1], [0], [0], [1], [0, 0, 1, 1], [], []>} : vector<5x32xf32>, vector<32x64xf32>, vector<5x64xf32> -> vector<5x64xf32>
    %c0_83 = arith.constant 0 : index
    %c0_84 = arith.constant 0 : index
    %171 = vector.load %arg22[%c0_83, %c0_84] : memref<2x64xf32, #tpu.memory_space<vmem>>, vector<1x64xf32>
    %172 = vector.broadcast %171 : vector<1x64xf32> to vector<5x64xf32>
    %173 = arith.addf %170, %172 : vector<5x64xf32>
    %cst_85 = arith.constant 5.000000e-01 : f32
    %174 = vector.broadcast %cst_85 : f32 to vector<5x64xf32>
    %175 = arith.mulf %174, %173 : vector<5x64xf32>
    %cst_86 = arith.constant 0.707106769 : f32
    %176 = vector.broadcast %cst_86 : f32 to vector<5x64xf32>
    %177 = arith.mulf %173, %176 : vector<5x64xf32>
    %cst_87 = arith.constant 0.000000e+00 : f32
    %178 = vector.broadcast %cst_87 : f32 to vector<5x64xf32>
    %179 = arith.cmpf olt, %177, %178 : vector<5x64xf32>
    %cst_88 = arith.constant -1.000000e+00 : f32
    %cst_89 = arith.constant 1.000000e+00 : f32
    %180 = vector.broadcast %cst_88 : f32 to vector<5x64xf32>
    %181 = vector.broadcast %cst_89 : f32 to vector<5x64xf32>
    %182 = arith.select %179, %180, %181 : vector<5x64xi1>, vector<5x64xf32>
    %183 = math.absf %177 : vector<5x64xf32>
    %cst_90 = arith.constant 0.327591091 : f32
    %184 = vector.broadcast %cst_90 : f32 to vector<5x64xf32>
    %185 = arith.mulf %184, %183 : vector<5x64xf32>
    %cst_91 = arith.constant 1.000000e+00 : f32
    %186 = vector.broadcast %cst_91 : f32 to vector<5x64xf32>
    %187 = arith.addf %186, %185 : vector<5x64xf32>
    %cst_92 = arith.constant 1.000000e+00 : f32
    %188 = vector.broadcast %cst_92 : f32 to vector<5x64xf32>
    %189 = arith.divf %188, %187 : vector<5x64xf32>
    %cst_93 = arith.constant 1.06140542 : f32
    %190 = vector.broadcast %cst_93 : f32 to vector<5x64xf32>
    %191 = arith.mulf %189, %190 : vector<5x64xf32>
    %cst_94 = arith.constant -1.45315206 : f32
    %192 = vector.broadcast %cst_94 : f32 to vector<5x64xf32>
    %193 = arith.addf %192, %191 : vector<5x64xf32>
    %194 = arith.mulf %189, %193 : vector<5x64xf32>
    %cst_95 = arith.constant 1.42141378 : f32
    %195 = vector.broadcast %cst_95 : f32 to vector<5x64xf32>
    %196 = arith.addf %195, %194 : vector<5x64xf32>
    %197 = arith.mulf %189, %196 : vector<5x64xf32>
    %cst_96 = arith.constant -0.284496725 : f32
    %198 = vector.broadcast %cst_96 : f32 to vector<5x64xf32>
    %199 = arith.addf %198, %197 : vector<5x64xf32>
    %200 = arith.mulf %189, %199 : vector<5x64xf32>
    %cst_97 = arith.constant 0.254829586 : f32
    %201 = vector.broadcast %cst_97 : f32 to vector<5x64xf32>
    %202 = arith.addf %201, %200 : vector<5x64xf32>
    %203 = arith.mulf %189, %202 : vector<5x64xf32>
    %cst_98 = arith.constant 0.000000e+00 : f32
    %204 = vector.broadcast %cst_98 : f32 to vector<5x64xf32>
    %205 = arith.subf %204, %183 : vector<5x64xf32>
    %206 = arith.mulf %205, %183 : vector<5x64xf32>
    %207 = math.exp %206 : vector<5x64xf32>
    %208 = arith.mulf %203, %207 : vector<5x64xf32>
    %cst_99 = arith.constant 1.000000e+00 : f32
    %209 = vector.broadcast %cst_99 : f32 to vector<5x64xf32>
    %210 = arith.subf %209, %208 : vector<5x64xf32>
    %211 = arith.mulf %182, %210 : vector<5x64xf32>
    %cst_100 = arith.constant 1.000000e+00 : f32
    %212 = vector.broadcast %cst_100 : f32 to vector<5x64xf32>
    %213 = arith.addf %212, %211 : vector<5x64xf32>
    %214 = arith.mulf %175, %213 : vector<5x64xf32>
    %c0_101 = arith.constant 0 : index
    %c0_102 = arith.constant 0 : index
    %c0_103 = arith.constant 0 : index
    %215 = vector.load %arg23[%c0_101, %c0_102, %c0_103] : memref<2x64x32xf32, #tpu.memory_space<vmem>>, vector<1x64x32xf32>
    %216 = vector.shape_cast %215 : vector<1x64x32xf32> to vector<64x32xf32>
    %cst_104 = arith.constant dense<0.000000e+00> : vector<5x32xf32>
    %217 = tpu.matmul %214, %216, %cst_104 {dimension_numbers = #tpu.dot_dimension_numbers<[1], [0], [0], [1], [0, 0, 1, 1], [], []>} : vector<5x64xf32>, vector<64x32xf32>, vector<5x32xf32> -> vector<5x32xf32>
    %c0_105 = arith.constant 0 : index
    %c0_106 = arith.constant 0 : index
    %218 = vector.load %arg24[%c0_105, %c0_106] : memref<2x32xf32, #tpu.memory_space<vmem>>, vector<1x32xf32>
    %219 = vector.broadcast %218 : vector<1x32xf32> to vector<5x32xf32>
    %220 = arith.addf %217, %219 : vector<5x32xf32>
    %221 = arith.addf %143, %220 : vector<5x32xf32>
    %c1 = arith.constant 1 : index
    %c0_107 = arith.constant 0 : index
    %222 = vector.load %arg14[%c1, %c0_107] : memref<2x32xf32, #tpu.memory_space<vmem>>, vector<1x32xf32>
    %c1_108 = arith.constant 1 : index
    %c0_109 = arith.constant 0 : index
    %223 = vector.load %arg15[%c1_108, %c0_109] : memref<2x32xf32, #tpu.memory_space<vmem>>, vector<1x32xf32>
    %cst_110 = arith.constant dense<0.000000e+00> : vector<5xf32>
    %224 = vector.multi_reduction <add>, %221, %cst_110 [1] : vector<5x32xf32> to vector<5xf32>
    %225 = vector.shape_cast %224 : vector<5xf32> to vector<5x1xf32>
    %cst_111 = arith.constant 3.200000e+01 : f32
    %226 = vector.broadcast %cst_111 : f32 to vector<5x1xf32>
    %227 = arith.divf %225, %226 : vector<5x1xf32>
    %228 = vector.broadcast %227 : vector<5x1xf32> to vector<5x32xf32>
    %229 = arith.subf %221, %228 : vector<5x32xf32>
    %230 = arith.mulf %229, %229 : vector<5x32xf32>
    %cst_112 = arith.constant dense<0.000000e+00> : vector<5xf32>
    %231 = vector.multi_reduction <add>, %230, %cst_112 [1] : vector<5x32xf32> to vector<5xf32>
    %232 = vector.shape_cast %231 : vector<5xf32> to vector<5x1xf32>
    %cst_113 = arith.constant 3.200000e+01 : f32
    %233 = vector.broadcast %cst_113 : f32 to vector<5x1xf32>
    %234 = arith.divf %232, %233 : vector<5x1xf32>
    %235 = vector.broadcast %227 : vector<5x1xf32> to vector<5x32xf32>
    %236 = arith.subf %221, %235 : vector<5x32xf32>
    %cst_114 = arith.constant 9.99999974E-6 : f32
    %237 = vector.broadcast %cst_114 : f32 to vector<5x1xf32>
    %238 = arith.addf %234, %237 : vector<5x1xf32>
    %239 = math.rsqrt %238 : vector<5x1xf32>
    %240 = vector.broadcast %239 : vector<5x1xf32> to vector<5x32xf32>
    %241 = arith.mulf %236, %240 : vector<5x32xf32>
    %242 = vector.broadcast %222 : vector<1x32xf32> to vector<5x32xf32>
    %243 = arith.mulf %241, %242 : vector<5x32xf32>
    %244 = vector.broadcast %223 : vector<1x32xf32> to vector<5x32xf32>
    %245 = arith.addf %243, %244 : vector<5x32xf32>
    %c1_115 = arith.constant 1 : index
    %c0_116 = arith.constant 0 : index
    %c0_117 = arith.constant 0 : index
    %246 = vector.load %arg16[%c1_115, %c0_116, %c0_117] : memref<2x32x96xf32, #tpu.memory_space<vmem>>, vector<1x32x96xf32>
    %247 = vector.shape_cast %246 : vector<1x32x96xf32> to vector<32x96xf32>
    %cst_118 = arith.constant dense<0.000000e+00> : vector<5x96xf32>
    %248 = tpu.matmul %245, %247, %cst_118 {dimension_numbers = #tpu.dot_dimension_numbers<[1], [0], [0], [1], [0, 0, 1, 1], [], []>} : vector<5x32xf32>, vector<32x96xf32>, vector<5x96xf32> -> vector<5x96xf32>
    %cst_119 = arith.constant 0.000000e+00 : f32
    %249 = vector.broadcast %cst_119 : f32 to vector<5x32xf32>
    %250 = vector.extract_strided_slice %248 {offsets = [0, 0], sizes = [5, 16], strides = [1, 1]} : vector<5x96xf32> to vector<5x16xf32>
    %251 = vector.extract_strided_slice %248 {offsets = [0, 32], sizes = [5, 16], strides = [1, 1]} : vector<5x96xf32> to vector<5x16xf32>
    %252 = vector.extract_strided_slice %248 {offsets = [0, 64], sizes = [5, 16], strides = [1, 1]} : vector<5x96xf32> to vector<5x16xf32>
    %cst_120 = arith.constant dense<0.000000e+00> : vector<5x5xf32>
    %253 = tpu.matmul %250, %251, %cst_120 {dimension_numbers = #tpu.dot_dimension_numbers<[1], [1], [0], [0], [0, 0, 1, 0], [], []>} : vector<5x16xf32>, vector<5x16xf32>, vector<5x5xf32> -> vector<5x5xf32>
    %cst_121 = arith.constant 2.500000e-01 : f32
    %254 = vector.broadcast %cst_121 : f32 to vector<5x5xf32>
    %255 = arith.mulf %253, %254 : vector<5x5xf32>
    %cst_122 = arith.constant dense<0xFF800000> : vector<5xf32>
    %256 = vector.multi_reduction <maximumf>, %255, %cst_122 [1] : vector<5x5xf32> to vector<5xf32>
    %257 = vector.shape_cast %256 : vector<5xf32> to vector<5x1xf32>
    %258 = vector.broadcast %257 : vector<5x1xf32> to vector<5x5xf32>
    %259 = arith.subf %255, %258 : vector<5x5xf32>
    %260 = math.exp %259 : vector<5x5xf32>
    %cst_123 = arith.constant dense<0.000000e+00> : vector<5xf32>
    %261 = vector.multi_reduction <add>, %260, %cst_123 [1] : vector<5x5xf32> to vector<5xf32>
    %262 = vector.shape_cast %261 : vector<5xf32> to vector<5x1xf32>
    %263 = vector.broadcast %262 : vector<5x1xf32> to vector<5x5xf32>
    %264 = arith.divf %260, %263 : vector<5x5xf32>
    %c0_124 = arith.constant 0 : index
    %c10 = arith.constant 10 : index
    %c0_125 = arith.constant 0 : index
    %265 = vector.load %arg26[%c0_124, %c10, %c0_125] : memref<1x20x128xf32, #tpu.memory_space<vmem>>, vector<1x5x5xf32>
    %266 = vector.shape_cast %265 : vector<1x5x5xf32> to vector<5x5xf32>
    %267 = vector.shape_cast %264 : vector<5x5xf32> to vector<1x5x5xf32>
    tpu.vector_store %arg26[%c0_124, %c10, %c0_125], %267 {strides = array<i32>} : memref<1x20x128xf32, #tpu.memory_space<vmem>>, vector<1x5x5xf32>,
    %cst_126 = arith.constant dense<0.000000e+00> : vector<5x16xf32>
    %268 = tpu.matmul %264, %252, %cst_126 {dimension_numbers = #tpu.dot_dimension_numbers<[1], [0], [0], [1], [0, 0, 1, 1], [], []>} : vector<5x5xf32>, vector<5x16xf32>, vector<5x16xf32> -> vector<5x16xf32>
    %c1_127 = arith.constant 1 : index
    %c0_128 = arith.constant 0 : index
    %c0_129 = arith.constant 0 : index
    %269 = vector.load %arg17[%c1_127, %c0_128, %c0_129] : memref<2x32x32xf32, #tpu.memory_space<vmem>>, vector<1x16x32xf32>
    %270 = vector.shape_cast %269 : vector<1x16x32xf32> to vector<16x32xf32>
    %cst_130 = arith.constant dense<0.000000e+00> : vector<5x32xf32>
    %271 = tpu.matmul %268, %270, %cst_130 {dimension_numbers = #tpu.dot_dimension_numbers<[1], [0], [0], [1], [0, 0, 1, 1], [], []>} : vector<5x16xf32>, vector<16x32xf32>, vector<5x32xf32> -> vector<5x32xf32>
    %272 = arith.addf %249, %271 : vector<5x32xf32>
    %273 = vector.extract_strided_slice %248 {offsets = [0, 16], sizes = [5, 16], strides = [1, 1]} : vector<5x96xf32> to vector<5x16xf32>
    %274 = vector.extract_strided_slice %248 {offsets = [0, 48], sizes = [5, 16], strides = [1, 1]} : vector<5x96xf32> to vector<5x16xf32>
    %275 = vector.extract_strided_slice %248 {offsets = [0, 80], sizes = [5, 16], strides = [1, 1]} : vector<5x96xf32> to vector<5x16xf32>
    %cst_131 = arith.constant dense<0.000000e+00> : vector<5x5xf32>
    %276 = tpu.matmul %273, %274, %cst_131 {dimension_numbers = #tpu.dot_dimension_numbers<[1], [1], [0], [0], [0, 0, 1, 0], [], []>} : vector<5x16xf32>, vector<5x16xf32>, vector<5x5xf32> -> vector<5x5xf32>
    %cst_132 = arith.constant 2.500000e-01 : f32
    %277 = vector.broadcast %cst_132 : f32 to vector<5x5xf32>
    %278 = arith.mulf %276, %277 : vector<5x5xf32>
    %cst_133 = arith.constant dense<0xFF800000> : vector<5xf32>
    %279 = vector.multi_reduction <maximumf>, %278, %cst_133 [1] : vector<5x5xf32> to vector<5xf32>
    %280 = vector.shape_cast %279 : vector<5xf32> to vector<5x1xf32>
    %281 = vector.broadcast %280 : vector<5x1xf32> to vector<5x5xf32>
    %282 = arith.subf %278, %281 : vector<5x5xf32>
    %283 = math.exp %282 : vector<5x5xf32>
    %cst_134 = arith.constant dense<0.000000e+00> : vector<5xf32>
    %284 = vector.multi_reduction <add>, %283, %cst_134 [1] : vector<5x5xf32> to vector<5xf32>
    %285 = vector.shape_cast %284 : vector<5xf32> to vector<5x1xf32>
    %286 = vector.broadcast %285 : vector<5x1xf32> to vector<5x5xf32>
    %287 = arith.divf %283, %286 : vector<5x5xf32>
    %c0_135 = arith.constant 0 : index
    %c15 = arith.constant 15 : index
    %c0_136 = arith.constant 0 : index
    %288 = vector.load %arg26[%c0_135, %c15, %c0_136] : memref<1x20x128xf32, #tpu.memory_space<vmem>>, vector<1x5x5xf32>
    %289 = vector.shape_cast %288 : vector<1x5x5xf32> to vector<5x5xf32>
    %290 = vector.shape_cast %287 : vector<5x5xf32> to vector<1x5x5xf32>
    tpu.vector_store %arg26[%c0_135, %c15, %c0_136], %290 {strides = array<i32>} : memref<1x20x128xf32, #tpu.memory_space<vmem>>, vector<1x5x5xf32>,
    %cst_137 = arith.constant dense<0.000000e+00> : vector<5x16xf32>
    %291 = tpu.matmul %287, %275, %cst_137 {dimension_numbers = #tpu.dot_dimension_numbers<[1], [0], [0], [1], [0, 0, 1, 1], [], []>} : vector<5x5xf32>, vector<5x16xf32>, vector<5x16xf32> -> vector<5x16xf32>
    %c1_138 = arith.constant 1 : index
    %c16_139 = arith.constant 16 : index
    %c0_140 = arith.constant 0 : index
    %292 = vector.load %arg17[%c1_138, %c16_139, %c0_140] : memref<2x32x32xf32, #tpu.memory_space<vmem>>, vector<1x16x32xf32>
    %293 = vector.shape_cast %292 : vector<1x16x32xf32> to vector<16x32xf32>
    %cst_141 = arith.constant dense<0.000000e+00> : vector<5x32xf32>
    %294 = tpu.matmul %291, %293, %cst_141 {dimension_numbers = #tpu.dot_dimension_numbers<[1], [0], [0], [1], [0, 0, 1, 1], [], []>} : vector<5x16xf32>, vector<16x32xf32>, vector<5x32xf32> -> vector<5x32xf32>
    %295 = arith.addf %272, %294 : vector<5x32xf32>
    %296 = arith.addf %221, %295 : vector<5x32xf32>
    %c1_142 = arith.constant 1 : index
    %c0_143 = arith.constant 0 : index
    %297 = vector.load %arg18[%c1_142, %c0_143] : memref<2x32xf32, #tpu.memory_space<vmem>>, vector<1x32xf32>
    %298 = vector.broadcast %297 : vector<1x32xf32> to vector<5x32xf32>
    %299 = arith.addf %296, %298 : vector<5x32xf32>
    %c1_144 = arith.constant 1 : index
    %c0_145 = arith.constant 0 : index
    %300 = vector.load %arg19[%c1_144, %c0_145] : memref<2x32xf32, #tpu.memory_space<vmem>>, vector<1x32xf32>
    %c1_146 = arith.constant 1 : index
    %c0_147 = arith.constant 0 : index
    %301 = vector.load %arg20[%c1_146, %c0_147] : memref<2x32xf32, #tpu.memory_space<vmem>>, vector<1x32xf32>
    %cst_148 = arith.constant dense<0.000000e+00> : vector<5xf32>
    %302 = vector.multi_reduction <add>, %299, %cst_148 [1] : vector<5x32xf32> to vector<5xf32>
    %303 = vector.shape_cast %302 : vector<5xf32> to vector<5x1xf32>
    %cst_149 = arith.constant 3.200000e+01 : f32
    %304 = vector.broadcast %cst_149 : f32 to vector<5x1xf32>
    %305 = arith.divf %303, %304 : vector<5x1xf32>
    %306 = vector.broadcast %305 : vector<5x1xf32> to vector<5x32xf32>
    %307 = arith.subf %299, %306 : vector<5x32xf32>
    %308 = arith.mulf %307, %307 : vector<5x32xf32>
    %cst_150 = arith.constant dense<0.000000e+00> : vector<5xf32>
    %309 = vector.multi_reduction <add>, %308, %cst_150 [1] : vector<5x32xf32> to vector<5xf32>
    %310 = vector.shape_cast %309 : vector<5xf32> to vector<5x1xf32>
    %cst_151 = arith.constant 3.200000e+01 : f32
    %311 = vector.broadcast %cst_151 : f32 to vector<5x1xf32>
    %312 = arith.divf %310, %311 : vector<5x1xf32>
    %313 = vector.broadcast %305 : vector<5x1xf32> to vector<5x32xf32>
    %314 = arith.subf %299, %313 : vector<5x32xf32>
    %cst_152 = arith.constant 9.99999974E-6 : f32
    %315 = vector.broadcast %cst_152 : f32 to vector<5x1xf32>
    %316 = arith.addf %312, %315 : vector<5x1xf32>
    %317 = math.rsqrt %316 : vector<5x1xf32>
    %318 = vector.broadcast %317 : vector<5x1xf32> to vector<5x32xf32>
    %319 = arith.mulf %314, %318 : vector<5x32xf32>
    %320 = vector.broadcast %300 : vector<1x32xf32> to vector<5x32xf32>
    %321 = arith.mulf %319, %320 : vector<5x32xf32>
    %322 = vector.broadcast %301 : vector<1x32xf32> to vector<5x32xf32>
    %323 = arith.addf %321, %322 : vector<5x32xf32>
    %c1_153 = arith.constant 1 : index
    %c0_154 = arith.constant 0 : index
    %c0_155 = arith.constant 0 : index
    %324 = vector.load %arg21[%c1_153, %c0_154, %c0_155] : memref<2x32x64xf32, #tpu.memory_space<vmem>>, vector<1x32x64xf32>
    %325 = vector.shape_cast %324 : vector<1x32x64xf32> to vector<32x64xf32>
    %cst_156 = arith.constant dense<0.000000e+00> : vector<5x64xf32>
    %326 = tpu.matmul %323, %325, %cst_156 {dimension_numbers = #tpu.dot_dimension_numbers<[1], [0], [0], [1], [0, 0, 1, 1], [], []>} : vector<5x32xf32>, vector<32x64xf32>, vector<5x64xf32> -> vector<5x64xf32>
    %c1_157 = arith.constant 1 : index
    %c0_158 = arith.constant 0 : index
    %327 = vector.load %arg22[%c1_157, %c0_158] : memref<2x64xf32, #tpu.memory_space<vmem>>, vector<1x64xf32>
    %328 = vector.broadcast %327 : vector<1x64xf32> to vector<5x64xf32>
    %329 = arith.addf %326, %328 : vector<5x64xf32>
    %cst_159 = arith.constant 5.000000e-01 : f32
    %330 = vector.broadcast %cst_159 : f32 to vector<5x64xf32>
    %331 = arith.mulf %330, %329 : vector<5x64xf32>
    %cst_160 = arith.constant 0.707106769 : f32
    %332 = vector.broadcast %cst_160 : f32 to vector<5x64xf32>
    %333 = arith.mulf %329, %332 : vector<5x64xf32>
    %cst_161 = arith.constant 0.000000e+00 : f32
    %334 = vector.broadcast %cst_161 : f32 to vector<5x64xf32>
    %335 = arith.cmpf olt, %333, %334 : vector<5x64xf32>
    %cst_162 = arith.constant -1.000000e+00 : f32
    %cst_163 = arith.constant 1.000000e+00 : f32
    %336 = vector.broadcast %cst_162 : f32 to vector<5x64xf32>
    %337 = vector.broadcast %cst_163 : f32 to vector<5x64xf32>
    %338 = arith.select %335, %336, %337 : vector<5x64xi1>, vector<5x64xf32>
    %339 = math.absf %333 : vector<5x64xf32>
    %cst_164 = arith.constant 0.327591091 : f32
    %340 = vector.broadcast %cst_164 : f32 to vector<5x64xf32>
    %341 = arith.mulf %340, %339 : vector<5x64xf32>
    %cst_165 = arith.constant 1.000000e+00 : f32
    %342 = vector.broadcast %cst_165 : f32 to vector<5x64xf32>
    %343 = arith.addf %342, %341 : vector<5x64xf32>
    %cst_166 = arith.constant 1.000000e+00 : f32
    %344 = vector.broadcast %cst_166 : f32 to vector<5x64xf32>
    %345 = arith.divf %344, %343 : vector<5x64xf32>
    %cst_167 = arith.constant 1.06140542 : f32
    %346 = vector.broadcast %cst_167 : f32 to vector<5x64xf32>
    %347 = arith.mulf %345, %346 : vector<5x64xf32>
    %cst_168 = arith.constant -1.45315206 : f32
    %348 = vector.broadcast %cst_168 : f32 to vector<5x64xf32>
    %349 = arith.addf %348, %347 : vector<5x64xf32>
    %350 = arith.mulf %345, %349 : vector<5x64xf32>
    %cst_169 = arith.constant 1.42141378 : f32
    %351 = vector.broadcast %cst_169 : f32 to vector<5x64xf32>
    %352 = arith.addf %351, %350 : vector<5x64xf32>
    %353 = arith.mulf %345, %352 : vector<5x64xf32>
    %cst_170 = arith.constant -0.284496725 : f32
    %354 = vector.broadcast %cst_170 : f32 to vector<5x64xf32>
    %355 = arith.addf %354, %353 : vector<5x64xf32>
    %356 = arith.mulf %345, %355 : vector<5x64xf32>
    %cst_171 = arith.constant 0.254829586 : f32
    %357 = vector.broadcast %cst_171 : f32 to vector<5x64xf32>
    %358 = arith.addf %357, %356 : vector<5x64xf32>
    %359 = arith.mulf %345, %358 : vector<5x64xf32>
    %cst_172 = arith.constant 0.000000e+00 : f32
    %360 = vector.broadcast %cst_172 : f32 to vector<5x64xf32>
    %361 = arith.subf %360, %339 : vector<5x64xf32>
    %362 = arith.mulf %361, %339 : vector<5x64xf32>
    %363 = math.exp %362 : vector<5x64xf32>
    %364 = arith.mulf %359, %363 : vector<5x64xf32>
    %cst_173 = arith.constant 1.000000e+00 : f32
    %365 = vector.broadcast %cst_173 : f32 to vector<5x64xf32>
    %366 = arith.subf %365, %364 : vector<5x64xf32>
    %367 = arith.mulf %338, %366 : vector<5x64xf32>
    %cst_174 = arith.constant 1.000000e+00 : f32
    %368 = vector.broadcast %cst_174 : f32 to vector<5x64xf32>
    %369 = arith.addf %368, %367 : vector<5x64xf32>
    %370 = arith.mulf %331, %369 : vector<5x64xf32>
    %c1_175 = arith.constant 1 : index
    %c0_176 = arith.constant 0 : index
    %c0_177 = arith.constant 0 : index
    %371 = vector.load %arg23[%c1_175, %c0_176, %c0_177] : memref<2x64x32xf32, #tpu.memory_space<vmem>>, vector<1x64x32xf32>
    %372 = vector.shape_cast %371 : vector<1x64x32xf32> to vector<64x32xf32>
    %cst_178 = arith.constant dense<0.000000e+00> : vector<5x32xf32>
    %373 = tpu.matmul %370, %372, %cst_178 {dimension_numbers = #tpu.dot_dimension_numbers<[1], [0], [0], [1], [0, 0, 1, 1], [], []>} : vector<5x64xf32>, vector<64x32xf32>, vector<5x32xf32> -> vector<5x32xf32>
    %c1_179 = arith.constant 1 : index
    %c0_180 = arith.constant 0 : index
    %374 = vector.load %arg24[%c1_179, %c0_180] : memref<2x32xf32, #tpu.memory_space<vmem>>, vector<1x32xf32>
    %375 = vector.broadcast %374 : vector<1x32xf32> to vector<5x32xf32>
    %376 = arith.addf %373, %375 : vector<5x32xf32>
    %377 = arith.addf %299, %376 : vector<5x32xf32>
    %c0_181 = arith.constant 0 : index
    %c0_182 = arith.constant 0 : index
    %378 = vector.load %arg10[%c0_181, %c0_182] : memref<1x32xf32, #tpu.memory_space<vmem>>, vector<1x32xf32>
    %c0_183 = arith.constant 0 : index
    %c0_184 = arith.constant 0 : index
    %379 = vector.load %arg11[%c0_183, %c0_184] : memref<1x32xf32, #tpu.memory_space<vmem>>, vector<1x32xf32>
    %cst_185 = arith.constant dense<0.000000e+00> : vector<5xf32>
    %380 = vector.multi_reduction <add>, %377, %cst_185 [1] : vector<5x32xf32> to vector<5xf32>
    %381 = vector.shape_cast %380 : vector<5xf32> to vector<5x1xf32>
    %cst_186 = arith.constant 3.200000e+01 : f32
    %382 = vector.broadcast %cst_186 : f32 to vector<5x1xf32>
    %383 = arith.divf %381, %382 : vector<5x1xf32>
    %384 = vector.broadcast %383 : vector<5x1xf32> to vector<5x32xf32>
    %385 = arith.subf %377, %384 : vector<5x32xf32>
    %386 = arith.mulf %385, %385 : vector<5x32xf32>
    %cst_187 = arith.constant dense<0.000000e+00> : vector<5xf32>
    %387 = vector.multi_reduction <add>, %386, %cst_187 [1] : vector<5x32xf32> to vector<5xf32>
    %388 = vector.shape_cast %387 : vector<5xf32> to vector<5x1xf32>
    %cst_188 = arith.constant 3.200000e+01 : f32
    %389 = vector.broadcast %cst_188 : f32 to vector<5x1xf32>
    %390 = arith.divf %388, %389 : vector<5x1xf32>
    %391 = vector.broadcast %383 : vector<5x1xf32> to vector<5x32xf32>
    %392 = arith.subf %377, %391 : vector<5x32xf32>
    %cst_189 = arith.constant 9.99999974E-6 : f32
    %393 = vector.broadcast %cst_189 : f32 to vector<5x1xf32>
    %394 = arith.addf %390, %393 : vector<5x1xf32>
    %395 = math.rsqrt %394 : vector<5x1xf32>
    %396 = vector.broadcast %395 : vector<5x1xf32> to vector<5x32xf32>
    %397 = arith.mulf %392, %396 : vector<5x32xf32>
    %398 = vector.broadcast %378 : vector<1x32xf32> to vector<5x32xf32>
    %399 = arith.mulf %397, %398 : vector<5x32xf32>
    %400 = vector.broadcast %379 : vector<1x32xf32> to vector<5x32xf32>
    %401 = arith.addf %399, %400 : vector<5x32xf32>
    %402 = vector.extract_strided_slice %401 {offsets = [0, 0], sizes = [1, 32], strides = [1, 1]} : vector<5x32xf32> to vector<1x32xf32>
    %c0_190 = arith.constant 0 : index
    %c0_191 = arith.constant 0 : index
    %403 = vector.load %arg12[%c0_190, %c0_191] : memref<32x10xf32, #tpu.memory_space<vmem>>, vector<32x10xf32>
    %cst_192 = arith.constant dense<0.000000e+00> : vector<1x10xf32>
    %404 = tpu.matmul %402, %403, %cst_192 {dimension_numbers = #tpu.dot_dimension_numbers<[1], [0], [0], [1], [0, 0, 1, 1], [], []>} : vector<1x32xf32>, vector<32x10xf32>, vector<1x10xf32> -> vector<1x10xf32>
    %c0_193 = arith.constant 0 : index
    %c0_194 = arith.constant 0 : index
    %405 = vector.load %arg13[%c0_193, %c0_194] : memref<1x10xf32, #tpu.memory_space<vmem>>, vector<1x10xf32>
    %406 = arith.addf %404, %405 : vector<1x10xf32>
    %c0_195 = arith.constant 0 : index
    %c0_196 = arith.constant 0 : index
    %c0_197 = arith.constant 0 : index
    %407 = vector.load %arg25[%c0_195, %c0_196, %c0_197] : memref<1x1x10xf32, #tpu.memory_space<vmem>>, vector<1x1x10xf32>
    %408 = vector.shape_cast %407 : vector<1x1x10xf32> to vector<1x10xf32>
    %409 = vector.shape_cast %406 : vector<1x10xf32> to vector<1x1x10xf32>
    tpu.vector_store %arg25[%c0_195, %c0_196, %c0_197], %409 {strides = array<i32>} : memref<1x1x10xf32, #tpu.memory_space<vmem>>, vector<1x1x10xf32>,
    return
  }
  func.func @transform_0(%arg0: i32) -> (i32, i32, i32) {
    %c0_i32 = arith.constant 0 : i32
    %c0_i32_0 = arith.constant 0 : i32
    %c0_i32_1 = arith.constant 0 : i32
    return %arg0, %c0_i32, %c0_i32_0 : i32, i32, i32
  }
  func.func @transform_1(%arg0: i32) -> (i32, i32) {
    %c0_i32 = arith.constant 0 : i32
    %c0_i32_0 = arith.constant 0 : i32
    %c0_i32_1 = arith.constant 0 : i32
    return %c0_i32, %c0_i32_0 : i32, i32
  }
  func.func @transform_2(%arg0: i32) -> (i32, i32) {
    %c0_i32 = arith.constant 0 : i32
    %c0_i32_0 = arith.constant 0 : i32
    %c0_i32_1 = arith.constant 0 : i32
    return %c0_i32, %c0_i32_0 : i32, i32
  }
  func.func @transform_3(%arg0: i32) -> (i32, i32) {
    %c0_i32 = arith.constant 0 : i32
    %c0_i32_0 = arith.constant 0 : i32
    %c0_i32_1 = arith.constant 0 : i32
    return %c0_i32, %c0_i32_0 : i32, i32
  }
  func.func @transform_4(%arg0: i32) -> (i32, i32) {
    %c0_i32 = arith.constant 0 : i32
    %c0_i32_0 = arith.constant 0 : i32
    %c0_i32_1 = arith.constant 0 : i32
    return %c0_i32, %c0_i32_0 : i32, i32
  }
  func.func @transform_5(%arg0: i32) -> (i32, i32) {
    %c0_i32 = arith.constant 0 : i32
    %c0_i32_0 = arith.constant 0 : i32
    %c0_i32_1 = arith.constant 0 : i32
    return %c0_i32, %c0_i32_0 : i32, i32
  }
  func.func @transform_6(%arg0: i32) -> (i32, i32) {
    %c0_i32 = arith.constant 0 : i32
    %c0_i32_0 = arith.constant 0 : i32
    %c0_i32_1 = arith.constant 0 : i32
    return %c0_i32, %c0_i32_0 : i32, i32
  }
  func.func @transform_7(%arg0: i32) -> (i32, i32) {
    %c0_i32 = arith.constant 0 : i32
    %c0_i32_0 = arith.constant 0 : i32
    %c0_i32_1 = arith.constant 0 : i32
    return %c0_i32, %c0_i32_0 : i32, i32
  }
  func.func @transform_8(%arg0: i32) -> (i32, i32) {
    %c0_i32 = arith.constant 0 : i32
    %c0_i32_0 = arith.constant 0 : i32
    %c0_i32_1 = arith.constant 0 : i32
    return %c0_i32, %c0_i32_0 : i32, i32
  }
  func.func @transform_9(%arg0: i32) -> (i32, i32) {
    %c0_i32 = arith.constant 0 : i32
    %c0_i32_0 = arith.constant 0 : i32
    %c0_i32_1 = arith.constant 0 : i32
    return %c0_i32, %c0_i32_0 : i32, i32
  }
  func.func @transform_10(%arg0: i32) -> (i32, i32) {
    %c0_i32 = arith.constant 0 : i32
    %c0_i32_0 = arith.constant 0 : i32
    %c0_i32_1 = arith.constant 0 : i32
    return %c0_i32, %c0_i32_0 : i32, i32
  }
  func.func @transform_11(%arg0: i32) -> (i32, i32) {
    %c0_i32 = arith.constant 0 : i32
    %c0_i32_0 = arith.constant 0 : i32
    %c0_i32_1 = arith.constant 0 : i32
    return %c0_i32, %c0_i32_0 : i32, i32
  }
  func.func @transform_12(%arg0: i32) -> (i32, i32) {
    %c0_i32 = arith.constant 0 : i32
    %c0_i32_0 = arith.constant 0 : i32
    %c0_i32_1 = arith.constant 0 : i32
    return %c0_i32, %c0_i32_0 : i32, i32
  }
  func.func @transform_13(%arg0: i32) -> (i32, i32) {
    %c0_i32 = arith.constant 0 : i32
    %c0_i32_0 = arith.constant 0 : i32
    %c0_i32_1 = arith.constant 0 : i32
    return %c0_i32, %c0_i32_0 : i32, i32
  }
  func.func @transform_14(%arg0: i32) -> (i32, i32) {
    %c0_i32 = arith.constant 0 : i32
    %c0_i32_0 = arith.constant 0 : i32
    %c0_i32_1 = arith.constant 0 : i32
    return %c0_i32, %c0_i32_0 : i32, i32
  }
  func.func @transform_15(%arg0: i32) -> (i32, i32, i32) {
    %c0_i32 = arith.constant 0 : i32
    %c0_i32_0 = arith.constant 0 : i32
    %c0_i32_1 = arith.constant 0 : i32
    %c0_i32_2 = arith.constant 0 : i32
    return %c0_i32, %c0_i32_0, %c0_i32_1 : i32, i32, i32
  }
  func.func @transform_16(%arg0: i32) -> (i32, i32, i32) {
    %c0_i32 = arith.constant 0 : i32
    %c0_i32_0 = arith.constant 0 : i32
    %c0_i32_1 = arith.constant 0 : i32
    %c0_i32_2 = arith.constant 0 : i32
    return %c0_i32, %c0_i32_0, %c0_i32_1 : i32, i32, i32
  }
  func.func @transform_17(%arg0: i32) -> (i32, i32) {
    %c0_i32 = arith.constant 0 : i32
    %c0_i32_0 = arith.constant 0 : i32
    %c0_i32_1 = arith.constant 0 : i32
    return %c0_i32, %c0_i32_0 : i32, i32
  }
  func.func @transform_18(%arg0: i32) -> (i32, i32) {
    %c0_i32 = arith.constant 0 : i32
    %c0_i32_0 = arith.constant 0 : i32
    %c0_i32_1 = arith.constant 0 : i32
    return %c0_i32, %c0_i32_0 : i32, i32
  }
  func.func @transform_19(%arg0: i32) -> (i32, i32) {
    %c0_i32 = arith.constant 0 : i32
    %c0_i32_0 = arith.constant 0 : i32
    %c0_i32_1 = arith.constant 0 : i32
    return %c0_i32, %c0_i32_0 : i32, i32
  }
  func.func @transform_20(%arg0: i32) -> (i32, i32, i32) {
    %c0_i32 = arith.constant 0 : i32
    %c0_i32_0 = arith.constant 0 : i32
    %c0_i32_1 = arith.constant 0 : i32
    %c0_i32_2 = arith.constant 0 : i32
    return %c0_i32, %c0_i32_0, %c0_i32_1 : i32, i32, i32
  }
  func.func @transform_21(%arg0: i32) -> (i32, i32) {
    %c0_i32 = arith.constant 0 : i32
    %c0_i32_0 = arith.constant 0 : i32
    %c0_i32_1 = arith.constant 0 : i32
    return %c0_i32, %c0_i32_0 : i32, i32
  }
  func.func @transform_22(%arg0: i32) -> (i32, i32, i32) {
    %c0_i32 = arith.constant 0 : i32
    %c0_i32_0 = arith.constant 0 : i32
    %c0_i32_1 = arith.constant 0 : i32
    %c0_i32_2 = arith.constant 0 : i32
    return %c0_i32, %c0_i32_0, %c0_i32_1 : i32, i32, i32
  }
  func.func @transform_23(%arg0: i32) -> (i32, i32) {
    %c0_i32 = arith.constant 0 : i32
    %c0_i32_0 = arith.constant 0 : i32
    %c0_i32_1 = arith.constant 0 : i32
    return %c0_i32, %c0_i32_0 : i32, i32
  }
  func.func @transform_24(%arg0: i32) -> (i32, i32, i32) {
    %c0_i32 = arith.constant 0 : i32
    %c0_i32_0 = arith.constant 0 : i32
    %c0_i32_1 = arith.constant 0 : i32
    return %arg0, %c0_i32, %c0_i32_0 : i32, i32, i32
  }
  func.func @transform_25(%arg0: i32) -> (i32, i32, i32) {
    %c0_i32 = arith.constant 0 : i32
    %c0_i32_0 = arith.constant 0 : i32
    %c0_i32_1 = arith.constant 0 : i32
    return %arg0, %c0_i32, %c0_i32_0 : i32, i32, i32
  }
}

</mosaic_0001>

<llo_original>
// kernel: recorder_forward.1
$region0: #{recorder_forward.1}
  #allocation0 [shape = 'u32[]', space=smem, size = 0x4, offset = 0x4, fixed_abs, tag = 'smem constant byte address 0x4 - core index']
  #allocation1 [shape = 'u32[144,128]{1,0:T(1,128)}', space=vmem, size = 0x12000, scoped, tag = 'internal scratch']
  %s0 = inlined_call_operand.vmem [shape: f32[2,5,192], index: 0, kind: input, shape index: {}]
  %s1 = inlined_call_operand.vmem [shape: f32[1,192], index: 1, kind: input, shape index: {}]
  %s2 = inlined_call_operand.vmem [shape: f32[1,192], index: 2, kind: input, shape index: {}]
  %s3 = inlined_call_operand.vmem [shape: f32[192,32], index: 3, kind: input, shape index: {}]
  %s4 = inlined_call_operand.vmem [shape: f32[1,32], index: 4, kind: input, shape index: {}]
  %s5 = inlined_call_operand.vmem [shape: f32[1,32], index: 5, kind: input, shape index: {}]
  %s6 = inlined_call_operand.vmem [shape: f32[1,32], index: 6, kind: input, shape index: {}]
  %s7 = inlined_call_operand.vmem [shape: f32[1,32], index: 7, kind: input, shape index: {}]
  %s8 = inlined_call_operand.vmem [shape: f32[5,32], index: 8, kind: input, shape index: {}]
  %s9 = inlined_call_operand.vmem [shape: f32[1,32], index: 9, kind: input, shape index: {}]
  %s10 = inlined_call_operand.vmem [shape: f32[1,32], index: 10, kind: input, shape index: {}]
  %s11 = inlined_call_operand.vmem [shape: f32[32,10], index: 11, kind: input, shape index: {}]
  %s12 = inlined_call_operand.vmem [shape: f32[1,10], index: 12, kind: input, shape index: {}]
  %s13 = inlined_call_operand.vmem [shape: f32[2,32], index: 13, kind: input, shape index: {}]
  %s14 = inlined_call_operand.vmem [shape: f32[2,32], index: 14, kind: input, shape index: {}]
  %s15 = inlined_call_operand.vmem [shape: f32[2,32,96], index: 15, kind: input, shape index: {}]
  %s16 = inlined_call_operand.vmem [shape: f32[2,32,32], index: 16, kind: input, shape index: {}]
  %s17 = inlined_call_operand.vmem [shape: f32[2,32], index: 17, kind: input, shape index: {}]
  %s18 = inlined_call_operand.vmem [shape: f32[2,32], index: 18, kind: input, shape index: {}]
  %s19 = inlined_call_operand.vmem [shape: f32[2,32], index: 19, kind: input, shape index: {}]
  %s20 = inlined_call_operand.vmem [shape: f32[2,32,64], index: 20, kind: input, shape index: {}]
  %s21 = inlined_call_operand.vmem [shape: f32[2,64], index: 21, kind: input, shape index: {}]
  %s22 = inlined_call_operand.vmem [shape: f32[2,64,32], index: 22, kind: input, shape index: {}]
  %s23 = inlined_call_operand.vmem [shape: f32[2,32], index: 23, kind: input, shape index: {}]
  %s24 = inlined_call_operand.hbm [shape: f32[2,1,10], index: 24, kind: output, shape index: {0}]
  %s25 = inlined_call_operand.vmem [shape: f32[2,20,128], index: 25, kind: output, shape index: {1}]
  %26 = xla_tuple %s24, %s25
  %s27 = sld [smem:[#allocation0]]
  $region137: #{recorder_forward.1} parent=0
    _
  %s29 = ssub.s32 1, %s27
  %s30 = scalar_select 0, %s29, %s27
  $region1: #{recorder_forward.1} parent=0
    #allocation2 [shape = 'u8[1024]{0}', space=vmem, size = 0x400, scoped, tag = 'output window, operand 0']
    #allocation3 [shape = 's32[2]{0}', space=sflag, size = 0x8, scoped, tag = 'scoped memory for recorder_forward.1']
    %31 = vsyncpa [#allocation3], 0
    %s32 = scalar_lea.sflag [#allocation3], 1
    %33 = vsyncpa %s32, 0
    loop: start=0, step=1, limit=4
    $region2: #{recorder_forward.1} parent=1 // loop_pre_header
      _
    $region3: #{recorder_forward.1} parent=1 // loop_header
      %s35 = sphi 0, %s39
      %p36 = scmp.ge.s32.totalorder %s35, 4
      %s45 = sphi 0, %s47
      %s48 = sphi 0, %s45
      %s49 = sphi 0, %s48
      %s65 = sphi 0, %s49
      %s69 = sphi 0, %s69
      %s71 = sphi 0, %s69
      %s72 = sphi 0, %s71
      %s86 = sphi 0, %s72
      %s90 = sphi 0, %s90
      %s92 = sphi 0, %s90
      %s93 = sphi 0, %s92
      %s107 = sphi 0, %s93
      %s111 = sphi 0, %s111
      %s113 = sphi 0, %s111
      %s114 = sphi 0, %s113
      %s128 = sphi 0, %s114
      %s132 = sphi 0, %s132
      %s134 = sphi 0, %s132
      %s135 = sphi 0, %s134
      %s149 = sphi 0, %s135
      %s153 = sphi 0, %s153
      %s155 = sphi 0, %s153
      %s156 = sphi 0, %s155
      %s170 = sphi 0, %s156
      %s174 = sphi 0, %s174
      %s176 = sphi 0, %s174
      %s177 = sphi 0, %s176
      %s191 = sphi 0, %s177
      %s195 = sphi 0, %s195
      %s197 = sphi 0, %s195
      %s198 = sphi 0, %s197
      %s212 = sphi 0, %s198
      %s216 = sphi 0, %s216
      %s218 = sphi 0, %s216
      %s219 = sphi 0, %s218
      %s233 = sphi 0, %s219
      %s237 = sphi 0, %s237
      %s239 = sphi 0, %s237
      %s240 = sphi 0, %s239
      %s254 = sphi 0, %s240
      %s258 = sphi 0, %s258
      %s260 = sphi 0, %s258
      %s261 = sphi 0, %s260
      %s275 = sphi 0, %s261
      %s279 = sphi 0, %s279
      %s281 = sphi 0, %s279
      %s282 = sphi 0, %s281
      %s296 = sphi 0, %s282
      %s300 = sphi 0, %s300
      %s302 = sphi 0, %s300
      %s303 = sphi 0, %s302
      %s317 = sphi 0, %s303
      %s321 = sphi 0, %s321
      %s323 = sphi 0, %s321
      %s324 = sphi 0, %s323
      %s338 = sphi 0, %s324
      %s342 = sphi 0, %s342
      %s344 = sphi 0, %s342
      %s345 = sphi 0, %s344
      %s359 = sphi 0, %s345
      %s363 = sphi 0, %s363
      %s365 = sphi 0, %s363
      %s366 = sphi 0, %s365
      %s380 = sphi 0, %s366
      %s384 = sphi 0, %s384
      %s386 = sphi 0, %s384
      %s387 = sphi 0, %s386
      %s401 = sphi 0, %s387
      %s405 = sphi 0, %s405
      %s407 = sphi 0, %s405
      %s408 = sphi 0, %s407
      %s422 = sphi 0, %s408
      %s426 = sphi 0, %s426
      %s428 = sphi 0, %s426
      %s429 = sphi 0, %s428
      %s443 = sphi 0, %s429
      %s447 = sphi 0, %s447
      %s449 = sphi 0, %s447
      %s450 = sphi 0, %s449
      %s464 = sphi 0, %s450
      %s468 = sphi 0, %s468
      %s470 = sphi 0, %s468
      %s471 = sphi 0, %s470
      %s485 = sphi 0, %s471
      %s489 = sphi 0, %s489
      %s491 = sphi 0, %s489
      %s492 = sphi 0, %s491
      %s506 = sphi 0, %s492
      %s510 = sphi 0, %s510
      %s512 = sphi 0, %s510
      %s513 = sphi 0, %s512
      %s527 = sphi 0, %s513
      %s531 = sphi 0, %s531
      %s533 = sphi 0, %s531
      %s534 = sphi 0, %s533
      %s548 = sphi 0, %s534
      %s554 = sphi 0, %s556
      %s557 = sphi 0, %s554
      %s558 = sphi 0, %s557
      %s574 = sphi 0, %s558
      %s580 = sphi 0, %s582
      %s583 = sphi 0, %s580
      %s584 = sphi 0, %s583
      %s600 = sphi 0, %s584
    $region4: #{recorder_forward.1} parent=1 // loop_header_branch
      %38 = sbr.rel (%p36) target = $region8
    $region5: #{recorder_forward.1} parent=1 // loop_body
      %s40 = ssub.s32 %s35, 1
      %s41 = ssub.s32 %s35, 2
      %s42 = sadd.s32 %s35, 1
      %s43 = ssub.s32 %s35, %s42
      %p44 = scmp.eq.s32.totalorder %s43, 0
      %s46 = sadd.s32 %s45, 1
      %s47 = scalar_select %p44, %s45, %s46
      %p50 = pneg %p44
      %p51 = scmp.eq.s32.totalorder %s35, 1
      %p52 = por %p50, %p51
      %p53 = scmp.ne.s32.totalorder %s45, %s48
      %p54 = scmp.eq.s32.totalorder %s35, 0
      %p55 = por %p53, %p54
      %p56 = scmp.ne.s32.totalorder %s45, %s48
      %p57 = scmp.eq.s32.totalorder %s40, 1
      %p58 = por %p56, %p57
      %p59 = scmp.ne.s32.totalorder %s48, %s49
      %p60 = scmp.eq.s32.totalorder %s40, 0
      %p61 = por %p59, %p60
      %p62 = scmp.ne.s32.totalorder %s48, %s49
      %p63 = scmp.eq.s32.totalorder %s41, 1
      %p64 = por %p62, %p63
      %p66 = scmp.ne.s32.totalorder %s49, %s65
      %p67 = scmp.eq.s32.totalorder %s41, 0
      %p68 = por %p66, %p67
      %s70 = sadd.s32 %s69, 1
      %p73 = scmp.eq.s32.totalorder %s35, 1
      %p74 = scmp.ne.s32.totalorder %s69, %s71
      %p75 = scmp.eq.s32.totalorder %s35, 0
      %p76 = por %p74, %p75
      %p77 = scmp.ne.s32.totalorder %s69, %s71
      %p78 = scmp.eq.s32.totalorder %s40, 1
      %p79 = por %p77, %p78
      %p80 = scmp.ne.s32.totalorder %s71, %s72
      %p81 = scmp.eq.s32.totalorder %s40, 0
      %p82 = por %p80, %p81
      %p83 = scmp.ne.s32.totalorder %s71, %s72
      %p84 = scmp.eq.s32.totalorder %s41, 1
      %p85 = por %p83, %p84
      %p87 = scmp.ne.s32.totalorder %s72, %s86
      %p88 = scmp.eq.s32.totalorder %s41, 0
      %p89 = por %p87, %p88
      %s91 = sadd.s32 %s90, 1
      %p94 = scmp.eq.s32.totalorder %s35, 1
      %p95 = scmp.ne.s32.totalorder %s90, %s92
      %p96 = scmp.eq.s32.totalorder %s35, 0
      %p97 = por %p95, %p96
      %p98 = scmp.ne.s32.totalorder %s90, %s92
      %p99 = scmp.eq.s32.totalorder %s40, 1
      %p100 = por %p98, %p99
      %p101 = scmp.ne.s32.totalorder %s92, %s93
      %p102 = scmp.eq.s32.totalorder %s40, 0
      %p103 = por %p101, %p102
      %p104 = scmp.ne.s32.totalorder %s92, %s93
      %p105 = scmp.eq.s32.totalorder %s41, 1
      %p106 = por %p104, %p105
      %p108 = scmp.ne.s32.totalorder %s93, %s107
      %p109 = scmp.eq.s32.totalorder %s41, 0
      %p110 = por %p108, %p109
      %s112 = sadd.s32 %s111, 1
      %p115 = scmp.eq.s32.totalorder %s35, 1
      %p116 = scmp.ne.s32.totalorder %s111, %s113
      %p117 = scmp.eq.s32.totalorder %s35, 0
      %p118 = por %p116, %p117
      %p119 = scmp.ne.s32.totalorder %s111, %s113
      %p120 = scmp.eq.s32.totalorder %s40, 1
      %p121 = por %p119, %p120
      %p122 = scmp.ne.s32.totalorder %s113, %s114
      %p123 = scmp.eq.s32.totalorder %s40, 0
      %p124 = por %p122, %p123
      %p125 = scmp.ne.s32.totalorder %s113, %s114
      %p126 = scmp.eq.s32.totalorder %s41, 1
      %p127 = por %p125, %p126
      %p129 = scmp.ne.s32.totalorder %s114, %s128
      %p130 = scmp.eq.s32.totalorder %s41, 0
      %p131 = por %p129, %p130
      %s133 = sadd.s32 %s132, 1
      %p136 = scmp.eq.s32.totalorder %s35, 1
      %p137 = scmp.ne.s32.totalorder %s132, %s134
      %p138 = scmp.eq.s32.totalorder %s35, 0
      %p139 = por %p137, %p138
      %p140 = scmp.ne.s32.totalorder %s132, %s134
      %p141 = scmp.eq.s32.totalorder %s40, 1
      %p142 = por %p140, %p141
      %p143 = scmp.ne.s32.totalorder %s134, %s135
      %p144 = scmp.eq.s32.totalorder %s40, 0
      %p145 = por %p143, %p144
      %p146 = scmp.ne.s32.totalorder %s134, %s135
      %p147 = scmp.eq.s32.totalorder %s41, 1
      %p148 = por %p146, %p147
      %p150 = scmp.ne.s32.totalorder %s135, %s149
      %p151 = scmp.eq.s32.totalorder %s41, 0
      %p152 = por %p150, %p151
      %s154 = sadd.s32 %s153, 1
      %p157 = scmp.eq.s32.totalorder %s35, 1
      %p158 = scmp.ne.s32.totalorder %s153, %s155
      %p159 = scmp.eq.s32.totalorder %s35, 0
      %p160 = por %p158, %p159
      %p161 = scmp.ne.s32.totalorder %s153, %s155
      %p162 = scmp.eq.s32.totalorder %s40, 1
      %p163 = por %p161, %p162
      %p164 = scmp.ne.s32.totalorder %s155, %s156
      %p165 = scmp.eq.s32.totalorder %s40, 0
      %p166 = por %p164, %p165
      %p167 = scmp.ne.s32.totalorder %s155, %s156
      %p168 = scmp.eq.s32.totalorder %s41, 1
      %p169 = por %p167, %p168
      %p171 = scmp.ne.s32.totalorder %s156, %s170
      %p172 = scmp.eq.s32.totalorder %s41, 0
      %p173 = por %p171, %p172
      %s175 = sadd.s32 %s174, 1
      %p178 = scmp.eq.s32.totalorder %s35, 1
      %p179 = scmp.ne.s32.totalorder %s174, %s176
      %p180 = scmp.eq.s32.totalorder %s35, 0
      %p181 = por %p179, %p180
      %p182 = scmp.ne.s32.totalorder %s174, %s176
      %p183 = scmp.eq.s32.totalorder %s40, 1
      %p184 = por %p182, %p183
      %p185 = scmp.ne.s32.totalorder %s176, %s177
      %p186 = scmp.eq.s32.totalorder %s40, 0
      %p187 = por %p185, %p186
      %p188 = scmp.ne.s32.totalorder %s176, %s177
      %p189 = scmp.eq.s32.totalorder %s41, 1
      %p190 = por %p188, %p189
      %p192 = scmp.ne.s32.totalorder %s177, %s191
      %p193 = scmp.eq.s32.totalorder %s41, 0
      %p194 = por %p192, %p193
      %s196 = sadd.s32 %s195, 1
      %p199 = scmp.eq.s32.totalorder %s35, 1
      %p200 = scmp.ne.s32.totalorder %s195, %s197
      %p201 = scmp.eq.s32.totalorder %s35, 0
      %p202 = por %p200, %p201
      %p203 = scmp.ne.s32.totalorder %s195, %s197
      %p204 = scmp.eq.s32.totalorder %s40, 1
      %p205 = por %p203, %p204
      %p206 = scmp.ne.s32.totalorder %s197, %s198
      %p207 = scmp.eq.s32.totalorder %s40, 0
      %p208 = por %p206, %p207
      %p209 = scmp.ne.s32.totalorder %s197, %s198
      %p210 = scmp.eq.s32.totalorder %s41, 1
      %p211 = por %p209, %p210
      %p213 = scmp.ne.s32.totalorder %s198, %s212
      %p214 = scmp.eq.s32.totalorder %s41, 0
      %p215 = por %p213, %p214
      %s217 = sadd.s32 %s216, 1
      %p220 = scmp.eq.s32.totalorder %s35, 1
      %p221 = scmp.ne.s32.totalorder %s216, %s218
      %p222 = scmp.eq.s32.totalorder %s35, 0
      %p223 = por %p221, %p222
      %p224 = scmp.ne.s32.totalorder %s216, %s218
      %p225 = scmp.eq.s32.totalorder %s40, 1
      %p226 = por %p224, %p225
      %p227 = scmp.ne.s32.totalorder %s218, %s219
      %p228 = scmp.eq.s32.totalorder %s40, 0
      %p229 = por %p227, %p228
      %p230 = scmp.ne.s32.totalorder %s218, %s219
      %p231 = scmp.eq.s32.totalorder %s41, 1
      %p232 = por %p230, %p231
      %p234 = scmp.ne.s32.totalorder %s219, %s233
      %p235 = scmp.eq.s32.totalorder %s41, 0
      %p236 = por %p234, %p235
      %s238 = sadd.s32 %s237, 1
      %p241 = scmp.eq.s32.totalorder %s35, 1
      %p242 = scmp.ne.s32.totalorder %s237, %s239
      %p243 = scmp.eq.s32.totalorder %s35, 0
      %p244 = por %p242, %p243
      %p245 = scmp.ne.s32.totalorder %s237, %s239
      %p246 = scmp.eq.s32.totalorder %s40, 1
      %p247 = por %p245, %p246
      %p248 = scmp.ne.s32.totalorder %s239, %s240
      %p249 = scmp.eq.s32.totalorder %s40, 0
      %p250 = por %p248, %p249
      %p251 = scmp.ne.s32.totalorder %s239, %s240
      %p252 = scmp.eq.s32.totalorder %s41, 1
      %p253 = por %p251, %p252
      %p255 = scmp.ne.s32.totalorder %s240, %s254
      %p256 = scmp.eq.s32.totalorder %s41, 0
      %p257 = por %p255, %p256
      %s259 = sadd.s32 %s258, 1
      %p262 = scmp.eq.s32.totalorder %s35, 1
      %p263 = scmp.ne.s32.totalorder %s258, %s260
      %p264 = scmp.eq.s32.totalorder %s35, 0
      %p265 = por %p263, %p264
      %p266 = scmp.ne.s32.totalorder %s258, %s260
      %p267 = scmp.eq.s32.totalorder %s40, 1
      %p268 = por %p266, %p267
      %p269 = scmp.ne.s32.totalorder %s260, %s261
      %p270 = scmp.eq.s32.totalorder %s40, 0
      %p271 = por %p269, %p270
      %p272 = scmp.ne.s32.totalorder %s260, %s261
      %p273 = scmp.eq.s32.totalorder %s41, 1
      %p274 = por %p272, %p273
      %p276 = scmp.ne.s32.totalorder %s261, %s275
      %p277 = scmp.eq.s32.totalorder %s41, 0
      %p278 = por %p276, %p277
      %s280 = sadd.s32 %s279, 1
      %p283 = scmp.eq.s32.totalorder %s35, 1
      %p284 = scmp.ne.s32.totalorder %s279, %s281
      %p285 = scmp.eq.s32.totalorder %s35, 0
      %p286 = por %p284, %p285
      %p287 = scmp.ne.s32.totalorder %s279, %s281
      %p288 = scmp.eq.s32.totalorder %s40, 1
      %p289 = por %p287, %p288
      %p290 = scmp.ne.s32.totalorder %s281, %s282
      %p291 = scmp.eq.s32.totalorder %s40, 0
      %p292 = por %p290, %p291
      %p293 = scmp.ne.s32.totalorder %s281, %s282
      %p294 = scmp.eq.s32.totalorder %s41, 1
      %p295 = por %p293, %p294
      %p297 = scmp.ne.s32.totalorder %s282, %s296
      %p298 = scmp.eq.s32.totalorder %s41, 0
      %p299 = por %p297, %p298
      %s301 = sadd.s32 %s300, 1
      %p304 = scmp.eq.s32.totalorder %s35, 1
      %p305 = scmp.ne.s32.totalorder %s300, %s302
      %p306 = scmp.eq.s32.totalorder %s35, 0
      %p307 = por %p305, %p306
      %p308 = scmp.ne.s32.totalorder %s300, %s302
      %p309 = scmp.eq.s32.totalorder %s40, 1
      %p310 = por %p308, %p309
      %p311 = scmp.ne.s32.totalorder %s302, %s303
      %p312 = scmp.eq.s32.totalorder %s40, 0
      %p313 = por %p311, %p312
      %p314 = scmp.ne.s32.totalorder %s302, %s303
      %p315 = scmp.eq.s32.totalorder %s41, 1
      %p316 = por %p314, %p315
      %p318 = scmp.ne.s32.totalorder %s303, %s317
      %p319 = scmp.eq.s32.totalorder %s41, 0
      %p320 = por %p318, %p319
      %s322 = sadd.s32 %s321, 1
      %p325 = scmp.eq.s32.totalorder %s35, 1
      %p326 = scmp.ne.s32.totalorder %s321, %s323
      %p327 = scmp.eq.s32.totalorder %s35, 0
      %p328 = por %p326, %p327
      %p329 = scmp.ne.s32.totalorder %s321, %s323
      %p330 = scmp.eq.s32.totalorder %s40, 1
      %p331 = por %p329, %p330
      %p332 = scmp.ne.s32.totalorder %s323, %s324
      %p333 = scmp.eq.s32.totalorder %s40, 0
      %p334 = por %p332, %p333
      %p335 = scmp.ne.s32.totalorder %s323, %s324
      %p336 = scmp.eq.s32.totalorder %s41, 1
      %p337 = por %p335, %p336
      %p339 = scmp.ne.s32.totalorder %s324, %s338
      %p340 = scmp.eq.s32.totalorder %s41, 0
      %p341 = por %p339, %p340
      %s343 = sadd.s32 %s342, 1
      %p346 = scmp.eq.s32.totalorder %s35, 1
      %p347 = scmp.ne.s32.totalorder %s342, %s344
      %p348 = scmp.eq.s32.totalorder %s35, 0
      %p349 = por %p347, %p348
      %p350 = scmp.ne.s32.totalorder %s342, %s344
      %p351 = scmp.eq.s32.totalorder %s40, 1
      %p352 = por %p350, %p351
      %p353 = scmp.ne.s32.totalorder %s344, %s345
      %p354 = scmp.eq.s32.totalorder %s40, 0
      %p355 = por %p353, %p354
      %p356 = scmp.ne.s32.totalorder %s344, %s345
      %p357 = scmp.eq.s32.totalorder %s41, 1
      %p358 = por %p356, %p357
      %p360 = scmp.ne.s32.totalorder %s345, %s359
      %p361 = scmp.eq.s32.totalorder %s41, 0
      %p362 = por %p360, %p361
      %s364 = sadd.s32 %s363, 1
      %p367 = scmp.eq.s32.totalorder %s35, 1
      %p368 = scmp.ne.s32.totalorder %s363, %s365
      %p369 = scmp.eq.s32.totalorder %s35, 0
      %p370 = por %p368, %p369
      %p371 = scmp.ne.s32.totalorder %s363, %s365
      %p372 = scmp.eq.s32.totalorder %s40, 1
      %p373 = por %p371, %p372
      %p374 = scmp.ne.s32.totalorder %s365, %s366
      %p375 = scmp.eq.s32.totalorder %s40, 0
      %p376 = por %p374, %p375
      %p377 = scmp.ne.s32.totalorder %s365, %s366
      %p378 = scmp.eq.s32.totalorder %s41, 1
      %p379 = por %p377, %p378
      %p381 = scmp.ne.s32.totalorder %s366, %s380
      %p382 = scmp.eq.s32.totalorder %s41, 0
      %p383 = por %p381, %p382
      %s385 = sadd.s32 %s384, 1
      %p388 = scmp.eq.s32.totalorder %s35, 1
      %p389 = scmp.ne.s32.totalorder %s384, %s386
      %p390 = scmp.eq.s32.totalorder %s35, 0
      %p391 = por %p389, %p390
      %p392 = scmp.ne.s32.totalorder %s384, %s386
      %p393 = scmp.eq.s32.totalorder %s40, 1
      %p394 = por %p392, %p393
      %p395 = scmp.ne.s32.totalorder %s386, %s387
      %p396 = scmp.eq.s32.totalorder %s40, 0
      %p397 = por %p395, %p396
      %p398 = scmp.ne.s32.totalorder %s386, %s387
      %p399 = scmp.eq.s32.totalorder %s41, 1
      %p400 = por %p398, %p399
      %p402 = scmp.ne.s32.totalorder %s387, %s401
      %p403 = scmp.eq.s32.totalorder %s41, 0
      %p404 = por %p402, %p403
      %s406 = sadd.s32 %s405, 1
      %p409 = scmp.eq.s32.totalorder %s35, 1
      %p410 = scmp.ne.s32.totalorder %s405, %s407
      %p411 = scmp.eq.s32.totalorder %s35, 0
      %p412 = por %p410, %p411
      %p413 = scmp.ne.s32.totalorder %s405, %s407
      %p414 = scmp.eq.s32.totalorder %s40, 1
      %p415 = por %p413, %p414
      %p416 = scmp.ne.s32.totalorder %s407, %s408
      %p417 = scmp.eq.s32.totalorder %s40, 0
      %p418 = por %p416, %p417
      %p419 = scmp.ne.s32.totalorder %s407, %s408
      %p420 = scmp.eq.s32.totalorder %s41, 1
      %p421 = por %p419, %p420
      %p423 = scmp.ne.s32.totalorder %s408, %s422
      %p424 = scmp.eq.s32.totalorder %s41, 0
      %p425 = por %p423, %p424
      %s427 = sadd.s32 %s426, 1
      %p430 = scmp.eq.s32.totalorder %s35, 1
      %p431 = scmp.ne.s32.totalorder %s426, %s428
      %p432 = scmp.eq.s32.totalorder %s35, 0
      %p433 = por %p431, %p432
      %p434 = scmp.ne.s32.totalorder %s426, %s428
      %p435 = scmp.eq.s32.totalorder %s40, 1
      %p436 = por %p434, %p435
      %p437 = scmp.ne.s32.totalorder %s428, %s429
      %p438 = scmp.eq.s32.totalorder %s40, 0
      %p439 = por %p437, %p438
      %p440 = scmp.ne.s32.totalorder %s428, %s429
      %p441 = scmp.eq.s32.totalorder %s41, 1
      %p442 = por %p440, %p441
      %p444 = scmp.ne.s32.totalorder %s429, %s443
      %p445 = scmp.eq.s32.totalorder %s41, 0
      %p446 = por %p444, %p445
      %s448 = sadd.s32 %s447, 1
      %p451 = scmp.eq.s32.totalorder %s35, 1
      %p452 = scmp.ne.s32.totalorder %s447, %s449
      %p453 = scmp.eq.s32.totalorder %s35, 0
      %p454 = por %p452, %p453
      %p455 = scmp.ne.s32.totalorder %s447, %s449
      %p456 = scmp.eq.s32.totalorder %s40, 1
      %p457 = por %p455, %p456
      %p458 = scmp.ne.s32.totalorder %s449, %s450
      %p459 = scmp.eq.s32.totalorder %s40, 0
      %p460 = por %p458, %p459
      %p461 = scmp.ne.s32.totalorder %s449, %s450
      %p462 = scmp.eq.s32.totalorder %s41, 1
      %p463 = por %p461, %p462
      %p465 = scmp.ne.s32.totalorder %s450, %s464
      %p466 = scmp.eq.s32.totalorder %s41, 0
      %p467 = por %p465, %p466
      %s469 = sadd.s32 %s468, 1
      %p472 = scmp.eq.s32.totalorder %s35, 1
      %p473 = scmp.ne.s32.totalorder %s468, %s470
      %p474 = scmp.eq.s32.totalorder %s35, 0
      %p475 = por %p473, %p474
      %p476 = scmp.ne.s32.totalorder %s468, %s470
      %p477 = scmp.eq.s32.totalorder %s40, 1
      %p478 = por %p476, %p477
      %p479 = scmp.ne.s32.totalorder %s470, %s471
      %p480 = scmp.eq.s32.totalorder %s40, 0
      %p481 = por %p479, %p480
      %p482 = scmp.ne.s32.totalorder %s470, %s471
      %p483 = scmp.eq.s32.totalorder %s41, 1
      %p484 = por %p482, %p483
      %p486 = scmp.ne.s32.totalorder %s471, %s485
      %p487 = scmp.eq.s32.totalorder %s41, 0
      %p488 = por %p486, %p487
      %s490 = sadd.s32 %s489, 1
      %p493 = scmp.eq.s32.totalorder %s35, 1
      %p494 = scmp.ne.s32.totalorder %s489, %s491
      %p495 = scmp.eq.s32.totalorder %s35, 0
      %p496 = por %p494, %p495
      %p497 = scmp.ne.s32.totalorder %s489, %s491
      %p498 = scmp.eq.s32.totalorder %s40, 1
      %p499 = por %p497, %p498
      %p500 = scmp.ne.s32.totalorder %s491, %s492
      %p501 = scmp.eq.s32.totalorder %s40, 0
      %p502 = por %p500, %p501
      %p503 = scmp.ne.s32.totalorder %s491, %s492
      %p504 = scmp.eq.s32.totalorder %s41, 1
      %p505 = por %p503, %p504
      %p507 = scmp.ne.s32.totalorder %s492, %s506
      %p508 = scmp.eq.s32.totalorder %s41, 0
      %p509 = por %p507, %p508
      %s511 = sadd.s32 %s510, 1
      %p514 = scmp.eq.s32.totalorder %s35, 1
      %p515 = scmp.ne.s32.totalorder %s510, %s512
      %p516 = scmp.eq.s32.totalorder %s35, 0
      %p517 = por %p515, %p516
      %p518 = scmp.ne.s32.totalorder %s510, %s512
      %p519 = scmp.eq.s32.totalorder %s40, 1
      %p520 = por %p518, %p519
      %p521 = scmp.ne.s32.totalorder %s512, %s513
      %p522 = scmp.eq.s32.totalorder %s40, 0
      %p523 = por %p521, %p522
      %p524 = scmp.ne.s32.totalorder %s512, %s513
      %p525 = scmp.eq.s32.totalorder %s41, 1
      %p526 = por %p524, %p525
      %p528 = scmp.ne.s32.totalorder %s513, %s527
      %p529 = scmp.eq.s32.totalorder %s41, 0
      %p530 = por %p528, %p529
      %s532 = sadd.s32 %s531, 1
      %p535 = scmp.eq.s32.totalorder %s35, 1
      %p536 = scmp.ne.s32.totalorder %s531, %s533
      %p537 = scmp.eq.s32.totalorder %s35, 0
      %p538 = por %p536, %p537
      %p539 = scmp.ne.s32.totalorder %s531, %s533
      %p540 = scmp.eq.s32.totalorder %s40, 1
      %p541 = por %p539, %p540
      %p542 = scmp.ne.s32.totalorder %s533, %s534
      %p543 = scmp.eq.s32.totalorder %s40, 0
      %p544 = por %p542, %p543
      %p545 = scmp.ne.s32.totalorder %s533, %s534
      %p546 = scmp.eq.s32.totalorder %s41, 1
      %p547 = por %p545, %p546
      %p549 = scmp.ne.s32.totalorder %s534, %s548
      %p550 = scmp.eq.s32.totalorder %s41, 0
      %p551 = por %p549, %p550
      %s552 = ssub.s32 %s35, %s42
      %p553 = scmp.eq.s32.totalorder %s552, 0
      %s555 = sadd.s32 %s554, 1
      %s556 = scalar_select %p553, %s554, %s555
      %p559 = pneg %p553
      %p560 = scmp.eq.s32.totalorder %s35, 1
      %p561 = por %p559, %p560
      %p562 = scmp.ne.s32.totalorder %s554, %s557
      %p563 = scmp.eq.s32.totalorder %s35, 0
      %p564 = por %p562, %p563
      %p565 = scmp.ne.s32.totalorder %s554, %s557
      %p566 = scmp.eq.s32.totalorder %s40, 1
      %p567 = por %p565, %p566
      %p568 = scmp.ne.s32.totalorder %s557, %s558
      %p569 = scmp.eq.s32.totalorder %s40, 0
      %p570 = por %p568, %p569
      %p571 = scmp.ne.s32.totalorder %s557, %s558
      %p572 = scmp.eq.s32.totalorder %s41, 1
      %p573 = por %p571, %p572
      %p575 = scmp.ne.s32.totalorder %s558, %s574
      %p576 = scmp.eq.s32.totalorder %s41, 0
      %p577 = por %p575, %p576
      %s578 = ssub.s32 %s35, %s42
      %p579 = scmp.eq.s32.totalorder %s578, 0
      %s581 = sadd.s32 %s580, 1
      %s582 = scalar_select %p579, %s580, %s581
      %p585 = pneg %p579
      %p586 = scmp.eq.s32.totalorder %s35, 1
      %p587 = por %p585, %p586
      %p588 = scmp.ne.s32.totalorder %s580, %s583
      %p589 = scmp.eq.s32.totalorder %s35, 0
      %p590 = por %p588, %p589
      %p591 = scmp.ne.s32.totalorder %s580, %s583
      %p592 = scmp.eq.s32.totalorder %s40, 1
      %p593 = por %p591, %p592
      %p594 = scmp.ne.s32.totalorder %s583, %s584
      %p595 = scmp.eq.s32.totalorder %s40, 0
      %p596 = por %p594, %p595
      %p597 = scmp.ne.s32.totalorder %s583, %s584
      %p598 = scmp.eq.s32.totalorder %s41, 1
      %p599 = por %p597, %p598
      %p601 = scmp.ne.s32.totalorder %s584, %s600
      %p602 = scmp.eq.s32.totalorder %s41, 0
      %p603 = por %p601, %p602
      %p604 = scmp.le.s32.totalorder 1, %s35
      %p605 = scmp.lt.s32.totalorder %s35, 3
      %p606 = pnand %p604, %p605
      %p607 = pneg %p606
      // Predicated region
      $region9: #{recorder_forward.1} parent=5 // pred_check
        _
      $region10: #{recorder_forward.1} parent=5 // pred_check_branch
        %609 = sbr.rel (%p606) target = $region12
      $region11: #{recorder_forward.1} parent=5 // pred_region
        %s610 = ssub.s32 %s35, 1
        // Predicated region
        $region13: #{recorder_forward.1} parent=11 // pred_check
          %p611 = pneg %p82
        $region14: #{recorder_forward.1} parent=11 // pred_check_branch
          %613 = sbr.rel (%p611) target = $region16
        $region15: #{recorder_forward.1} parent=11 // pred_region
          _
        $region16: #{recorder_forward.1} parent=11 // pred_fallthru
          _
        // Predicated region
        $region17: #{recorder_forward.1} parent=11 // pred_check
          %p614 = pneg %p103
        $region18: #{recorder_forward.1} parent=11 // pred_check_branch
          %616 = sbr.rel (%p614) target = $region20
        $region19: #{recorder_forward.1} parent=11 // pred_region
          _
        $region20: #{recorder_forward.1} parent=11 // pred_fallthru
          _
        // Predicated region
        $region21: #{recorder_forward.1} parent=11 // pred_check
          %p617 = pneg %p124
        $region22: #{recorder_forward.1} parent=11 // pred_check_branch
          %619 = sbr.rel (%p617) target = $region24
        $region23: #{recorder_forward.1} parent=11 // pred_region
          _
        $region24: #{recorder_forward.1} parent=11 // pred_fallthru
          _
        // Predicated region
        $region25: #{recorder_forward.1} parent=11 // pred_check
          %p620 = pneg %p145
        $region26: #{recorder_forward.1} parent=11 // pred_check_branch
          %622 = sbr.rel (%p620) target = $region28
        $region27: #{recorder_forward.1} parent=11 // pred_region
          _
        $region28: #{recorder_forward.1} parent=11 // pred_fallthru
          _
        // Predicated region
        $region29: #{recorder_forward.1} parent=11 // pred_check
          %p623 = pneg %p166
        $region30: #{recorder_forward.1} parent=11 // pred_check_branch
          %625 = sbr.rel (%p623) target = $region32
        $region31: #{recorder_forward.1} parent=11 // pred_region
          _
        $region32: #{recorder_forward.1} parent=11 // pred_fallthru
          _
        // Predicated region
        $region33: #{recorder_forward.1} parent=11 // pred_check
          %p626 = pneg %p187
        $region34: #{recorder_forward.1} parent=11 // pred_check_branch
          %628 = sbr.rel (%p626) target = $region36
        $region35: #{recorder_forward.1} parent=11 // pred_region
          _
        $region36: #{recorder_forward.1} parent=11 // pred_fallthru
          _
        // Predicated region
        $region37: #{recorder_forward.1} parent=11 // pred_check
          %p629 = pneg %p208
        $region38: #{recorder_forward.1} parent=11 // pred_check_branch
          %631 = sbr.rel (%p629) target = $region40
        $region39: #{recorder_forward.1} parent=11 // pred_region
          _
        $region40: #{recorder_forward.1} parent=11 // pred_fallthru
          _
        // Predicated region
        $region41: #{recorder_forward.1} parent=11 // pred_check
          %p632 = pneg %p229
        $region42: #{recorder_forward.1} parent=11 // pred_check_branch
          %634 = sbr.rel (%p632) target = $region44
        $region43: #{recorder_forward.1} parent=11 // pred_region
          _
        $region44: #{recorder_forward.1} parent=11 // pred_fallthru
          _
        // Predicated region
        $region45: #{recorder_forward.1} parent=11 // pred_check
          %p635 = pneg %p250
        $region46: #{recorder_forward.1} parent=11 // pred_check_branch
          %637 = sbr.rel (%p635) target = $region48
        $region47: #{recorder_forward.1} parent=11 // pred_region
          _
        $region48: #{recorder_forward.1} parent=11 // pred_fallthru
          _
        // Predicated region
        $region49: #{recorder_forward.1} parent=11 // pred_check
          %p638 = pneg %p271
        $region50: #{recorder_forward.1} parent=11 // pred_check_branch
          %640 = sbr.rel (%p638) target = $region52
        $region51: #{recorder_forward.1} parent=11 // pred_region
          _
        $region52: #{recorder_forward.1} parent=11 // pred_fallthru
          _
        // Predicated region
        $region53: #{recorder_forward.1} parent=11 // pred_check
          %p641 = pneg %p292
        $region54: #{recorder_forward.1} parent=11 // pred_check_branch
          %643 = sbr.rel (%p641) target = $region56
        $region55: #{recorder_forward.1} parent=11 // pred_region
          _
        $region56: #{recorder_forward.1} parent=11 // pred_fallthru
          _
        // Predicated region
        $region57: #{recorder_forward.1} parent=11 // pred_check
          %p644 = pneg %p313
        $region58: #{recorder_forward.1} parent=11 // pred_check_branch
          %646 = sbr.rel (%p644) target = $region60
        $region59: #{recorder_forward.1} parent=11 // pred_region
          _
        $region60: #{recorder_forward.1} parent=11 // pred_fallthru
          _
        // Predicated region
        $region61: #{recorder_forward.1} parent=11 // pred_check
          %p647 = pneg %p334
        $region62: #{recorder_forward.1} parent=11 // pred_check_branch
          %649 = sbr.rel (%p647) target = $region64
        $region63: #{recorder_forward.1} parent=11 // pred_region
          _
        $region64: #{recorder_forward.1} parent=11 // pred_fallthru
          _
        // Predicated region
        $region65: #{recorder_forward.1} parent=11 // pred_check
          %p650 = pneg %p355
        $region66: #{recorder_forward.1} parent=11 // pred_check_branch
          %652 = sbr.rel (%p650) target = $region68
        $region67: #{recorder_forward.1} parent=11 // pred_region
          _
        $region68: #{recorder_forward.1} parent=11 // pred_fallthru
          _
        // Predicated region
        $region69: #{recorder_forward.1} parent=11 // pred_check
          %p653 = pneg %p376
        $region70: #{recorder_forward.1} parent=11 // pred_check_branch
          %655 = sbr.rel (%p653) target = $region72
        $region71: #{recorder_forward.1} parent=11 // pred_region
          _
        $region72: #{recorder_forward.1} parent=11 // pred_fallthru
          _
        // Predicated region
        $region73: #{recorder_forward.1} parent=11 // pred_check
          %p656 = pneg %p397
        $region74: #{recorder_forward.1} parent=11 // pred_check_branch
          %658 = sbr.rel (%p656) target = $region76
        $region75: #{recorder_forward.1} parent=11 // pred_region
          _
        $region76: #{recorder_forward.1} parent=11 // pred_fallthru
          _
        // Predicated region
        $region77: #{recorder_forward.1} parent=11 // pred_check
          %p659 = pneg %p418
        $region78: #{recorder_forward.1} parent=11 // pred_check_branch
          %661 = sbr.rel (%p659) target = $region80
        $region79: #{recorder_forward.1} parent=11 // pred_region
          _
        $region80: #{recorder_forward.1} parent=11 // pred_fallthru
          _
        // Predicated region
        $region81: #{recorder_forward.1} parent=11 // pred_check
          %p662 = pneg %p439
        $region82: #{recorder_forward.1} parent=11 // pred_check_branch
          %664 = sbr.rel (%p662) target = $region84
        $region83: #{recorder_forward.1} parent=11 // pred_region
          _
        $region84: #{recorder_forward.1} parent=11 // pred_fallthru
          _
        // Predicated region
        $region85: #{recorder_forward.1} parent=11 // pred_check
          %p665 = pneg %p460
        $region86: #{recorder_forward.1} parent=11 // pred_check_branch
          %667 = sbr.rel (%p665) target = $region88
        $region87: #{recorder_forward.1} parent=11 // pred_region
          _
        $region88: #{recorder_forward.1} parent=11 // pred_fallthru
          _
        // Predicated region
        $region89: #{recorder_forward.1} parent=11 // pred_check
          %p668 = pneg %p481
        $region90: #{recorder_forward.1} parent=11 // pred_check_branch
          %670 = sbr.rel (%p668) target = $region92
        $region91: #{recorder_forward.1} parent=11 // pred_region
          _
        $region92: #{recorder_forward.1} parent=11 // pred_fallthru
          _
        // Predicated region
        $region93: #{recorder_forward.1} parent=11 // pred_check
          %p671 = pneg %p502
        $region94: #{recorder_forward.1} parent=11 // pred_check_branch
          %673 = sbr.rel (%p671) target = $region96
        $region95: #{recorder_forward.1} parent=11 // pred_region
          _
        $region96: #{recorder_forward.1} parent=11 // pred_fallthru
          _
        // Predicated region
        $region97: #{recorder_forward.1} parent=11 // pred_check
          %p674 = pneg %p523
        $region98: #{recorder_forward.1} parent=11 // pred_check_branch
          %676 = sbr.rel (%p674) target = $region100
        $region99: #{recorder_forward.1} parent=11 // pred_region
          _
        $region100: #{recorder_forward.1} parent=11 // pred_fallthru
          _
        // Predicated region
        $region101: #{recorder_forward.1} parent=11 // pred_check
          %p677 = pneg %p544
        $region102: #{recorder_forward.1} parent=11 // pred_check_branch
          %679 = sbr.rel (%p677) target = $region104
        $region103: #{recorder_forward.1} parent=11 // pred_region
          _
        $region104: #{recorder_forward.1} parent=11 // pred_fallthru
          _
      $region12: #{recorder_forward.1} parent=5 // pred_fallthru
        _
      %p680 = scmp.lt.s32.totalorder %s35, 2
      // Predicated region
      $region105: #{recorder_forward.1} parent=5 // pred_check
        %p681 = pneg %p680
      $region106: #{recorder_forward.1} parent=5 // pred_check_branch
        %683 = sbr.rel (%p681) target = $region108
      $region107: #{recorder_forward.1} parent=5 // pred_region
        // Predicated region
        $region109: #{recorder_forward.1} parent=107 // pred_check
          %p684 = pneg %p55
        $region110: #{recorder_forward.1} parent=107 // pred_check_branch
          %686 = sbr.rel (%p684) target = $region112
        $region111: #{recorder_forward.1} parent=107 // pred_region
          %p687 = scmp.lt.s32.totalorder %s35, 1
          %s688 = scalar_select %p687, %s35, 1
          %s689 = smul.addr %s688, 2
          %s690 = smul.addr %s689, 8
          %s691 = scalar_lea.vmem %s0, %s690
        $region112: #{recorder_forward.1} parent=107 // pred_fallthru
          _
      $region108: #{recorder_forward.1} parent=5 // pred_fallthru
        _
      %p692 = scmp.le.s32.totalorder 1, %s35
      %p693 = scmp.lt.s32.totalorder %s35, 3
      %p694 = pnand %p692, %p693
      %p695 = pneg %p694
      // Predicated region
      $region113: #{recorder_forward.1} parent=5 // pred_check
        _
      $region114: #{recorder_forward.1} parent=5 // pred_check_branch
        %697 = sbr.rel (%p694) target = $region116
      $region115: #{recorder_forward.1} parent=5 // pred_region
        %s698 = ssub.s32 %s35, 1
        %p699 = scmp.lt.s32.totalorder %s40, 1
        %s700 = scalar_select %p699, %s40, 1
        %s701 = smul.addr %s700, 2
        %s702 = smul.addr %s701, 8
        %s703 = scalar_lea.vmem %s0, %s702
        %p704 = pneg %p61
        %p705 = pneg %p58
        %p706 = pneg %p82
        %p707 = pneg %p79
        %p708 = pneg %p103
        %p709 = pneg %p100
        %p710 = pneg %p124
        %p711 = pneg %p121
        %p712 = pneg %p145
        %p713 = pneg %p142
        %p714 = pneg %p166
        %p715 = pneg %p163
        %p716 = pneg %p187
        %p717 = pneg %p184
        %p718 = pneg %p208
        %p719 = pneg %p205
        %p720 = pneg %p229
        %p721 = pneg %p226
        %p722 = pneg %p250
        %p723 = pneg %p247
        %p724 = pneg %p271
        %p725 = pneg %p268
        %p726 = pneg %p292
        %p727 = pneg %p289
        %p728 = pneg %p313
        %p729 = pneg %p310
        %p730 = pneg %p334
        %p731 = pneg %p331
        %p732 = pneg %p355
        %p733 = pneg %p352
        %p734 = pneg %p376
        %p735 = pneg %p373
        %p736 = pneg %p397
        %p737 = pneg %p394
        %p738 = pneg %p418
        %p739 = pneg %p415
        %p740 = pneg %p439
        %p741 = pneg %p436
        %p742 = pneg %p460
        %p743 = pneg %p457
        %p744 = pneg %p481
        %p745 = pneg %p478
        %p746 = pneg %p502
        %p747 = pneg %p499
        %p748 = pneg %p523
        %p749 = pneg %p520
        %p750 = pneg %p544
        %p751 = pneg %p541
        %p752 = pneg %p570
        %p753 = pneg %p567
        %s754 = sand.u32 %s557, 1
        %s755 = scalar_lea.sflag [#allocation3], %s754
        %s756 = sand.u32 %s557, 1
        %s757 = scalar_lea.vmem [#allocation2], %s756
        %p758 = pneg %p596
        %p759 = pneg %p593
        %p760 = scmp.lt.s32.totalorder %s40, 1
        %s761 = scalar_select %p760, %s40, 1
        %s762 = smul.addr %s761, 3
        %s763 = smul.addr %s762, 8
        %s764 = scalar_lea.vmem %s25, %s763
        %p765 = scmp.lt.s32.totalorder %s40, 1
        %s766 = scalar_select %p765, %s40, 1
        %s767 = smul.addr %s766, 2
        %s768 = smul.addr %s767, 8
        %s769 = scalar_lea.vmem %s0, %s768
        %p770 = scmp.lt.s32.totalorder %s40, 1
        %s771 = scalar_select %p770, %s40, 1
        %s772 = smul.addr %s771, 3
        %s773 = smul.addr %s772, 8
        %s774 = scalar_lea.vmem %s25, %s773
        %v775 = vld [vmem:[%s769] sm:$0x1f]
        %v776 = vld [vmem:[%s769 + $0x8] sm:$0x1f]
        %v777 = vld [vmem:[%s1] sm:$0x3]
        %v778 = vld [vmem:[%s2] sm:$0x3]
        %vm779 = vcmask 1044480
        %v780 = vsel %vm779, %v775, 0.0
        %vm781 = vcmask 520192
        %v782 = vsel %vm781, %v776, 0.0
        %v783 = vadd.f32 %v780, %v782
        %784 = vadd.xlane.f32.xlu0 %v783
        %v785 = vpop.xlane.xlu0 %784
        %v786 = vrcp.pop 192.0
        %v787 = vmul.f32 %v785, %v786
        %v788 = vsub.f32 %v775, %v787
        %v789 = vsub.f32 %v776, %v787
        %v790 = vmul.f32 %v788, %v788
        %v791 = vmul.f32 %v789, %v789
        %v792 = vsel %vm779, %v790, 0.0
        %v793 = vsel %vm781, %v791, 0.0
        %v794 = vadd.f32 %v792, %v793
        %795 = vadd.xlane.f32.xlu0 %v794
        %v796 = vpop.xlane.xlu0 %795
        %v797 = vmul.f32 %v796, %v786
        %v798 = vadd.f32 %v797, 1e-05
        %v799 = vrsqrt.pop %v798
        %v800 = vmul.f32 %v788, %v799
        %v801 = vmul.f32 %v789, %v799
        %v803 = vlaneseq
        %v804 = vshrl.u32 %v803, 7
        %v805 = vsub.s32 0, %v804
        %v806 = vrot.slane %v777, %v805
        %v807 = vlaneseq
        %v808 = vshrl.u32 %v807, 7
        %v809 = vsub.s32 1, %v808
        %v810 = vrot.slane %v777, %v809
        %v813 = vmul.f32 %v800, %v806
        %v814 = vmul.f32 %v801, %v810
        %v816 = vlaneseq
        %v817 = vshrl.u32 %v816, 7
        %v818 = vsub.s32 0, %v817
        %v819 = vrot.slane %v778, %v818
        %v820 = vlaneseq
        %v821 = vshrl.u32 %v820, 7
        %v822 = vsub.s32 1, %v821
        %v823 = vrot.slane %v778, %v822
        %v826 = vadd.f32 %v813, %v819
        %v827 = vadd.f32 %v814, %v823
        %v828 = vld [vmem:[%s3] sm:$0xff]
        %v829 = vld [vmem:[%s3 + $0x8] sm:$0xff]
        %v830 = vld [vmem:[%s3 + $0x10] sm:$0xff]
        %v831 = vld [vmem:[%s3 + $0x18] sm:$0xff]
        %v832 = vld [vmem:[%s3 + $0x20] sm:$0xff]
        %v833 = vld [vmem:[%s3 + $0x28] sm:$0xff]
        %v834 = vld [vmem:[%s3 + $0x30] sm:$0xff]
        %v835 = vld [vmem:[%s3 + $0x38] sm:$0xff]
        %v836 = vld [vmem:[%s3 + $0x40] sm:$0xff]
        %v837 = vld [vmem:[%s3 + $0x48] sm:$0xff]
        %v838 = vld [vmem:[%s3 + $0x50] sm:$0xff]
        %v839 = vld [vmem:[%s3 + $0x58] sm:$0xff]
        %v840 = vld [vmem:[%s3 + $0x60] sm:$0xff]
        %v841 = vld [vmem:[%s3 + $0x68] sm:$0xff]
        %v842 = vld [vmem:[%s3 + $0x70] sm:$0xff]
        %v843 = vld [vmem:[%s3 + $0x78] sm:$0xff]
        %v844 = vld [vmem:[%s3 + $0x80] sm:$0xff]
        %v845 = vld [vmem:[%s3 + $0x88] sm:$0xff]
        %v846 = vld [vmem:[%s3 + $0x90] sm:$0xff]
        %v847 = vld [vmem:[%s3 + $0x98] sm:$0xff]
        %v848 = vld [vmem:[%s3 + $0xa0] sm:$0xff]
        %v849 = vld [vmem:[%s3 + $0xa8] sm:$0xff]
        %v850 = vld [vmem:[%s3 + $0xb0] sm:$0xff]
        %v851 = vld [vmem:[%s3 + $0xb8] sm:$0xff]
        %v852 = vld [vmem:[%s4] sm:$0x1]
        %v854 = vlaneseq
        %v855 = vshrl.u32 %v854, 7
        %v856 = vsub.s32 0, %v855
        %v857 = vrot.slane %v852, %v856
        %vm859 = vcmask 523264
        %v861 = vsel %vm859, %v827, 0
        %863 = vmatprep.subr.mxu0 0.0
        %864 = vmatpush1.msra.mxu0 %v828
        %865 = vmatprep.subr.mxu0 0.0
        %866 = vmatpush1.msra.mxu0 %v829
        %867 = vmatprep.subr.mxu0 0.0
        %868 = vmatpush1.msra.mxu0 %v830
        %869 = vmatprep.subr.mxu0 0.0
        %870 = vmatpush1.msra.mxu0 %v831
        %871 = vmatprep.subr.mxu0 0.0
        %872 = vmatpush1.msra.mxu0 %v832
        %873 = vmatprep.subr.mxu0 0.0
        %874 = vmatpush1.msra.mxu0 %v833
        %875 = vmatprep.subr.mxu0 0.0
        %876 = vmatpush1.msra.mxu0 %v834
        %877 = vmatprep.subr.mxu0 0.0
        %878 = vmatpush1.msra.mxu0 %v835
        %879 = vmatprep.subr.mxu0 0.0
        %880 = vmatpush1.msra.mxu0 %v836
        %881 = vmatprep.subr.mxu0 0.0
        %882 = vmatpush1.msra.mxu0 %v837
        %883 = vmatprep.subr.mxu0 0.0
        %884 = vmatpush1.msra.mxu0 %v838
        %885 = vmatprep.subr.mxu0 0.0
        %886 = vmatpush1.msra.mxu0 %v839
        %887 = vmatprep.subr.mxu0 0.0
        %888 = vmatpush1.msra.mxu0 %v840
        %889 = vmatprep.subr.mxu0 0.0
        %890 = vmatpush1.msra.mxu0 %v841
        %891 = vmatprep.subr.mxu0 0.0
        %892 = vmatpush1.msra.mxu0 %v842
        %893 = vmatprep.subr.mxu0 0.0
        %894 = vmatpush1.msra.mxu0 %v843
        %895 = vmatprep.subr.mxu0 0.0
        %896 = vmatpush1.msra.mxu0 %v844
        %897 = vmatprep.subr.mxu0 0.0
        %898 = vmatpush1.msra.mxu0 %v845
        %899 = vmatprep.subr.mxu0 0.0
        %900 = vmatpush1.msra.mxu0 %v846
        %901 = vmatprep.subr.mxu0 0.0
        %902 = vmatpush1.msra.mxu0 %v847
        %903 = vmatprep.subr.mxu0 0.0
        %904 = vmatpush1.msra.mxu0 %v848
        %905 = vmatprep.subr.mxu0 0.0
        %906 = vmatpush1.msra.mxu0 %v849
        %907 = vmatprep.subr.mxu0 0.0
        %908 = vmatpush1.msra.mxu0 %v850
        %909 = vmatprep.subr.mxu0 0.0
        %910 = vmatpush1.msra.mxu0 %v851
        %911 = vmatprep.subr.mxu0 0.0
        %912 = vmatpush1.msra.mxu0 0.0
        %913 = vmatprep.subr.mxu0 0.0
        %914 = vmatpush1.msra.mxu0 0.0
        %915 = vmatprep.subr.mxu0 0.0
        %916 = vmatpush1.msra.mxu0 0.0
        %917 = vmatprep.subr.mxu0 0.0
        %918 = vmatpush1.msra.mxu0 0.0
        %919 = vmatprep.subr.mxu0 0.0
        %920 = vmatpush1.msra.mxu0 0.0
        %921 = vmatprep.subr.mxu0 0.0
        %922 = vmatpush1.msra.mxu0 0.0
        %923 = vmatprep.subr.mxu0 0.0
        %924 = vmatpush1.msra.mxu0 0.0
        %925 = vmatprep.subr.mxu0 0.0
        %926 = vmatpush1.msra.mxu0 0.0
        %927 = vmatprep.mubr.f32.mxu0 %v861
        %928 = vmatmul.mubr.f32.gmra.mrb[0].mxu0 %v826
        %v929 = vpop.f32.mrb[0].mxu0
        %v930 = vadd.f32 %v857, %v929
        %v931 = vpop.f32.mrb[0].mxu0
        %932 = vdwg.mxu0
        %v933 = vld [vmem:[%s5] sm:$0x1]
        %v934 = vld [vmem:[%s6] sm:$0x1]
        %vm935 = vcmask 258048
        %v936 = vsel %vm935, %v930, 0.0
        %937 = vadd.xlane.f32.xlu0 %v936
        %v938 = vpop.xlane.xlu0 %937
        %v939 = vrcp.pop 32.0
        %v940 = vmul.f32 %v938, %v939
        %v941 = vsub.f32 %v930, %v940
        %v942 = vmul.f32 %v941, %v941
        %v943 = vsel %vm935, %v942, 0.0
        %944 = vadd.xlane.f32.xlu0 %v943
        %v945 = vpop.xlane.xlu0 %944
        %v946 = vmul.f32 %v945, %v939
        %v947 = vadd.f32 %v946, 1e-05
        %v948 = vrsqrt.pop %v947
        %v949 = vmul.f32 %v941, %v948
        %v951 = vlaneseq
        %v952 = vshrl.u32 %v951, 7
        %v953 = vsub.s32 0, %v952
        %v954 = vrot.slane %v933, %v953
        %v956 = vmul.f32 %v949, %v954
        %v958 = vlaneseq
        %v959 = vshrl.u32 %v958, 7
        %v960 = vsub.s32 0, %v959
        %v961 = vrot.slane %v934, %v960
        %v963 = vadd.f32 %v956, %v961
        %v964 = vlaneseq
        %v965 = vshrl.u32 %v964, 7
        %vm966 = vcmp.eq.s32.totalorder %v965, 0
        %v967 = vld [vmem:[%s7] sm:$0x1]
        %v969 = vlaneseq
        %v970 = vshrl.u32 %v969, 7
        %v971 = vsub.s32 0, %v970
        %v972 = vrot.slane %v967, %v971
        %v974 = vsel %vm966, %v972, %v963
        %v975 = vld [vmem:[%s8] sm:$0x1f]
        %v976 = vadd.f32 %v974, %v975
        %977 = vst [vmem:[%s774] sm:$0xff] 0.0
        %978 = vst [vmem:[%s774 + $0x8] sm:$0xff] 0.0
        %979 = vst [vmem:[%s774 + $0x10] sm:$0xf] 0.0
        %v980 = vld [vmem:[%s13] sm:$0x1]
        %v981 = vld [vmem:[%s14] sm:$0x1]
        %v982 = vsel %vm935, %v976, 0.0
        %983 = vadd.xlane.f32.xlu0 %v982
        %v984 = vpop.xlane.xlu0 %983
        %v985 = vmul.f32 %v984, %v939
        %v986 = vsub.f32 %v976, %v985
        %v987 = vmul.f32 %v986, %v986
        %v988 = vsel %vm935, %v987, 0.0
        %989 = vadd.xlane.f32.xlu0 %v988
        %v990 = vpop.xlane.xlu0 %989
        %v991 = vmul.f32 %v990, %v939
        %v992 = vadd.f32 %v991, 1e-05
        %v993 = vrsqrt.pop %v992
        %v994 = vmul.f32 %v986, %v993
        %v995 = vlaneseq
        %v996 = vshrl.u32 %v995, 7
        %v997 = vsub.s32 0, %v996
        %v998 = vrot.slane %v980, %v997
        %v999 = vmul.f32 %v994, %v998
        %v1000 = vlaneseq
        %v1001 = vshrl.u32 %v1000, 7
        %v1002 = vsub.s32 0, %v1001
        %v1003 = vrot.slane %v981, %v1002
        %v1004 = vadd.f32 %v999, %v1003
        %v1005 = vld [vmem:[%s15] sm:$0xff]
        %v1006 = vld [vmem:[%s15 + $0x8] sm:$0xff]
        %v1007 = vld [vmem:[%s15 + $0x10] sm:$0xff]
        %v1008 = vld [vmem:[%s15 + $0x18] sm:$0xff]
        %vm1009 = vcmask 261120
        %v1011 = vsel %vm1009, %v1004, 0
        %1013 = vmatprep.subr.mxu0 0.0
        %1014 = vmatpush1.msra.mxu0 %v1005
        %1015 = vmatprep.subr.mxu0 0.0
        %1016 = vmatpush1.msra.mxu0 %v1006
        %1017 = vmatprep.subr.mxu0 0.0
        %1018 = vmatpush1.msra.mxu0 %v1007
        %1019 = vmatprep.subr.mxu0 0.0
        %1020 = vmatpush1.msra.mxu0 %v1008
        %1021 = vmatprep.subr.mxu0 0.0
        %1022 = vmatpush1.msra.mxu0 0.0
        %1023 = vmatprep.subr.mxu0 0.0
        %1024 = vmatpush1.msra.mxu0 0.0
        %1025 = vmatprep.subr.mxu0 0.0
        %1026 = vmatpush1.msra.mxu0 0.0
        %1027 = vmatprep.subr.mxu0 0.0
        %1028 = vmatpush1.msra.mxu0 0.0
        %1029 = vmatprep.subr.mxu0 0.0
        %1030 = vmatpush1.msra.mxu0 0.0
        %1031 = vmatprep.subr.mxu0 0.0
        %1032 = vmatpush1.msra.mxu0 0.0
        %1033 = vmatprep.subr.mxu0 0.0
        %1034 = vmatpush1.msra.mxu0 0.0
        %1035 = vmatprep.subr.mxu0 0.0
        %1036 = vmatpush1.msra.mxu0 0.0
        %1037 = vmatprep.subr.mxu0 0.0
        %1038 = vmatpush1.msra.mxu0 0.0
        %1039 = vmatprep.subr.mxu0 0.0
        %1040 = vmatpush1.msra.mxu0 0.0
        %1041 = vmatprep.subr.mxu0 0.0
        %1042 = vmatpush1.msra.mxu0 0.0
        %1043 = vmatprep.subr.mxu0 0.0
        %1044 = vmatpush1.msra.mxu0 0.0
        %1045 = vmatprep.subr.mxu0 0.0
        %1046 = vmatpush1.msra.mxu0 0.0
        %1047 = vmatprep.subr.mxu0 0.0
        %1048 = vmatpush1.msra.mxu0 0.0
        %1049 = vmatprep.subr.mxu0 0.0
        %1050 = vmatpush1.msra.mxu0 0.0
        %1051 = vmatprep.subr.mxu0 0.0
        %1052 = vmatpush1.msra.mxu0 0.0
        %1053 = vmatprep.subr.mxu0 0.0
        %1054 = vmatpush1.msra.mxu0 0.0
        %1055 = vmatprep.subr.mxu0 0.0
        %1056 = vmatpush1.msra.mxu0 0.0
        %1057 = vmatprep.subr.mxu0 0.0
        %1058 = vmatpush1.msra.mxu0 0.0
        %1059 = vmatprep.subr.mxu0 0.0
        %1060 = vmatpush1.msra.mxu0 0.0
        %1061 = vmatprep.subr.mxu0 0.0
        %1062 = vmatpush1.msra.mxu0 0.0
        %1063 = vmatprep.subr.mxu0 0.0
        %1064 = vmatpush1.msra.mxu0 0.0
        %1065 = vmatprep.subr.mxu0 0.0
        %1066 = vmatpush1.msra.mxu0 0.0
        %1067 = vmatprep.subr.mxu0 0.0
        %1068 = vmatpush1.msra.mxu0 0.0
        %1069 = vmatprep.subr.mxu0 0.0
        %1070 = vmatpush1.msra.mxu0 0.0
        %1071 = vmatprep.subr.mxu0 0.0
        %1072 = vmatpush1.msra.mxu0 0.0
        %1073 = vmatprep.subr.mxu0 0.0
        %1074 = vmatpush1.msra.mxu0 0.0
        %1075 = vmatprep.subr.mxu0 0.0
        %1076 = vmatpush1.msra.mxu0 0.0
        %1077 = vmatprep.mubr.f32.mxu0 0.0
        %1078 = vmatmul.mubr.f32.gmra.mrb[0].mxu0 %v1011
        %v1079 = vpop.f32.mrb[0].mxu0
        %v1080 = vadd.f32 0.0, %v1079
        %v1081 = vpop.f32.mrb[0].mxu0
        %1082 = vdwg.mxu0
        %1084 = vrot.lane.b32.xlu0 %v1080, 96
        %v1085 = vpop.permute.xlu0 %1084
        %vm1086 = vcmask 130048
        %v1087 = vsel %vm1086, %v1080, 0
        %v1089 = vsel %vm1086, %v1085, 0
        %1091 = vmatprep.subr.mxu0 0.0
        %1092 = vmatpush1.xpose.msra.mxu0 %v1089
        %1093 = vmatprep.subr.mxu0 0.0
        %1094 = vmatpush1.xpose.msra.mxu0 0.0
        %1095 = vmatprep.subr.mxu0 0.0
        %1096 = vmatpush1.xpose.msra.mxu0 0.0
        %1097 = vmatprep.subr.mxu0 0.0
        %1098 = vmatpush1.xpose.msra.mxu0 0.0
        %1099 = vmatprep.subr.mxu0 0.0
        %1100 = vmatpush1.xpose.msra.mxu0 0.0
        %1101 = vmatprep.subr.mxu0 0.0
        %1102 = vmatpush1.xpose.msra.mxu0 0.0
        %1103 = vmatprep.subr.mxu0 0.0
        %1104 = vmatpush1.xpose.msra.mxu0 0.0
        %1105 = vmatprep.subr.mxu0 0.0
        %1106 = vmatpush1.xpose.msra.mxu0 0.0
        %1107 = vmatprep.subr.mxu0 0.0
        %1108 = vmatpush1.xpose.msra.mxu0 0.0
        %1109 = vmatprep.subr.mxu0 0.0
        %1110 = vmatpush1.xpose.msra.mxu0 0.0
        %1111 = vmatprep.subr.mxu0 0.0
        %1112 = vmatpush1.xpose.msra.mxu0 0.0
        %1113 = vmatprep.subr.mxu0 0.0
        %1114 = vmatpush1.xpose.msra.mxu0 0.0
        %1115 = vmatprep.subr.mxu0 0.0
        %1116 = vmatpush1.xpose.msra.mxu0 0.0
        %1117 = vmatprep.subr.mxu0 0.0
        %1118 = vmatpush1.xpose.msra.mxu0 0.0
        %1119 = vmatprep.subr.mxu0 0.0
        %1120 = vmatpush1.xpose.msra.mxu0 0.0
        %1121 = vmatprep.subr.mxu0 0.0
        %1122 = vmatpush1.xpose.msra.mxu0 0.0
        %1123 = vmatprep.subr.mxu0 0.0
        %1124 = vmatpush1.xpose.msra.mxu0 0.0
        %1125 = vmatprep.subr.mxu0 0.0
        %1126 = vmatpush1.xpose.msra.mxu0 0.0
        %1127 = vmatprep.subr.mxu0 0.0
        %1128 = vmatpush1.xpose.msra.mxu0 0.0
        %1129 = vmatprep.subr.mxu0 0.0
        %1130 = vmatpush1.xpose.msra.mxu0 0.0
        %1131 = vmatprep.subr.mxu0 0.0
        %1132 = vmatpush1.xpose.msra.mxu0 0.0
        %1133 = vmatprep.subr.mxu0 0.0
        %1134 = vmatpush1.xpose.msra.mxu0 0.0
        %1135 = vmatprep.subr.mxu0 0.0
        %1136 = vmatpush1.xpose.msra.mxu0 0.0
        %1137 = vmatprep.subr.mxu0 0.0
        %1138 = vmatpush1.xpose.msra.mxu0 0.0
        %1139 = vmatprep.subr.mxu0 0.0
        %1140 = vmatpush1.xpose.msra.mxu0 0.0
        %1141 = vmatprep.subr.mxu0 0.0
        %1142 = vmatpush1.xpose.msra.mxu0 0.0
        %1143 = vmatprep.subr.mxu0 0.0
        %1144 = vmatpush1.xpose.msra.mxu0 0.0
        %1145 = vmatprep.subr.mxu0 0.0
        %1146 = vmatpush1.xpose.msra.mxu0 0.0
        %1147 = vmatprep.subr.mxu0 0.0
        %1148 = vmatpush1.xpose.msra.mxu0 0.0
        %1149 = vmatprep.subr.mxu0 0.0
        %1150 = vmatpush1.xpose.msra.mxu0 0.0
        %1151 = vmatprep.subr.mxu0 0.0
        %1152 = vmatpush1.xpose.msra.mxu0 0.0
        %1153 = vmatprep.subr.mxu0 0.0
        %1154 = vmatpush1.xpose.msra.mxu0 0.0
        %1155 = vmatprep.mubr.f32.mxu0 0.0
        %1156 = vmatmul.mubr.f32.gmra.mrb[0].mxu0 %v1087
        %v1157 = vpop.f32.mrb[0].mxu0
        %v1158 = vadd.f32 0.0, %v1157
        %v1159 = vpop.f32.mrb[0].mxu0
        %1160 = vdwg.mxu0
        %v1161 = vmul.f32 %v1158, 0.25
        %vm1162 = vcmask 36864
        %v1163 = vsel %vm1162, %v1161, -inf
        %1164 = vmax.xlane.f32.xlu0 %v1163
        %v1165 = vpop.xlane.xlu0 %1164
        %v1166 = vsub.f32 %v1161, %v1165
        %v1167 = vmul.f32 %v1166, 1.442695
        %v1168 = vpow.pop %v1167
        %v1169 = vsel %vm1162, %v1168, 0.0
        %1170 = vadd.xlane.f32.xlu0 %v1169
        %v1171 = vpop.xlane.xlu0 %1170
        %v1172 = vrcp.pop %v1171
        %v1173 = vmul.f32 %v1168, %v1172
        %1174 = vst.msk [vmem:[%s774] sm:$0x1f] %vm1162, %v1173
        %1175 = vrot.lane.b32.xlu0 %v1080, 64
        %v1176 = vpop.permute.xlu0 %1175
        %vm1177 = vcmask 39936
        %v1179 = vsel %vm1177, %v1173, 0
        %v1181 = vsel %vm779, %v1176, 0
        %1183 = vmatprep.subr.mxu0 0.0
        %1184 = vmatpush1.msra.mxu0 %v1181
        %1185 = vmatprep.subr.mxu0 0.0
        %1186 = vmatpush1.msra.mxu0 0.0
        %1187 = vmatprep.subr.mxu0 0.0
        %1188 = vmatpush1.msra.mxu0 0.0
        %1189 = vmatprep.subr.mxu0 0.0
        %1190 = vmatpush1.msra.mxu0 0.0
        %1191 = vmatprep.subr.mxu0 0.0
        %1192 = vmatpush1.msra.mxu0 0.0
        %1193 = vmatprep.subr.mxu0 0.0
        %1194 = vmatpush1.msra.mxu0 0.0
        %1195 = vmatprep.subr.mxu0 0.0
        %1196 = vmatpush1.msra.mxu0 0.0
        %1197 = vmatprep.subr.mxu0 0.0
        %1198 = vmatpush1.msra.mxu0 0.0
        %1199 = vmatprep.subr.mxu0 0.0
        %1200 = vmatpush1.msra.mxu0 0.0
        %1201 = vmatprep.subr.mxu0 0.0
        %1202 = vmatpush1.msra.mxu0 0.0
        %1203 = vmatprep.subr.mxu0 0.0
        %1204 = vmatpush1.msra.mxu0 0.0
        %1205 = vmatprep.subr.mxu0 0.0
        %1206 = vmatpush1.msra.mxu0 0.0
        %1207 = vmatprep.subr.mxu0 0.0
        %1208 = vmatpush1.msra.mxu0 0.0
        %1209 = vmatprep.subr.mxu0 0.0
        %1210 = vmatpush1.msra.mxu0 0.0
        %1211 = vmatprep.subr.mxu0 0.0
        %1212 = vmatpush1.msra.mxu0 0.0
        %1213 = vmatprep.subr.mxu0 0.0
        %1214 = vmatpush1.msra.mxu0 0.0
        %1215 = vmatprep.subr.mxu0 0.0
        %1216 = vmatpush1.msra.mxu0 0.0
        %1217 = vmatprep.subr.mxu0 0.0
        %1218 = vmatpush1.msra.mxu0 0.0
        %1219 = vmatprep.subr.mxu0 0.0
        %1220 = vmatpush1.msra.mxu0 0.0
        %1221 = vmatprep.subr.mxu0 0.0
        %1222 = vmatpush1.msra.mxu0 0.0
        %1223 = vmatprep.subr.mxu0 0.0
        %1224 = vmatpush1.msra.mxu0 0.0
        %1225 = vmatprep.subr.mxu0 0.0
        %1226 = vmatpush1.msra.mxu0 0.0
        %1227 = vmatprep.subr.mxu0 0.0
        %1228 = vmatpush1.msra.mxu0 0.0
        %1229 = vmatprep.subr.mxu0 0.0
        %1230 = vmatpush1.msra.mxu0 0.0
        %1231 = vmatprep.subr.mxu0 0.0
        %1232 = vmatpush1.msra.mxu0 0.0
        %1233 = vmatprep.subr.mxu0 0.0
        %1234 = vmatpush1.msra.mxu0 0.0
        %1235 = vmatprep.subr.mxu0 0.0
        %1236 = vmatpush1.msra.mxu0 0.0
        %1237 = vmatprep.subr.mxu0 0.0
        %1238 = vmatpush1.msra.mxu0 0.0
        %1239 = vmatprep.subr.mxu0 0.0
        %1240 = vmatpush1.msra.mxu0 0.0
        %1241 = vmatprep.subr.mxu0 0.0
        %1242 = vmatpush1.msra.mxu0 0.0
        %1243 = vmatprep.subr.mxu0 0.0
        %1244 = vmatpush1.msra.mxu0 0.0
        %1245 = vmatprep.subr.mxu0 0.0
        %1246 = vmatpush1.msra.mxu0 0.0
        %1247 = vmatprep.mubr.f32.mxu0 0.0
        %1248 = vmatmul.mubr.f32.gmra.mrb[0].mxu0 %v1179
        %v1249 = vpop.f32.mrb[0].mxu0
        %v1250 = vadd.f32 0.0, %v1249
        %v1251 = vpop.f32.mrb[0].mxu0
        %1252 = vdwg.mxu0
        %v1253 = vld [vmem:[%s16] sm:$0xff]
        %v1254 = vld [vmem:[%s16 + $0x8] sm:$0xff]
        %1255 = vrot.lane.b32.xlu0 %v1080, 112
        %v1256 = vpop.permute.xlu0 %1255
        %1257 = vrot.lane.b32.xlu0 %v1080, 80
        %v1258 = vpop.permute.xlu0 %1257
        %v1259 = vsel %vm1086, %v1256, 0
        %v1261 = vsel %vm1086, %v1258, 0
        %1263 = vmatprep.subr.mxu0 0.0
        %1264 = vmatpush1.xpose.msra.mxu0 %v1261
        %1265 = vmatprep.subr.mxu0 0.0
        %1266 = vmatpush1.xpose.msra.mxu0 0.0
        %1267 = vmatprep.subr.mxu0 0.0
        %1268 = vmatpush1.xpose.msra.mxu0 0.0
        %1269 = vmatprep.subr.mxu0 0.0
        %1270 = vmatpush1.xpose.msra.mxu0 0.0
        %1271 = vmatprep.subr.mxu0 0.0
        %1272 = vmatpush1.xpose.msra.mxu0 0.0
        %1273 = vmatprep.subr.mxu0 0.0
        %1274 = vmatpush1.xpose.msra.mxu0 0.0
        %1275 = vmatprep.subr.mxu0 0.0
        %1276 = vmatpush1.xpose.msra.mxu0 0.0
        %1277 = vmatprep.subr.mxu0 0.0
        %1278 = vmatpush1.xpose.msra.mxu0 0.0
        %1279 = vmatprep.subr.mxu0 0.0
        %1280 = vmatpush1.xpose.msra.mxu0 0.0
        %1281 = vmatprep.subr.mxu0 0.0
        %1282 = vmatpush1.xpose.msra.mxu0 0.0
        %1283 = vmatprep.subr.mxu0 0.0
        %1284 = vmatpush1.xpose.msra.mxu0 0.0
        %1285 = vmatprep.subr.mxu0 0.0
        %1286 = vmatpush1.xpose.msra.mxu0 0.0
        %1287 = vmatprep.subr.mxu0 0.0
        %1288 = vmatpush1.xpose.msra.mxu0 0.0
        %1289 = vmatprep.subr.mxu0 0.0
        %1290 = vmatpush1.xpose.msra.mxu0 0.0
        %1291 = vmatprep.subr.mxu0 0.0
        %1292 = vmatpush1.xpose.msra.mxu0 0.0
        %1293 = vmatprep.subr.mxu0 0.0
        %1294 = vmatpush1.xpose.msra.mxu0 0.0
        %1295 = vmatprep.subr.mxu0 0.0
        %1296 = vmatpush1.xpose.msra.mxu0 0.0
        %1297 = vmatprep.subr.mxu0 0.0
        %1298 = vmatpush1.xpose.msra.mxu0 0.0
        %1299 = vmatprep.subr.mxu0 0.0
        %1300 = vmatpush1.xpose.msra.mxu0 0.0
        %1301 = vmatprep.subr.mxu0 0.0
        %1302 = vmatpush1.xpose.msra.mxu0 0.0
        %1303 = vmatprep.subr.mxu0 0.0
        %1304 = vmatpush1.xpose.msra.mxu0 0.0
        %1305 = vmatprep.subr.mxu0 0.0
        %1306 = vmatpush1.xpose.msra.mxu0 0.0
        %1307 = vmatprep.subr.mxu0 0.0
        %1308 = vmatpush1.xpose.msra.mxu0 0.0
        %1309 = vmatprep.subr.mxu0 0.0
        %1310 = vmatpush1.xpose.msra.mxu0 0.0
        %1311 = vmatprep.subr.mxu0 0.0
        %1312 = vmatpush1.xpose.msra.mxu0 0.0
        %1313 = vmatprep.subr.mxu0 0.0
        %1314 = vmatpush1.xpose.msra.mxu0 0.0
        %1315 = vmatprep.subr.mxu0 0.0
        %1316 = vmatpush1.xpose.msra.mxu0 0.0
        %1317 = vmatprep.subr.mxu0 0.0
        %1318 = vmatpush1.xpose.msra.mxu0 0.0
        %1319 = vmatprep.subr.mxu0 0.0
        %1320 = vmatpush1.xpose.msra.mxu0 0.0
        %1321 = vmatprep.subr.mxu0 0.0
        %1322 = vmatpush1.xpose.msra.mxu0 0.0
        %1323 = vmatprep.subr.mxu0 0.0
        %1324 = vmatpush1.xpose.msra.mxu0 0.0
        %1325 = vmatprep.subr.mxu0 0.0
        %1326 = vmatpush1.xpose.msra.mxu0 0.0
        %1327 = vmatprep.mubr.f32.mxu0 0.0
        %1328 = vmatmul.mubr.f32.gmra.mrb[0].mxu0 %v1259
        %v1329 = vpop.f32.mrb[0].mxu0
        %v1330 = vadd.f32 0.0, %v1329
        %v1331 = vpop.f32.mrb[0].mxu0
        %1332 = vdwg.mxu0
        %v1333 = vmul.f32 %v1330, 0.25
        %v1334 = vsel %vm1162, %v1333, -inf
        %1335 = vmax.xlane.f32.xlu0 %v1334
        %v1336 = vpop.xlane.xlu0 %1335
        %v1337 = vsub.f32 %v1333, %v1336
        %v1338 = vmul.f32 %v1337, 1.442695
        %v1339 = vpow.pop %v1338
        %v1340 = vsel %vm1162, %v1339, 0.0
        %1341 = vadd.xlane.f32.xlu0 %v1340
        %v1342 = vpop.xlane.xlu0 %1341
        %v1343 = vrcp.pop %v1342
        %v1344 = vmul.f32 %v1339, %v1343
        %1345 = vst.msk [vmem:[%s774 + $0x5] sm:$0x1f] %vm1162, %v1344
        %1346 = vrot.lane.b32.xlu0 %v1080, 48
        %v1347 = vpop.permute.xlu0 %1346
        %v1349 = vsel %vm1177, %v1344, 0
        %v1351 = vsel %vm779, %v1347, 0
        %1353 = vmatprep.subr.mxu0 0.0
        %1354 = vmatpush1.msra.mxu0 %v1351
        %1355 = vmatprep.subr.mxu0 0.0
        %1356 = vmatpush1.msra.mxu0 0.0
        %1357 = vmatprep.subr.mxu0 0.0
        %1358 = vmatpush1.msra.mxu0 0.0
        %1359 = vmatprep.subr.mxu0 0.0
        %1360 = vmatpush1.msra.mxu0 0.0
        %1361 = vmatprep.subr.mxu0 0.0
        %1362 = vmatpush1.msra.mxu0 0.0
        %1363 = vmatprep.subr.mxu0 0.0
        %1364 = vmatpush1.msra.mxu0 0.0
        %1365 = vmatprep.subr.mxu0 0.0
        %1366 = vmatpush1.msra.mxu0 0.0
        %1367 = vmatprep.subr.mxu0 0.0
        %1368 = vmatpush1.msra.mxu0 0.0
        %1369 = vmatprep.subr.mxu0 0.0
        %1370 = vmatpush1.msra.mxu0 0.0
        %1371 = vmatprep.subr.mxu0 0.0
        %1372 = vmatpush1.msra.mxu0 0.0
        %1373 = vmatprep.subr.mxu0 0.0
        %1374 = vmatpush1.msra.mxu0 0.0
        %1375 = vmatprep.subr.mxu0 0.0
        %1376 = vmatpush1.msra.mxu0 0.0
        %1377 = vmatprep.subr.mxu0 0.0
        %1378 = vmatpush1.msra.mxu0 0.0
        %1379 = vmatprep.subr.mxu0 0.0
        %1380 = vmatpush1.msra.mxu0 0.0
        %1381 = vmatprep.subr.mxu0 0.0
        %1382 = vmatpush1.msra.mxu0 0.0
        %1383 = vmatprep.subr.mxu0 0.0
        %1384 = vmatpush1.msra.mxu0 0.0
        %1385 = vmatprep.subr.mxu0 0.0
        %1386 = vmatpush1.msra.mxu0 0.0
        %1387 = vmatprep.subr.mxu0 0.0
        %1388 = vmatpush1.msra.mxu0 0.0
        %1389 = vmatprep.subr.mxu0 0.0
        %1390 = vmatpush1.msra.mxu0 0.0
        %1391 = vmatprep.subr.mxu0 0.0
        %1392 = vmatpush1.msra.mxu0 0.0
        %1393 = vmatprep.subr.mxu0 0.0
        %1394 = vmatpush1.msra.mxu0 0.0
        %1395 = vmatprep.subr.mxu0 0.0
        %1396 = vmatpush1.msra.mxu0 0.0
        %1397 = vmatprep.subr.mxu0 0.0
        %1398 = vmatpush1.msra.mxu0 0.0
        %1399 = vmatprep.subr.mxu0 0.0
        %1400 = vmatpush1.msra.mxu0 0.0
        %1401 = vmatprep.subr.mxu0 0.0
        %1402 = vmatpush1.msra.mxu0 0.0
        %1403 = vmatprep.subr.mxu0 0.0
        %1404 = vmatpush1.msra.mxu0 0.0
        %1405 = vmatprep.subr.mxu0 0.0
        %1406 = vmatpush1.msra.mxu0 0.0
        %1407 = vmatprep.subr.mxu0 0.0
        %1408 = vmatpush1.msra.mxu0 0.0
        %1409 = vmatprep.subr.mxu0 0.0
        %1410 = vmatpush1.msra.mxu0 0.0
        %1411 = vmatprep.subr.mxu0 0.0
        %1412 = vmatpush1.msra.mxu0 0.0
        %1413 = vmatprep.subr.mxu0 0.0
        %1414 = vmatpush1.msra.mxu0 0.0
        %1415 = vmatprep.subr.mxu0 0.0
        %1416 = vmatpush1.msra.mxu0 0.0
        %1417 = vmatprep.mubr.f32.mxu0 0.0
        %1418 = vmatmul.mubr.f32.gmra.mrb[0].mxu0 %v1349
        %v1419 = vpop.f32.mrb[0].mxu0
        %v1420 = vadd.f32 0.0, %v1419
        %v1421 = vpop.f32.mrb[0].mxu0
        %1422 = vdwg.mxu0
        %v1423 = vld [vmem:[%s16 + $0x10] sm:$0xff]
        %v1424 = vld [vmem:[%s16 + $0x18] sm:$0xff]
        %v1426 = vsel %vm1086, %v1420, 0
        %1428 = vmatprep.subr.mxu0 0.0
        %1429 = vmatpush1.msra.mxu0 %v1423
        %1430 = vmatprep.subr.mxu0 0.0
        %1431 = vmatpush1.msra.mxu0 %v1424
        %1432 = vmatprep.subr.mxu0 0.0
        %1433 = vmatpush1.msra.mxu0 0.0
        %1434 = vmatprep.subr.mxu0 0.0
        %1435 = vmatpush1.msra.mxu0 0.0
        %1436 = vmatprep.subr.mxu0 0.0
        %1437 = vmatpush1.msra.mxu0 0.0
        %1438 = vmatprep.subr.mxu0 0.0
        %1439 = vmatpush1.msra.mxu0 0.0
        %1440 = vmatprep.subr.mxu0 0.0
        %1441 = vmatpush1.msra.mxu0 0.0
        %1442 = vmatprep.subr.mxu0 0.0
        %1443 = vmatpush1.msra.mxu0 0.0
        %1444 = vmatprep.subr.mxu0 0.0
        %1445 = vmatpush1.msra.mxu0 0.0
        %1446 = vmatprep.subr.mxu0 0.0
        %1447 = vmatpush1.msra.mxu0 0.0
        %1448 = vmatprep.subr.mxu0 0.0
        %1449 = vmatpush1.msra.mxu0 0.0
        %1450 = vmatprep.subr.mxu0 0.0
        %1451 = vmatpush1.msra.mxu0 0.0
        %1452 = vmatprep.subr.mxu0 0.0
        %1453 = vmatpush1.msra.mxu0 0.0
        %1454 = vmatprep.subr.mxu0 0.0
        %1455 = vmatpush1.msra.mxu0 0.0
        %1456 = vmatprep.subr.mxu0 0.0
        %1457 = vmatpush1.msra.mxu0 0.0
        %1458 = vmatprep.subr.mxu0 0.0
        %1459 = vmatpush1.msra.mxu0 0.0
        %1460 = vmatprep.subr.mxu0 0.0
        %1461 = vmatpush1.msra.mxu0 0.0
        %1462 = vmatprep.subr.mxu0 0.0
        %1463 = vmatpush1.msra.mxu0 0.0
        %1464 = vmatprep.subr.mxu0 0.0
        %1465 = vmatpush1.msra.mxu0 0.0
        %1466 = vmatprep.subr.mxu0 0.0
        %1467 = vmatpush1.msra.mxu0 0.0
        %1468 = vmatprep.subr.mxu0 0.0
        %1469 = vmatpush1.msra.mxu0 0.0
        %1470 = vmatprep.subr.mxu0 0.0
        %1471 = vmatpush1.msra.mxu0 0.0
        %1472 = vmatprep.subr.mxu0 0.0
        %1473 = vmatpush1.msra.mxu0 0.0
        %1474 = vmatprep.subr.mxu0 0.0
        %1475 = vmatpush1.msra.mxu0 0.0
        %1476 = vmatprep.subr.mxu0 0.0
        %1477 = vmatpush1.msra.mxu0 0.0
        %1478 = vmatprep.subr.mxu0 0.0
        %1479 = vmatpush1.msra.mxu0 0.0
        %1480 = vmatprep.subr.mxu0 0.0
        %1481 = vmatpush1.msra.mxu0 0.0
        %1482 = vmatprep.subr.mxu0 0.0
        %1483 = vmatpush1.msra.mxu0 0.0
        %1484 = vmatprep.subr.mxu0 0.0
        %1485 = vmatpush1.msra.mxu0 0.0
        %1486 = vmatprep.subr.mxu0 0.0
        %1487 = vmatpush1.msra.mxu0 0.0
        %1488 = vmatprep.subr.mxu0 0.0
        %1489 = vmatpush1.msra.mxu0 0.0
        %1490 = vmatprep.subr.mxu0 0.0
        %1491 = vmatpush1.msra.mxu0 0.0
        %1492 = vmatprep.mubr.f32.mxu0 0.0
        %1493 = vmatmul.mubr.f32.gmra.mrb[0].mxu0 %v1426
        %v1494 = vpop.f32.mrb[0].mxu0
        %v1495 = vadd.f32 0.0, %v1494
        %v1496 = vpop.f32.mrb[0].mxu0
        %1497 = vdwg.mxu0
        %v1499 = vsel %vm1086, %v1250, 0
        %1501 = vmatprep.subr.mxu0 0.0
        %1502 = vmatpush1.msra.mxu0 %v1253
        %1503 = vmatprep.subr.mxu0 0.0
        %1504 = vmatpush1.msra.mxu0 %v1254
        %1505 = vmatprep.subr.mxu0 0.0
        %1506 = vmatpush1.msra.mxu0 0.0
        %1507 = vmatprep.subr.mxu0 0.0
        %1508 = vmatpush1.msra.mxu0 0.0
        %1509 = vmatprep.subr.mxu0 0.0
        %1510 = vmatpush1.msra.mxu0 0.0
        %1511 = vmatprep.subr.mxu0 0.0
        %1512 = vmatpush1.msra.mxu0 0.0
        %1513 = vmatprep.subr.mxu0 0.0
        %1514 = vmatpush1.msra.mxu0 0.0
        %1515 = vmatprep.subr.mxu0 0.0
        %1516 = vmatpush1.msra.mxu0 0.0
        %1517 = vmatprep.subr.mxu0 0.0
        %1518 = vmatpush1.msra.mxu0 0.0
        %1519 = vmatprep.subr.mxu0 0.0
        %1520 = vmatpush1.msra.mxu0 0.0
        %1521 = vmatprep.subr.mxu0 0.0
        %1522 = vmatpush1.msra.mxu0 0.0
        %1523 = vmatprep.subr.mxu0 0.0
        %1524 = vmatpush1.msra.mxu0 0.0
        %1525 = vmatprep.subr.mxu0 0.0
        %1526 = vmatpush1.msra.mxu0 0.0
        %1527 = vmatprep.subr.mxu0 0.0
        %1528 = vmatpush1.msra.mxu0 0.0
        %1529 = vmatprep.subr.mxu0 0.0
        %1530 = vmatpush1.msra.mxu0 0.0
        %1531 = vmatprep.subr.mxu0 0.0
        %1532 = vmatpush1.msra.mxu0 0.0
        %1533 = vmatprep.subr.mxu0 0.0
        %1534 = vmatpush1.msra.mxu0 0.0
        %1535 = vmatprep.subr.mxu0 0.0
        %1536 = vmatpush1.msra.mxu0 0.0
        %1537 = vmatprep.subr.mxu0 0.0
        %1538 = vmatpush1.msra.mxu0 0.0
        %1539 = vmatprep.subr.mxu0 0.0
        %1540 = vmatpush1.msra.mxu0 0.0
        %1541 = vmatprep.subr.mxu0 0.0
        %1542 = vmatpush1.msra.mxu0 0.0
        %1543 = vmatprep.subr.mxu0 0.0
        %1544 = vmatpush1.msra.mxu0 0.0
        %1545 = vmatprep.subr.mxu0 0.0
        %1546 = vmatpush1.msra.mxu0 0.0
        %1547 = vmatprep.subr.mxu0 0.0
        %1548 = vmatpush1.msra.mxu0 0.0
        %1549 = vmatprep.subr.mxu0 0.0
        %1550 = vmatpush1.msra.mxu0 0.0
        %1551 = vmatprep.subr.mxu0 0.0
        %1552 = vmatpush1.msra.mxu0 0.0
        %1553 = vmatprep.subr.mxu0 0.0
        %1554 = vmatpush1.msra.mxu0 0.0
        %1555 = vmatprep.subr.mxu0 0.0
        %1556 = vmatpush1.msra.mxu0 0.0
        %1557 = vmatprep.subr.mxu0 0.0
        %1558 = vmatpush1.msra.mxu0 0.0
        %1559 = vmatprep.subr.mxu0 0.0
        %1560 = vmatpush1.msra.mxu0 0.0
        %1561 = vmatprep.subr.mxu0 0.0
        %1562 = vmatpush1.msra.mxu0 0.0
        %1563 = vmatprep.subr.mxu0 0.0
        %1564 = vmatpush1.msra.mxu0 0.0
        %1565 = vmatprep.mubr.f32.mxu0 0.0
        %1566 = vmatmul.mubr.f32.gmra.mrb[0].mxu0 %v1499
        %v1567 = vpop.f32.mrb[0].mxu0
        %v1568 = vadd.f32 %v1495, %v1567
        %v1569 = vpop.f32.mrb[0].mxu0
        %1570 = vdwg.mxu0
        %v1571 = vadd.f32 %v976, %v1568
        %v1572 = vld [vmem:[%s17] sm:$0x1]
        %v1573 = vlaneseq
        %v1574 = vshrl.u32 %v1573, 7
        %v1575 = vsub.s32 0, %v1574
        %v1576 = vrot.slane %v1572, %v1575
        %v1577 = vadd.f32 %v1571, %v1576
        %v1578 = vld [vmem:[%s18] sm:$0x1]
        %v1579 = vld [vmem:[%s19] sm:$0x1]
        %v1580 = vsel %vm935, %v1577, 0.0
        %1581 = vadd.xlane.f32.xlu0 %v1580
        %v1582 = vpop.xlane.xlu0 %1581
        %v1583 = vmul.f32 %v1582, %v939
        %v1584 = vsub.f32 %v1577, %v1583
        %v1585 = vmul.f32 %v1584, %v1584
        %v1586 = vsel %vm935, %v1585, 0.0
        %1587 = vadd.xlane.f32.xlu0 %v1586
        %v1588 = vpop.xlane.xlu0 %1587
        %v1589 = vmul.f32 %v1588, %v939
        %v1590 = vadd.f32 %v1589, 1e-05
        %v1591 = vrsqrt.pop %v1590
        %v1592 = vmul.f32 %v1584, %v1591
        %v1593 = vlaneseq
        %v1594 = vshrl.u32 %v1593, 7
        %v1595 = vsub.s32 0, %v1594
        %v1596 = vrot.slane %v1578, %v1595
        %v1597 = vmul.f32 %v1592, %v1596
        %v1598 = vlaneseq
        %v1599 = vshrl.u32 %v1598, 7
        %v1600 = vsub.s32 0, %v1599
        %v1601 = vrot.slane %v1579, %v1600
        %v1602 = vadd.f32 %v1597, %v1601
        %v1603 = vld [vmem:[%s20] sm:$0xff]
        %v1604 = vld [vmem:[%s20 + $0x8] sm:$0xff]
        %v1605 = vld [vmem:[%s20 + $0x10] sm:$0xff]
        %v1606 = vld [vmem:[%s20 + $0x18] sm:$0xff]
        %v1607 = vld [vmem:[%s21] sm:$0x1]
        %v1608 = vlaneseq
        %v1609 = vshrl.u32 %v1608, 7
        %v1610 = vsub.s32 0, %v1609
        %v1611 = vrot.slane %v1607, %v1610
        %v1613 = vsel %vm1009, %v1602, 0
        %1615 = vmatprep.subr.mxu0 0.0
        %1616 = vmatpush1.msra.mxu0 %v1603
        %1617 = vmatprep.subr.mxu0 0.0
        %1618 = vmatpush1.msra.mxu0 %v1604
        %1619 = vmatprep.subr.mxu0 0.0
        %1620 = vmatpush1.msra.mxu0 %v1605
        %1621 = vmatprep.subr.mxu0 0.0
        %1622 = vmatpush1.msra.mxu0 %v1606
        %1623 = vmatprep.subr.mxu0 0.0
        %1624 = vmatpush1.msra.mxu0 0.0
        %1625 = vmatprep.subr.mxu0 0.0
        %1626 = vmatpush1.msra.mxu0 0.0
        %1627 = vmatprep.subr.mxu0 0.0
        %1628 = vmatpush1.msra.mxu0 0.0
        %1629 = vmatprep.subr.mxu0 0.0
        %1630 = vmatpush1.msra.mxu0 0.0
        %1631 = vmatprep.subr.mxu0 0.0
        %1632 = vmatpush1.msra.mxu0 0.0
        %1633 = vmatprep.subr.mxu0 0.0
        %1634 = vmatpush1.msra.mxu0 0.0
        %1635 = vmatprep.subr.mxu0 0.0
        %1636 = vmatpush1.msra.mxu0 0.0
        %1637 = vmatprep.subr.mxu0 0.0
        %1638 = vmatpush1.msra.mxu0 0.0
        %1639 = vmatprep.subr.mxu0 0.0
        %1640 = vmatpush1.msra.mxu0 0.0
        %1641 = vmatprep.subr.mxu0 0.0
        %1642 = vmatpush1.msra.mxu0 0.0
        %1643 = vmatprep.subr.mxu0 0.0
        %1644 = vmatpush1.msra.mxu0 0.0
        %1645 = vmatprep.subr.mxu0 0.0
        %1646 = vmatpush1.msra.mxu0 0.0
        %1647 = vmatprep.subr.mxu0 0.0
        %1648 = vmatpush1.msra.mxu0 0.0
        %1649 = vmatprep.subr.mxu0 0.0
        %1650 = vmatpush1.msra.mxu0 0.0
        %1651 = vmatprep.subr.mxu0 0.0
        %1652 = vmatpush1.msra.mxu0 0.0
        %1653 = vmatprep.subr.mxu0 0.0
        %1654 = vmatpush1.msra.mxu0 0.0
        %1655 = vmatprep.subr.mxu0 0.0
        %1656 = vmatpush1.msra.mxu0 0.0
        %1657 = vmatprep.subr.mxu0 0.0
        %1658 = vmatpush1.msra.mxu0 0.0
        %1659 = vmatprep.subr.mxu0 0.0
        %1660 = vmatpush1.msra.mxu0 0.0
        %1661 = vmatprep.subr.mxu0 0.0
        %1662 = vmatpush1.msra.mxu0 0.0
        %1663 = vmatprep.subr.mxu0 0.0
        %1664 = vmatpush1.msra.mxu0 0.0
        %1665 = vmatprep.subr.mxu0 0.0
        %1666 = vmatpush1.msra.mxu0 0.0
        %1667 = vmatprep.subr.mxu0 0.0
        %1668 = vmatpush1.msra.mxu0 0.0
        %1669 = vmatprep.subr.mxu0 0.0
        %1670 = vmatpush1.msra.mxu0 0.0
        %1671 = vmatprep.subr.mxu0 0.0
        %1672 = vmatpush1.msra.mxu0 0.0
        %1673 = vmatprep.subr.mxu0 0.0
        %1674 = vmatpush1.msra.mxu0 0.0
        %1675 = vmatprep.subr.mxu0 0.0
        %1676 = vmatpush1.msra.mxu0 0.0
        %1677 = vmatprep.subr.mxu0 0.0
        %1678 = vmatpush1.msra.mxu0 0.0
        %1679 = vmatprep.mubr.f32.mxu0 0.0
        %1680 = vmatmul.mubr.f32.gmra.mrb[0].mxu0 %v1613
        %v1681 = vpop.f32.mrb[0].mxu0
        %v1682 = vadd.f32 %v1611, %v1681
        %v1683 = vpop.f32.mrb[0].mxu0
        %1684 = vdwg.mxu0
        %v1685 = vmul.f32 %v1682, 0.5
        %v1686 = vmul.f32 %v1682, 0.70710677
        %vm1687 = vcmp.lt.f32.partialorder %v1686, 0.0
        %v1688 = vsel %vm1687, -1.0, 1.0
        %v1689 = vand.u32 2147483647, %v1686
        %v1690 = vmul.f32 %v1689, 0.3275911
        %v1691 = vadd.f32 %v1690, 1.0
        %v1692 = vrcp.pop %v1691
        %v1693 = vmul.f32 1.0, %v1692
        %v1694 = vmul.f32 %v1693, 1.0614054
        %v1695 = vadd.f32 %v1694, -1.4531521
        %v1696 = vmul.f32 %v1693, %v1695
        %v1697 = vadd.f32 %v1696, 1.4214138
        %v1698 = vmul.f32 %v1693, %v1697
        %v1699 = vadd.f32 %v1698, -0.28449672
        %v1700 = vmul.f32 %v1693, %v1699
        %v1701 = vadd.f32 %v1700, 0.2548296
        %v1702 = vmul.f32 %v1693, %v1701
        %v1703 = vsub.f32 0.0, %v1689
        %v1704 = vmul.f32 %v1703, %v1689
        %v1705 = vmul.f32 %v1704, 1.442695
        %v1706 = vpow.pop %v1705
        %v1707 = vmul.f32 %v1702, %v1706
        %v1708 = vsub.f32 1.0, %v1707
        %v1709 = vmul.f32 %v1688, %v1708
        %v1710 = vadd.f32 %v1709, 1.0
        %v1711 = vmul.f32 %v1685, %v1710
        %v1712 = vld [vmem:[%s22] sm:$0xff]
        %v1713 = vld [vmem:[%s22 + $0x8] sm:$0xff]
        %v1714 = vld [vmem:[%s22 + $0x10] sm:$0xff]
        %v1715 = vld [vmem:[%s22 + $0x18] sm:$0xff]
        %v1716 = vld [vmem:[%s22 + $0x20] sm:$0xff]
        %v1717 = vld [vmem:[%s22 + $0x28] sm:$0xff]
        %v1718 = vld [vmem:[%s22 + $0x30] sm:$0xff]
        %v1719 = vld [vmem:[%s22 + $0x38] sm:$0xff]
        %v1720 = vld [vmem:[%s23] sm:$0x1]
        %v1721 = vlaneseq
        %v1722 = vshrl.u32 %v1721, 7
        %v1723 = vsub.s32 0, %v1722
        %v1724 = vrot.slane %v1720, %v1723
        %v1726 = vsel %vm859, %v1711, 0
        %1728 = vmatprep.subr.mxu0 0.0
        %1729 = vmatpush1.msra.mxu0 %v1712
        %1730 = vmatprep.subr.mxu0 0.0
        %1731 = vmatpush1.msra.mxu0 %v1713
        %1732 = vmatprep.subr.mxu0 0.0
        %1733 = vmatpush1.msra.mxu0 %v1714
        %1734 = vmatprep.subr.mxu0 0.0
        %1735 = vmatpush1.msra.mxu0 %v1715
        %1736 = vmatprep.subr.mxu0 0.0
        %1737 = vmatpush1.msra.mxu0 %v1716
        %1738 = vmatprep.subr.mxu0 0.0
        %1739 = vmatpush1.msra.mxu0 %v1717
        %1740 = vmatprep.subr.mxu0 0.0
        %1741 = vmatpush1.msra.mxu0 %v1718
        %1742 = vmatprep.subr.mxu0 0.0
        %1743 = vmatpush1.msra.mxu0 %v1719
        %1744 = vmatprep.subr.mxu0 0.0
        %1745 = vmatpush1.msra.mxu0 0.0
        %1746 = vmatprep.subr.mxu0 0.0
        %1747 = vmatpush1.msra.mxu0 0.0
        %1748 = vmatprep.subr.mxu0 0.0
        %1749 = vmatpush1.msra.mxu0 0.0
        %1750 = vmatprep.subr.mxu0 0.0
        %1751 = vmatpush1.msra.mxu0 0.0
        %1752 = vmatprep.subr.mxu0 0.0
        %1753 = vmatpush1.msra.mxu0 0.0
        %1754 = vmatprep.subr.mxu0 0.0
        %1755 = vmatpush1.msra.mxu0 0.0
        %1756 = vmatprep.subr.mxu0 0.0
        %1757 = vmatpush1.msra.mxu0 0.0
        %1758 = vmatprep.subr.mxu0 0.0
        %1759 = vmatpush1.msra.mxu0 0.0
        %1760 = vmatprep.subr.mxu0 0.0
        %1761 = vmatpush1.msra.mxu0 0.0
        %1762 = vmatprep.subr.mxu0 0.0
        %1763 = vmatpush1.msra.mxu0 0.0
        %1764 = vmatprep.subr.mxu0 0.0
        %1765 = vmatpush1.msra.mxu0 0.0
        %1766 = vmatprep.subr.mxu0 0.0
        %1767 = vmatpush1.msra.mxu0 0.0
        %1768 = vmatprep.subr.mxu0 0.0
        %1769 = vmatpush1.msra.mxu0 0.0
        %1770 = vmatprep.subr.mxu0 0.0
        %1771 = vmatpush1.msra.mxu0 0.0
        %1772 = vmatprep.subr.mxu0 0.0
        %1773 = vmatpush1.msra.mxu0 0.0
        %1774 = vmatprep.subr.mxu0 0.0
        %1775 = vmatpush1.msra.mxu0 0.0
        %1776 = vmatprep.subr.mxu0 0.0
        %1777 = vmatpush1.msra.mxu0 0.0
        %1778 = vmatprep.subr.mxu0 0.0
        %1779 = vmatpush1.msra.mxu0 0.0
        %1780 = vmatprep.subr.mxu0 0.0
        %1781 = vmatpush1.msra.mxu0 0.0
        %1782 = vmatprep.subr.mxu0 0.0
        %1783 = vmatpush1.msra.mxu0 0.0
        %1784 = vmatprep.subr.mxu0 0.0
        %1785 = vmatpush1.msra.mxu0 0.0
        %1786 = vmatprep.subr.mxu0 0.0
        %1787 = vmatpush1.msra.mxu0 0.0
        %1788 = vmatprep.subr.mxu0 0.0
        %1789 = vmatpush1.msra.mxu0 0.0
        %1790 = vmatprep.subr.mxu0 0.0
        %1791 = vmatpush1.msra.mxu0 0.0
        %1792 = vmatprep.mubr.f32.mxu0 0.0
        %1793 = vmatmul.mubr.f32.gmra.mrb[0].mxu0 %v1726
        %v1794 = vpop.f32.mrb[0].mxu0
        %v1795 = vadd.f32 %v1724, %v1794
        %v1796 = vpop.f32.mrb[0].mxu0
        %1797 = vdwg.mxu0
        %v1798 = vadd.f32 %v1577, %v1795
        %v1799 = vld [vmem:[%s13 + $0x1] sm:$0x1]
        %v1800 = vld [vmem:[%s14 + $0x1] sm:$0x1]
        %v1801 = vsel %vm935, %v1798, 0.0
        %1802 = vadd.xlane.f32.xlu0 %v1801
        %v1803 = vpop.xlane.xlu0 %1802
        %v1804 = vmul.f32 %v1803, %v939
        %v1805 = vsub.f32 %v1798, %v1804
        %v1806 = vmul.f32 %v1805, %v1805
        %v1807 = vsel %vm935, %v1806, 0.0
        %1808 = vadd.xlane.f32.xlu0 %v1807
        %v1809 = vpop.xlane.xlu0 %1808
        %v1810 = vmul.f32 %v1809, %v939
        %v1811 = vadd.f32 %v1810, 1e-05
        %v1812 = vrsqrt.pop %v1811
        %v1813 = vmul.f32 %v1805, %v1812
        %v1814 = vlaneseq
        %v1815 = vshrl.u32 %v1814, 7
        %v1816 = vsub.s32 0, %v1815
        %v1817 = vrot.slane %v1799, %v1816
        %v1818 = vmul.f32 %v1813, %v1817
        %v1819 = vlaneseq
        %v1820 = vshrl.u32 %v1819, 7
        %v1821 = vsub.s32 0, %v1820
        %v1822 = vrot.slane %v1800, %v1821
        %v1823 = vadd.f32 %v1818, %v1822
        %s1824 = scalar_lea.vmem %s15, 32
        %v1825 = vld [vmem:[%s1824] sm:$0xff]
        %v1826 = vld [vmem:[%s1824 + $0x8] sm:$0xff]
        %v1827 = vld [vmem:[%s1824 + $0x10] sm:$0xff]
        %v1828 = vld [vmem:[%s1824 + $0x18] sm:$0xff]
        %v1830 = vsel %vm1009, %v1823, 0
        %1832 = vmatprep.subr.mxu0 0.0
        %1833 = vmatpush1.msra.mxu0 %v1825
        %1834 = vmatprep.subr.mxu0 0.0
        %1835 = vmatpush1.msra.mxu0 %v1826
        %1836 = vmatprep.subr.mxu0 0.0
        %1837 = vmatpush1.msra.mxu0 %v1827
        %1838 = vmatprep.subr.mxu0 0.0
        %1839 = vmatpush1.msra.mxu0 %v1828
        %1840 = vmatprep.subr.mxu0 0.0
        %1841 = vmatpush1.msra.mxu0 0.0
        %1842 = vmatprep.subr.mxu0 0.0
        %1843 = vmatpush1.msra.mxu0 0.0
        %1844 = vmatprep.subr.mxu0 0.0
        %1845 = vmatpush1.msra.mxu0 0.0
        %1846 = vmatprep.subr.mxu0 0.0
        %1847 = vmatpush1.msra.mxu0 0.0
        %1848 = vmatprep.subr.mxu0 0.0
        %1849 = vmatpush1.msra.mxu0 0.0
        %1850 = vmatprep.subr.mxu0 0.0
        %1851 = vmatpush1.msra.mxu0 0.0
        %1852 = vmatprep.subr.mxu0 0.0
        %1853 = vmatpush1.msra.mxu0 0.0
        %1854 = vmatprep.subr.mxu0 0.0
        %1855 = vmatpush1.msra.mxu0 0.0
        %1856 = vmatprep.subr.mxu0 0.0
        %1857 = vmatpush1.msra.mxu0 0.0
        %1858 = vmatprep.subr.mxu0 0.0
        %1859 = vmatpush1.msra.mxu0 0.0
        %1860 = vmatprep.subr.mxu0 0.0
        %1861 = vmatpush1.msra.mxu0 0.0
        %1862 = vmatprep.subr.mxu0 0.0
        %1863 = vmatpush1.msra.mxu0 0.0
        %1864 = vmatprep.subr.mxu0 0.0
        %1865 = vmatpush1.msra.mxu0 0.0
        %1866 = vmatprep.subr.mxu0 0.0
        %1867 = vmatpush1.msra.mxu0 0.0
        %1868 = vmatprep.subr.mxu0 0.0
        %1869 = vmatpush1.msra.mxu0 0.0
        %1870 = vmatprep.subr.mxu0 0.0
        %1871 = vmatpush1.msra.mxu0 0.0
        %1872 = vmatprep.subr.mxu0 0.0
        %1873 = vmatpush1.msra.mxu0 0.0
        %1874 = vmatprep.subr.mxu0 0.0
        %1875 = vmatpush1.msra.mxu0 0.0
        %1876 = vmatprep.subr.mxu0 0.0
        %1877 = vmatpush1.msra.mxu0 0.0
        %1878 = vmatprep.subr.mxu0 0.0
        %1879 = vmatpush1.msra.mxu0 0.0
        %1880 = vmatprep.subr.mxu0 0.0
        %1881 = vmatpush1.msra.mxu0 0.0
        %1882 = vmatprep.subr.mxu0 0.0
        %1883 = vmatpush1.msra.mxu0 0.0
        %1884 = vmatprep.subr.mxu0 0.0
        %1885 = vmatpush1.msra.mxu0 0.0
        %1886 = vmatprep.subr.mxu0 0.0
        %1887 = vmatpush1.msra.mxu0 0.0
        %1888 = vmatprep.subr.mxu0 0.0
        %1889 = vmatpush1.msra.mxu0 0.0
        %1890 = vmatprep.subr.mxu0 0.0
        %1891 = vmatpush1.msra.mxu0 0.0
        %1892 = vmatprep.subr.mxu0 0.0
        %1893 = vmatpush1.msra.mxu0 0.0
        %1894 = vmatprep.subr.mxu0 0.0
        %1895 = vmatpush1.msra.mxu0 0.0
        %1896 = vmatprep.mubr.f32.mxu0 0.0
        %1897 = vmatmul.mubr.f32.gmra.mrb[0].mxu0 %v1830
        %v1898 = vpop.f32.mrb[0].mxu0
        %v1899 = vadd.f32 0.0, %v1898
        %v1900 = vpop.f32.mrb[0].mxu0
        %1901 = vdwg.mxu0
        %1903 = vrot.lane.b32.xlu0 %v1899, 96
        %v1904 = vpop.permute.xlu0 %1903
        %v1905 = vsel %vm1086, %v1899, 0
        %v1907 = vsel %vm1086, %v1904, 0
        %1909 = vmatprep.subr.mxu0 0.0
        %1910 = vmatpush1.xpose.msra.mxu0 %v1907
        %1911 = vmatprep.subr.mxu0 0.0
        %1912 = vmatpush1.xpose.msra.mxu0 0.0
        %1913 = vmatprep.subr.mxu0 0.0
        %1914 = vmatpush1.xpose.msra.mxu0 0.0
        %1915 = vmatprep.subr.mxu0 0.0
        %1916 = vmatpush1.xpose.msra.mxu0 0.0
        %1917 = vmatprep.subr.mxu0 0.0
        %1918 = vmatpush1.xpose.msra.mxu0 0.0
        %1919 = vmatprep.subr.mxu0 0.0
        %1920 = vmatpush1.xpose.msra.mxu0 0.0
        %1921 = vmatprep.subr.mxu0 0.0
        %1922 = vmatpush1.xpose.msra.mxu0 0.0
        %1923 = vmatprep.subr.mxu0 0.0
        %1924 = vmatpush1.xpose.msra.mxu0 0.0
        %1925 = vmatprep.subr.mxu0 0.0
        %1926 = vmatpush1.xpose.msra.mxu0 0.0
        %1927 = vmatprep.subr.mxu0 0.0
        %1928 = vmatpush1.xpose.msra.mxu0 0.0
        %1929 = vmatprep.subr.mxu0 0.0
        %1930 = vmatpush1.xpose.msra.mxu0 0.0
        %1931 = vmatprep.subr.mxu0 0.0
        %1932 = vmatpush1.xpose.msra.mxu0 0.0
        %1933 = vmatprep.subr.mxu0 0.0
        %1934 = vmatpush1.xpose.msra.mxu0 0.0
        %1935 = vmatprep.subr.mxu0 0.0
        %1936 = vmatpush1.xpose.msra.mxu0 0.0
        %1937 = vmatprep.subr.mxu0 0.0
        %1938 = vmatpush1.xpose.msra.mxu0 0.0
        %1939 = vmatprep.subr.mxu0 0.0
        %1940 = vmatpush1.xpose.msra.mxu0 0.0
        %1941 = vmatprep.subr.mxu0 0.0
        %1942 = vmatpush1.xpose.msra.mxu0 0.0
        %1943 = vmatprep.subr.mxu0 0.0
        %1944 = vmatpush1.xpose.msra.mxu0 0.0
        %1945 = vmatprep.subr.mxu0 0.0
        %1946 = vmatpush1.xpose.msra.mxu0 0.0
        %1947 = vmatprep.subr.mxu0 0.0
        %1948 = vmatpush1.xpose.msra.mxu0 0.0
        %1949 = vmatprep.subr.mxu0 0.0
        %1950 = vmatpush1.xpose.msra.mxu0 0.0
        %1951 = vmatprep.subr.mxu0 0.0
        %1952 = vmatpush1.xpose.msra.mxu0 0.0
        %1953 = vmatprep.subr.mxu0 0.0
        %1954 = vmatpush1.xpose.msra.mxu0 0.0
        %1955 = vmatprep.subr.mxu0 0.0
        %1956 = vmatpush1.xpose.msra.mxu0 0.0
        %1957 = vmatprep.subr.mxu0 0.0
        %1958 = vmatpush1.xpose.msra.mxu0 0.0
        %1959 = vmatprep.subr.mxu0 0.0
        %1960 = vmatpush1.xpose.msra.mxu0 0.0
        %1961 = vmatprep.subr.mxu0 0.0
        %1962 = vmatpush1.xpose.msra.mxu0 0.0
        %1963 = vmatprep.subr.mxu0 0.0
        %1964 = vmatpush1.xpose.msra.mxu0 0.0
        %1965 = vmatprep.subr.mxu0 0.0
        %1966 = vmatpush1.xpose.msra.mxu0 0.0
        %1967 = vmatprep.subr.mxu0 0.0
        %1968 = vmatpush1.xpose.msra.mxu0 0.0
        %1969 = vmatprep.subr.mxu0 0.0
        %1970 = vmatpush1.xpose.msra.mxu0 0.0
        %1971 = vmatprep.subr.mxu0 0.0
        %1972 = vmatpush1.xpose.msra.mxu0 0.0
        %1973 = vmatprep.mubr.f32.mxu0 0.0
        %1974 = vmatmul.mubr.f32.gmra.mrb[0].mxu0 %v1905
        %v1975 = vpop.f32.mrb[0].mxu0
        %v1976 = vadd.f32 0.0, %v1975
        %v1977 = vpop.f32.mrb[0].mxu0
        %1978 = vdwg.mxu0
        %v1979 = vmul.f32 %v1976, 0.25
        %v1980 = vsel %vm1162, %v1979, -inf
        %1981 = vmax.xlane.f32.xlu0 %v1980
        %v1982 = vpop.xlane.xlu0 %1981
        %v1983 = vsub.f32 %v1979, %v1982
        %v1984 = vmul.f32 %v1983, 1.442695
        %v1985 = vpow.pop %v1984
        %v1986 = vsel %vm1162, %v1985, 0.0
        %1987 = vadd.xlane.f32.xlu0 %v1986
        %v1988 = vpop.xlane.xlu0 %1987
        %v1989 = vrcp.pop %v1988
        %v1990 = vmul.f32 %v1985, %v1989
        %1991 = vst.msk [vmem:[%s774 + $0xa] sm:$0x1f] %vm1162, %v1990
        %1992 = vrot.lane.b32.xlu0 %v1899, 64
        %v1993 = vpop.permute.xlu0 %1992
        %v1995 = vsel %vm1177, %v1990, 0
        %v1997 = vsel %vm779, %v1993, 0
        %1999 = vmatprep.subr.mxu0 0.0
        %2000 = vmatpush1.msra.mxu0 %v1997
        %2001 = vmatprep.subr.mxu0 0.0
        %2002 = vmatpush1.msra.mxu0 0.0
        %2003 = vmatprep.subr.mxu0 0.0
        %2004 = vmatpush1.msra.mxu0 0.0
        %2005 = vmatprep.subr.mxu0 0.0
        %2006 = vmatpush1.msra.mxu0 0.0
        %2007 = vmatprep.subr.mxu0 0.0
        %2008 = vmatpush1.msra.mxu0 0.0
        %2009 = vmatprep.subr.mxu0 0.0
        %2010 = vmatpush1.msra.mxu0 0.0
        %2011 = vmatprep.subr.mxu0 0.0
        %2012 = vmatpush1.msra.mxu0 0.0
        %2013 = vmatprep.subr.mxu0 0.0
        %2014 = vmatpush1.msra.mxu0 0.0
        %2015 = vmatprep.subr.mxu0 0.0
        %2016 = vmatpush1.msra.mxu0 0.0
        %2017 = vmatprep.subr.mxu0 0.0
        %2018 = vmatpush1.msra.mxu0 0.0
        %2019 = vmatprep.subr.mxu0 0.0
        %2020 = vmatpush1.msra.mxu0 0.0
        %2021 = vmatprep.subr.mxu0 0.0
        %2022 = vmatpush1.msra.mxu0 0.0
        %2023 = vmatprep.subr.mxu0 0.0
        %2024 = vmatpush1.msra.mxu0 0.0
        %2025 = vmatprep.subr.mxu0 0.0
        %2026 = vmatpush1.msra.mxu0 0.0
        %2027 = vmatprep.subr.mxu0 0.0
        %2028 = vmatpush1.msra.mxu0 0.0
        %2029 = vmatprep.subr.mxu0 0.0
        %2030 = vmatpush1.msra.mxu0 0.0
        %2031 = vmatprep.subr.mxu0 0.0
        %2032 = vmatpush1.msra.mxu0 0.0
        %2033 = vmatprep.subr.mxu0 0.0
        %2034 = vmatpush1.msra.mxu0 0.0
        %2035 = vmatprep.subr.mxu0 0.0
        %2036 = vmatpush1.msra.mxu0 0.0
        %2037 = vmatprep.subr.mxu0 0.0
        %2038 = vmatpush1.msra.mxu0 0.0
        %2039 = vmatprep.subr.mxu0 0.0
        %2040 = vmatpush1.msra.mxu0 0.0
        %2041 = vmatprep.subr.mxu0 0.0
        %2042 = vmatpush1.msra.mxu0 0.0
        %2043 = vmatprep.subr.mxu0 0.0
        %2044 = vmatpush1.msra.mxu0 0.0
        %2045 = vmatprep.subr.mxu0 0.0
        %2046 = vmatpush1.msra.mxu0 0.0
        %2047 = vmatprep.subr.mxu0 0.0
        %2048 = vmatpush1.msra.mxu0 0.0
        %2049 = vmatprep.subr.mxu0 0.0
        %2050 = vmatpush1.msra.mxu0 0.0
        %2051 = vmatprep.subr.mxu0 0.0
        %2052 = vmatpush1.msra.mxu0 0.0
        %2053 = vmatprep.subr.mxu0 0.0
        %2054 = vmatpush1.msra.mxu0 0.0
        %2055 = vmatprep.subr.mxu0 0.0
        %2056 = vmatpush1.msra.mxu0 0.0
        %2057 = vmatprep.subr.mxu0 0.0
        %2058 = vmatpush1.msra.mxu0 0.0
        %2059 = vmatprep.subr.mxu0 0.0
        %2060 = vmatpush1.msra.mxu0 0.0
        %2061 = vmatprep.subr.mxu0 0.0
        %2062 = vmatpush1.msra.mxu0 0.0
        %2063 = vmatprep.mubr.f32.mxu0 0.0
        %2064 = vmatmul.mubr.f32.gmra.mrb[0].mxu0 %v1995
        %v2065 = vpop.f32.mrb[0].mxu0
        %v2066 = vadd.f32 0.0, %v2065
        %v2067 = vpop.f32.mrb[0].mxu0
        %2068 = vdwg.mxu0
        %s2069 = scalar_lea.vmem %s16, 32
        %v2070 = vld [vmem:[%s2069] sm:$0xff]
        %v2071 = vld [vmem:[%s2069 + $0x8] sm:$0xff]
        %2072 = vrot.lane.b32.xlu0 %v1899, 112
        %v2073 = vpop.permute.xlu0 %2072
        %2074 = vrot.lane.b32.xlu0 %v1899, 80
        %v2075 = vpop.permute.xlu0 %2074
        %v2076 = vsel %vm1086, %v2073, 0
        %v2078 = vsel %vm1086, %v2075, 0
        %2080 = vmatprep.subr.mxu0 0.0
        %2081 = vmatpush1.xpose.msra.mxu0 %v2078
        %2082 = vmatprep.subr.mxu0 0.0
        %2083 = vmatpush1.xpose.msra.mxu0 0.0
        %2084 = vmatprep.subr.mxu0 0.0
        %2085 = vmatpush1.xpose.msra.mxu0 0.0
        %2086 = vmatprep.subr.mxu0 0.0
        %2087 = vmatpush1.xpose.msra.mxu0 0.0
        %2088 = vmatprep.subr.mxu0 0.0
        %2089 = vmatpush1.xpose.msra.mxu0 0.0
        %2090 = vmatprep.subr.mxu0 0.0
        %2091 = vmatpush1.xpose.msra.mxu0 0.0
        %2092 = vmatprep.subr.mxu0 0.0
        %2093 = vmatpush1.xpose.msra.mxu0 0.0
        %2094 = vmatprep.subr.mxu0 0.0
        %2095 = vmatpush1.xpose.msra.mxu0 0.0
        %2096 = vmatprep.subr.mxu0 0.0
        %2097 = vmatpush1.xpose.msra.mxu0 0.0
        %2098 = vmatprep.subr.mxu0 0.0
        %2099 = vmatpush1.xpose.msra.mxu0 0.0
        %2100 = vmatprep.subr.mxu0 0.0
        %2101 = vmatpush1.xpose.msra.mxu0 0.0
        %2102 = vmatprep.subr.mxu0 0.0
        %2103 = vmatpush1.xpose.msra.mxu0 0.0
        %2104 = vmatprep.subr.mxu0 0.0
        %2105 = vmatpush1.xpose.msra.mxu0 0.0
        %2106 = vmatprep.subr.mxu0 0.0
        %2107 = vmatpush1.xpose.msra.mxu0 0.0
        %2108 = vmatprep.subr.mxu0 0.0
        %2109 = vmatpush1.xpose.msra.mxu0 0.0
        %2110 = vmatprep.subr.mxu0 0.0
        %2111 = vmatpush1.xpose.msra.mxu0 0.0
        %2112 = vmatprep.subr.mxu0 0.0
        %2113 = vmatpush1.xpose.msra.mxu0 0.0
        %2114 = vmatprep.subr.mxu0 0.0
        %2115 = vmatpush1.xpose.msra.mxu0 0.0
        %2116 = vmatprep.subr.mxu0 0.0
        %2117 = vmatpush1.xpose.msra.mxu0 0.0
        %2118 = vmatprep.subr.mxu0 0.0
        %2119 = vmatpush1.xpose.msra.mxu0 0.0
        %2120 = vmatprep.subr.mxu0 0.0
        %2121 = vmatpush1.xpose.msra.mxu0 0.0
        %2122 = vmatprep.subr.mxu0 0.0
        %2123 = vmatpush1.xpose.msra.mxu0 0.0
        %2124 = vmatprep.subr.mxu0 0.0
        %2125 = vmatpush1.xpose.msra.mxu0 0.0
        %2126 = vmatprep.subr.mxu0 0.0
        %2127 = vmatpush1.xpose.msra.mxu0 0.0
        %2128 = vmatprep.subr.mxu0 0.0
        %2129 = vmatpush1.xpose.msra.mxu0 0.0
        %2130 = vmatprep.subr.mxu0 0.0
        %2131 = vmatpush1.xpose.msra.mxu0 0.0
        %2132 = vmatprep.subr.mxu0 0.0
        %2133 = vmatpush1.xpose.msra.mxu0 0.0
        %2134 = vmatprep.subr.mxu0 0.0
        %2135 = vmatpush1.xpose.msra.mxu0 0.0
        %2136 = vmatprep.subr.mxu0 0.0
        %2137 = vmatpush1.xpose.msra.mxu0 0.0
        %2138 = vmatprep.subr.mxu0 0.0
        %2139 = vmatpush1.xpose.msra.mxu0 0.0
        %2140 = vmatprep.subr.mxu0 0.0
        %2141 = vmatpush1.xpose.msra.mxu0 0.0
        %2142 = vmatprep.subr.mxu0 0.0
        %2143 = vmatpush1.xpose.msra.mxu0 0.0
        %2144 = vmatprep.mubr.f32.mxu0 0.0
        %2145 = vmatmul.mubr.f32.gmra.mrb[0].mxu0 %v2076
        %v2146 = vpop.f32.mrb[0].mxu0
        %v2147 = vadd.f32 0.0, %v2146
        %v2148 = vpop.f32.mrb[0].mxu0
        %2149 = vdwg.mxu0
        %v2150 = vmul.f32 %v2147, 0.25
        %v2151 = vsel %vm1162, %v2150, -inf
        %2152 = vmax.xlane.f32.xlu0 %v2151
        %v2153 = vpop.xlane.xlu0 %2152
        %v2154 = vsub.f32 %v2150, %v2153
        %v2155 = vmul.f32 %v2154, 1.442695
        %v2156 = vpow.pop %v2155
        %v2157 = vsel %vm1162, %v2156, 0.0
        %2158 = vadd.xlane.f32.xlu0 %v2157
        %v2159 = vpop.xlane.xlu0 %2158
        %v2160 = vrcp.pop %v2159
        %v2161 = vmul.f32 %v2156, %v2160
        %2162 = vst.msk [vmem:[%s774 + $0xf] sm:$0x1f] %vm1162, %v2161
        %2163 = vrot.lane.b32.xlu0 %v1899, 48
        %v2164 = vpop.permute.xlu0 %2163
        %v2166 = vsel %vm1177, %v2161, 0
        %v2168 = vsel %vm779, %v2164, 0
        %2170 = vmatprep.subr.mxu0 0.0
        %2171 = vmatpush1.msra.mxu0 %v2168
        %2172 = vmatprep.subr.mxu0 0.0
        %2173 = vmatpush1.msra.mxu0 0.0
        %2174 = vmatprep.subr.mxu0 0.0
        %2175 = vmatpush1.msra.mxu0 0.0
        %2176 = vmatprep.subr.mxu0 0.0
        %2177 = vmatpush1.msra.mxu0 0.0
        %2178 = vmatprep.subr.mxu0 0.0
        %2179 = vmatpush1.msra.mxu0 0.0
        %2180 = vmatprep.subr.mxu0 0.0
        %2181 = vmatpush1.msra.mxu0 0.0
        %2182 = vmatprep.subr.mxu0 0.0
        %2183 = vmatpush1.msra.mxu0 0.0
        %2184 = vmatprep.subr.mxu0 0.0
        %2185 = vmatpush1.msra.mxu0 0.0
        %2186 = vmatprep.subr.mxu0 0.0
        %2187 = vmatpush1.msra.mxu0 0.0
        %2188 = vmatprep.subr.mxu0 0.0
        %2189 = vmatpush1.msra.mxu0 0.0
        %2190 = vmatprep.subr.mxu0 0.0
        %2191 = vmatpush1.msra.mxu0 0.0
        %2192 = vmatprep.subr.mxu0 0.0
        %2193 = vmatpush1.msra.mxu0 0.0
        %2194 = vmatprep.subr.mxu0 0.0
        %2195 = vmatpush1.msra.mxu0 0.0
        %2196 = vmatprep.subr.mxu0 0.0
        %2197 = vmatpush1.msra.mxu0 0.0
        %2198 = vmatprep.subr.mxu0 0.0
        %2199 = vmatpush1.msra.mxu0 0.0
        %2200 = vmatprep.subr.mxu0 0.0
        %2201 = vmatpush1.msra.mxu0 0.0
        %2202 = vmatprep.subr.mxu0 0.0
        %2203 = vmatpush1.msra.mxu0 0.0
        %2204 = vmatprep.subr.mxu0 0.0
        %2205 = vmatpush1.msra.mxu0 0.0
        %2206 = vmatprep.subr.mxu0 0.0
        %2207 = vmatpush1.msra.mxu0 0.0
        %2208 = vmatprep.subr.mxu0 0.0
        %2209 = vmatpush1.msra.mxu0 0.0
        %2210 = vmatprep.subr.mxu0 0.0
        %2211 = vmatpush1.msra.mxu0 0.0
        %2212 = vmatprep.subr.mxu0 0.0
        %2213 = vmatpush1.msra.mxu0 0.0
        %2214 = vmatprep.subr.mxu0 0.0
        %2215 = vmatpush1.msra.mxu0 0.0
        %2216 = vmatprep.subr.mxu0 0.0
        %2217 = vmatpush1.msra.mxu0 0.0
        %2218 = vmatprep.subr.mxu0 0.0
        %2219 = vmatpush1.msra.mxu0 0.0
        %2220 = vmatprep.subr.mxu0 0.0
        %2221 = vmatpush1.msra.mxu0 0.0
        %2222 = vmatprep.subr.mxu0 0.0
        %2223 = vmatpush1.msra.mxu0 0.0
        %2224 = vmatprep.subr.mxu0 0.0
        %2225 = vmatpush1.msra.mxu0 0.0
        %2226 = vmatprep.subr.mxu0 0.0
        %2227 = vmatpush1.msra.mxu0 0.0
        %2228 = vmatprep.subr.mxu0 0.0
        %2229 = vmatpush1.msra.mxu0 0.0
        %2230 = vmatprep.subr.mxu0 0.0
        %2231 = vmatpush1.msra.mxu0 0.0
        %2232 = vmatprep.subr.mxu0 0.0
        %2233 = vmatpush1.msra.mxu0 0.0
        %2234 = vmatprep.mubr.f32.mxu0 0.0
        %2235 = vmatmul.mubr.f32.gmra.mrb[0].mxu0 %v2166
        %v2236 = vpop.f32.mrb[0].mxu0
        %v2237 = vadd.f32 0.0, %v2236
        %v2238 = vpop.f32.mrb[0].mxu0
        %2239 = vdwg.mxu0
        %v2240 = vld [vmem:[%s2069 + $0x10] sm:$0xff]
        %v2241 = vld [vmem:[%s2069 + $0x18] sm:$0xff]
        %v2243 = vsel %vm1086, %v2237, 0
        %2245 = vmatprep.subr.mxu0 0.0
        %2246 = vmatpush1.msra.mxu0 %v2240
        %2247 = vmatprep.subr.mxu0 0.0
        %2248 = vmatpush1.msra.mxu0 %v2241
        %2249 = vmatprep.subr.mxu0 0.0
        %2250 = vmatpush1.msra.mxu0 0.0
        %2251 = vmatprep.subr.mxu0 0.0
        %2252 = vmatpush1.msra.mxu0 0.0
        %2253 = vmatprep.subr.mxu0 0.0
        %2254 = vmatpush1.msra.mxu0 0.0
        %2255 = vmatprep.subr.mxu0 0.0
        %2256 = vmatpush1.msra.mxu0 0.0
        %2257 = vmatprep.subr.mxu0 0.0
        %2258 = vmatpush1.msra.mxu0 0.0
        %2259 = vmatprep.subr.mxu0 0.0
        %2260 = vmatpush1.msra.mxu0 0.0
        %2261 = vmatprep.subr.mxu0 0.0
        %2262 = vmatpush1.msra.mxu0 0.0
        %2263 = vmatprep.subr.mxu0 0.0
        %2264 = vmatpush1.msra.mxu0 0.0
        %2265 = vmatprep.subr.mxu0 0.0
        %2266 = vmatpush1.msra.mxu0 0.0
        %2267 = vmatprep.subr.mxu0 0.0
        %2268 = vmatpush1.msra.mxu0 0.0
        %2269 = vmatprep.subr.mxu0 0.0
        %2270 = vmatpush1.msra.mxu0 0.0
        %2271 = vmatprep.subr.mxu0 0.0
        %2272 = vmatpush1.msra.mxu0 0.0
        %2273 = vmatprep.subr.mxu0 0.0
        %2274 = vmatpush1.msra.mxu0 0.0
        %2275 = vmatprep.subr.mxu0 0.0
        %2276 = vmatpush1.msra.mxu0 0.0
        %2277 = vmatprep.subr.mxu0 0.0
        %2278 = vmatpush1.msra.mxu0 0.0
        %2279 = vmatprep.subr.mxu0 0.0
        %2280 = vmatpush1.msra.mxu0 0.0
        %2281 = vmatprep.subr.mxu0 0.0
        %2282 = vmatpush1.msra.mxu0 0.0
        %2283 = vmatprep.subr.mxu0 0.0
        %2284 = vmatpush1.msra.mxu0 0.0
        %2285 = vmatprep.subr.mxu0 0.0
        %2286 = vmatpush1.msra.mxu0 0.0
        %2287 = vmatprep.subr.mxu0 0.0
        %2288 = vmatpush1.msra.mxu0 0.0
        %2289 = vmatprep.subr.mxu0 0.0
        %2290 = vmatpush1.msra.mxu0 0.0
        %2291 = vmatprep.subr.mxu0 0.0
        %2292 = vmatpush1.msra.mxu0 0.0
        %2293 = vmatprep.subr.mxu0 0.0
        %2294 = vmatpush1.msra.mxu0 0.0
        %2295 = vmatprep.subr.mxu0 0.0
        %2296 = vmatpush1.msra.mxu0 0.0
        %2297 = vmatprep.subr.mxu0 0.0
        %2298 = vmatpush1.msra.mxu0 0.0
        %2299 = vmatprep.subr.mxu0 0.0
        %2300 = vmatpush1.msra.mxu0 0.0
        %2301 = vmatprep.subr.mxu0 0.0
        %2302 = vmatpush1.msra.mxu0 0.0
        %2303 = vmatprep.subr.mxu0 0.0
        %2304 = vmatpush1.msra.mxu0 0.0
        %2305 = vmatprep.subr.mxu0 0.0
        %2306 = vmatpush1.msra.mxu0 0.0
        %2307 = vmatprep.subr.mxu0 0.0
        %2308 = vmatpush1.msra.mxu0 0.0
        %2309 = vmatprep.mubr.f32.mxu0 0.0
        %2310 = vmatmul.mubr.f32.gmra.mrb[0].mxu0 %v2243
        %v2311 = vpop.f32.mrb[0].mxu0
        %v2312 = vadd.f32 0.0, %v2311
        %v2313 = vpop.f32.mrb[0].mxu0
        %2314 = vdwg.mxu0
        %v2316 = vsel %vm1086, %v2066, 0
        %2318 = vmatprep.subr.mxu0 0.0
        %2319 = vmatpush1.msra.mxu0 %v2070
        %2320 = vmatprep.subr.mxu0 0.0
        %2321 = vmatpush1.msra.mxu0 %v2071
        %2322 = vmatprep.subr.mxu0 0.0
        %2323 = vmatpush1.msra.mxu0 0.0
        %2324 = vmatprep.subr.mxu0 0.0
        %2325 = vmatpush1.msra.mxu0 0.0
        %2326 = vmatprep.subr.mxu0 0.0
        %2327 = vmatpush1.msra.mxu0 0.0
        %2328 = vmatprep.subr.mxu0 0.0
        %2329 = vmatpush1.msra.mxu0 0.0
        %2330 = vmatprep.subr.mxu0 0.0
        %2331 = vmatpush1.msra.mxu0 0.0
        %2332 = vmatprep.subr.mxu0 0.0
        %2333 = vmatpush1.msra.mxu0 0.0
        %2334 = vmatprep.subr.mxu0 0.0
        %2335 = vmatpush1.msra.mxu0 0.0
        %2336 = vmatprep.subr.mxu0 0.0
        %2337 = vmatpush1.msra.mxu0 0.0
        %2338 = vmatprep.subr.mxu0 0.0
        %2339 = vmatpush1.msra.mxu0 0.0
        %2340 = vmatprep.subr.mxu0 0.0
        %2341 = vmatpush1.msra.mxu0 0.0
        %2342 = vmatprep.subr.mxu0 0.0
        %2343 = vmatpush1.msra.mxu0 0.0
        %2344 = vmatprep.subr.mxu0 0.0
        %2345 = vmatpush1.msra.mxu0 0.0
        %2346 = vmatprep.subr.mxu0 0.0
        %2347 = vmatpush1.msra.mxu0 0.0
        %2348 = vmatprep.subr.mxu0 0.0
        %2349 = vmatpush1.msra.mxu0 0.0
        %2350 = vmatprep.subr.mxu0 0.0
        %2351 = vmatpush1.msra.mxu0 0.0
        %2352 = vmatprep.subr.mxu0 0.0
        %2353 = vmatpush1.msra.mxu0 0.0
        %2354 = vmatprep.subr.mxu0 0.0
        %2355 = vmatpush1.msra.mxu0 0.0
        %2356 = vmatprep.subr.mxu0 0.0
        %2357 = vmatpush1.msra.mxu0 0.0
        %2358 = vmatprep.subr.mxu0 0.0
        %2359 = vmatpush1.msra.mxu0 0.0
        %2360 = vmatprep.subr.mxu0 0.0
        %2361 = vmatpush1.msra.mxu0 0.0
        %2362 = vmatprep.subr.mxu0 0.0
        %2363 = vmatpush1.msra.mxu0 0.0
        %2364 = vmatprep.subr.mxu0 0.0
        %2365 = vmatpush1.msra.mxu0 0.0
        %2366 = vmatprep.subr.mxu0 0.0
        %2367 = vmatpush1.msra.mxu0 0.0
        %2368 = vmatprep.subr.mxu0 0.0
        %2369 = vmatpush1.msra.mxu0 0.0
        %2370 = vmatprep.subr.mxu0 0.0
        %2371 = vmatpush1.msra.mxu0 0.0
        %2372 = vmatprep.subr.mxu0 0.0
        %2373 = vmatpush1.msra.mxu0 0.0
        %2374 = vmatprep.subr.mxu0 0.0
        %2375 = vmatpush1.msra.mxu0 0.0
        %2376 = vmatprep.subr.mxu0 0.0
        %2377 = vmatpush1.msra.mxu0 0.0
        %2378 = vmatprep.subr.mxu0 0.0
        %2379 = vmatpush1.msra.mxu0 0.0
        %2380 = vmatprep.subr.mxu0 0.0
        %2381 = vmatpush1.msra.mxu0 0.0
        %2382 = vmatprep.mubr.f32.mxu0 0.0
        %2383 = vmatmul.mubr.f32.gmra.mrb[0].mxu0 %v2316
        %v2384 = vpop.f32.mrb[0].mxu0
        %v2385 = vadd.f32 %v2312, %v2384
        %v2386 = vpop.f32.mrb[0].mxu0
        %2387 = vdwg.mxu0
        %v2388 = vadd.f32 %v1798, %v2385
        %v2389 = vld [vmem:[%s17 + $0x1] sm:$0x1]
        %v2390 = vlaneseq
        %v2391 = vshrl.u32 %v2390, 7
        %v2392 = vsub.s32 0, %v2391
        %v2393 = vrot.slane %v2389, %v2392
        %v2394 = vadd.f32 %v2388, %v2393
        %v2395 = vld [vmem:[%s18 + $0x1] sm:$0x1]
        %v2396 = vld [vmem:[%s19 + $0x1] sm:$0x1]
        %v2397 = vsel %vm935, %v2394, 0.0
        %2398 = vadd.xlane.f32.xlu0 %v2397
        %v2399 = vpop.xlane.xlu0 %2398
        %v2400 = vmul.f32 %v2399, %v939
        %v2401 = vsub.f32 %v2394, %v2400
        %v2402 = vmul.f32 %v2401, %v2401
        %v2403 = vsel %vm935, %v2402, 0.0
        %2404 = vadd.xlane.f32.xlu0 %v2403
        %v2405 = vpop.xlane.xlu0 %2404
        %v2406 = vmul.f32 %v2405, %v939
        %v2407 = vadd.f32 %v2406, 1e-05
        %v2408 = vrsqrt.pop %v2407
        %v2409 = vmul.f32 %v2401, %v2408
        %v2410 = vlaneseq
        %v2411 = vshrl.u32 %v2410, 7
        %v2412 = vsub.s32 0, %v2411
        %v2413 = vrot.slane %v2395, %v2412
        %v2414 = vmul.f32 %v2409, %v2413
        %v2415 = vlaneseq
        %v2416 = vshrl.u32 %v2415, 7
        %v2417 = vsub.s32 0, %v2416
        %v2418 = vrot.slane %v2396, %v2417
        %v2419 = vadd.f32 %v2414, %v2418
        %s2420 = scalar_lea.vmem %s20, 32
        %v2421 = vld [vmem:[%s2420] sm:$0xff]
        %v2422 = vld [vmem:[%s2420 + $0x8] sm:$0xff]
        %v2423 = vld [vmem:[%s2420 + $0x10] sm:$0xff]
        %v2424 = vld [vmem:[%s2420 + $0x18] sm:$0xff]
        %v2425 = vld [vmem:[%s21 + $0x1] sm:$0x1]
        %v2426 = vlaneseq
        %v2427 = vshrl.u32 %v2426, 7
        %v2428 = vsub.s32 0, %v2427
        %v2429 = vrot.slane %v2425, %v2428
        %v2431 = vsel %vm1009, %v2419, 0
        %2433 = vmatprep.subr.mxu0 0.0
        %2434 = vmatpush1.msra.mxu0 %v2421
        %2435 = vmatprep.subr.mxu0 0.0
        %2436 = vmatpush1.msra.mxu0 %v2422
        %2437 = vmatprep.subr.mxu0 0.0
        %2438 = vmatpush1.msra.mxu0 %v2423
        %2439 = vmatprep.subr.mxu0 0.0
        %2440 = vmatpush1.msra.mxu0 %v2424
        %2441 = vmatprep.subr.mxu0 0.0
        %2442 = vmatpush1.msra.mxu0 0.0
        %2443 = vmatprep.subr.mxu0 0.0
        %2444 = vmatpush1.msra.mxu0 0.0
        %2445 = vmatprep.subr.mxu0 0.0
        %2446 = vmatpush1.msra.mxu0 0.0
        %2447 = vmatprep.subr.mxu0 0.0
        %2448 = vmatpush1.msra.mxu0 0.0
        %2449 = vmatprep.subr.mxu0 0.0
        %2450 = vmatpush1.msra.mxu0 0.0
        %2451 = vmatprep.subr.mxu0 0.0
        %2452 = vmatpush1.msra.mxu0 0.0
        %2453 = vmatprep.subr.mxu0 0.0
        %2454 = vmatpush1.msra.mxu0 0.0
        %2455 = vmatprep.subr.mxu0 0.0
        %2456 = vmatpush1.msra.mxu0 0.0
        %2457 = vmatprep.subr.mxu0 0.0
        %2458 = vmatpush1.msra.mxu0 0.0
        %2459 = vmatprep.subr.mxu0 0.0
        %2460 = vmatpush1.msra.mxu0 0.0
        %2461 = vmatprep.subr.mxu0 0.0
        %2462 = vmatpush1.msra.mxu0 0.0
        %2463 = vmatprep.subr.mxu0 0.0
        %2464 = vmatpush1.msra.mxu0 0.0
        %2465 = vmatprep.subr.mxu0 0.0
        %2466 = vmatpush1.msra.mxu0 0.0
        %2467 = vmatprep.subr.mxu0 0.0
        %2468 = vmatpush1.msra.mxu0 0.0
        %2469 = vmatprep.subr.mxu0 0.0
        %2470 = vmatpush1.msra.mxu0 0.0
        %2471 = vmatprep.subr.mxu0 0.0
        %2472 = vmatpush1.msra.mxu0 0.0
        %2473 = vmatprep.subr.mxu0 0.0
        %2474 = vmatpush1.msra.mxu0 0.0
        %2475 = vmatprep.subr.mxu0 0.0
        %2476 = vmatpush1.msra.mxu0 0.0
        %2477 = vmatprep.subr.mxu0 0.0
        %2478 = vmatpush1.msra.mxu0 0.0
        %2479 = vmatprep.subr.mxu0 0.0
        %2480 = vmatpush1.msra.mxu0 0.0
        %2481 = vmatprep.subr.mxu0 0.0
        %2482 = vmatpush1.msra.mxu0 0.0
        %2483 = vmatprep.subr.mxu0 0.0
        %2484 = vmatpush1.msra.mxu0 0.0
        %2485 = vmatprep.subr.mxu0 0.0
        %2486 = vmatpush1.msra.mxu0 0.0
        %2487 = vmatprep.subr.mxu0 0.0
        %2488 = vmatpush1.msra.mxu0 0.0
        %2489 = vmatprep.subr.mxu0 0.0
        %2490 = vmatpush1.msra.mxu0 0.0
        %2491 = vmatprep.subr.mxu0 0.0
        %2492 = vmatpush1.msra.mxu0 0.0
        %2493 = vmatprep.subr.mxu0 0.0
        %2494 = vmatpush1.msra.mxu0 0.0
        %2495 = vmatprep.subr.mxu0 0.0
        %2496 = vmatpush1.msra.mxu0 0.0
        %2497 = vmatprep.mubr.f32.mxu0 0.0
        %2498 = vmatmul.mubr.f32.gmra.mrb[0].mxu0 %v2431
        %v2499 = vpop.f32.mrb[0].mxu0
        %v2500 = vadd.f32 %v2429, %v2499
        %v2501 = vpop.f32.mrb[0].mxu0
        %2502 = vdwg.mxu0
        %v2503 = vmul.f32 %v2500, 0.5
        %v2504 = vmul.f32 %v2500, 0.70710677
        %vm2505 = vcmp.lt.f32.partialorder %v2504, 0.0
        %v2506 = vsel %vm2505, -1.0, 1.0
        %v2507 = vand.u32 2147483647, %v2504
        %v2508 = vmul.f32 %v2507, 0.3275911
        %v2509 = vadd.f32 %v2508, 1.0
        %v2510 = vrcp.pop %v2509
        %v2511 = vmul.f32 1.0, %v2510
        %v2512 = vmul.f32 %v2511, 1.0614054
        %v2513 = vadd.f32 %v2512, -1.4531521
        %v2514 = vmul.f32 %v2511, %v2513
        %v2515 = vadd.f32 %v2514, 1.4214138
        %v2516 = vmul.f32 %v2511, %v2515
        %v2517 = vadd.f32 %v2516, -0.28449672
        %v2518 = vmul.f32 %v2511, %v2517
        %v2519 = vadd.f32 %v2518, 0.2548296
        %v2520 = vmul.f32 %v2511, %v2519
        %v2521 = vsub.f32 0.0, %v2507
        %v2522 = vmul.f32 %v2521, %v2507
        %v2523 = vmul.f32 %v2522, 1.442695
        %v2524 = vpow.pop %v2523
        %v2525 = vmul.f32 %v2520, %v2524
        %v2526 = vsub.f32 1.0, %v2525
        %v2527 = vmul.f32 %v2506, %v2526
        %v2528 = vadd.f32 %v2527, 1.0
        %v2529 = vmul.f32 %v2503, %v2528
        %s2530 = scalar_lea.vmem %s22, 64
        %v2531 = vld [vmem:[%s2530] sm:$0xff]
        %v2532 = vld [vmem:[%s2530 + $0x8] sm:$0xff]
        %v2533 = vld [vmem:[%s2530 + $0x10] sm:$0xff]
        %v2534 = vld [vmem:[%s2530 + $0x18] sm:$0xff]
        %v2535 = vld [vmem:[%s2530 + $0x20] sm:$0xff]
        %v2536 = vld [vmem:[%s2530 + $0x28] sm:$0xff]
        %v2537 = vld [vmem:[%s2530 + $0x30] sm:$0xff]
        %v2538 = vld [vmem:[%s2530 + $0x38] sm:$0xff]
        %v2539 = vld [vmem:[%s23 + $0x1] sm:$0x1]
        %v2540 = vlaneseq
        %v2541 = vshrl.u32 %v2540, 7
        %v2542 = vsub.s32 0, %v2541
        %v2543 = vrot.slane %v2539, %v2542
        %v2545 = vsel %vm859, %v2529, 0
        %2547 = vmatprep.subr.mxu0 0.0
        %2548 = vmatpush1.msra.mxu0 %v2531
        %2549 = vmatprep.subr.mxu0 0.0
        %2550 = vmatpush1.msra.mxu0 %v2532
        %2551 = vmatprep.subr.mxu0 0.0
        %2552 = vmatpush1.msra.mxu0 %v2533
        %2553 = vmatprep.subr.mxu0 0.0
        %2554 = vmatpush1.msra.mxu0 %v2534
        %2555 = vmatprep.subr.mxu0 0.0
        %2556 = vmatpush1.msra.mxu0 %v2535
        %2557 = vmatprep.subr.mxu0 0.0
        %2558 = vmatpush1.msra.mxu0 %v2536
        %2559 = vmatprep.subr.mxu0 0.0
        %2560 = vmatpush1.msra.mxu0 %v2537
        %2561 = vmatprep.subr.mxu0 0.0
        %2562 = vmatpush1.msra.mxu0 %v2538
        %2563 = vmatprep.subr.mxu0 0.0
        %2564 = vmatpush1.msra.mxu0 0.0
        %2565 = vmatprep.subr.mxu0 0.0
        %2566 = vmatpush1.msra.mxu0 0.0
        %2567 = vmatprep.subr.mxu0 0.0
        %2568 = vmatpush1.msra.mxu0 0.0
        %2569 = vmatprep.subr.mxu0 0.0
        %2570 = vmatpush1.msra.mxu0 0.0
        %2571 = vmatprep.subr.mxu0 0.0
        %2572 = vmatpush1.msra.mxu0 0.0
        %2573 = vmatprep.subr.mxu0 0.0
        %2574 = vmatpush1.msra.mxu0 0.0
        %2575 = vmatprep.subr.mxu0 0.0
        %2576 = vmatpush1.msra.mxu0 0.0
        %2577 = vmatprep.subr.mxu0 0.0
        %2578 = vmatpush1.msra.mxu0 0.0
        %2579 = vmatprep.subr.mxu0 0.0
        %2580 = vmatpush1.msra.mxu0 0.0
        %2581 = vmatprep.subr.mxu0 0.0
        %2582 = vmatpush1.msra.mxu0 0.0
        %2583 = vmatprep.subr.mxu0 0.0
        %2584 = vmatpush1.msra.mxu0 0.0
        %2585 = vmatprep.subr.mxu0 0.0
        %2586 = vmatpush1.msra.mxu0 0.0
        %2587 = vmatprep.subr.mxu0 0.0
        %2588 = vmatpush1.msra.mxu0 0.0
        %2589 = vmatprep.subr.mxu0 0.0
        %2590 = vmatpush1.msra.mxu0 0.0
        %2591 = vmatprep.subr.mxu0 0.0
        %2592 = vmatpush1.msra.mxu0 0.0
        %2593 = vmatprep.subr.mxu0 0.0
        %2594 = vmatpush1.msra.mxu0 0.0
        %2595 = vmatprep.subr.mxu0 0.0
        %2596 = vmatpush1.msra.mxu0 0.0
        %2597 = vmatprep.subr.mxu0 0.0
        %2598 = vmatpush1.msra.mxu0 0.0
        %2599 = vmatprep.subr.mxu0 0.0
        %2600 = vmatpush1.msra.mxu0 0.0
        %2601 = vmatprep.subr.mxu0 0.0
        %2602 = vmatpush1.msra.mxu0 0.0
        %2603 = vmatprep.subr.mxu0 0.0
        %2604 = vmatpush1.msra.mxu0 0.0
        %2605 = vmatprep.subr.mxu0 0.0
        %2606 = vmatpush1.msra.mxu0 0.0
        %2607 = vmatprep.subr.mxu0 0.0
        %2608 = vmatpush1.msra.mxu0 0.0
        %2609 = vmatprep.subr.mxu0 0.0
        %2610 = vmatpush1.msra.mxu0 0.0
        %2611 = vmatprep.mubr.f32.mxu0 0.0
        %2612 = vmatmul.mubr.f32.gmra.mrb[0].mxu0 %v2545
        %v2613 = vpop.f32.mrb[0].mxu0
        %v2614 = vadd.f32 %v2543, %v2613
        %v2615 = vpop.f32.mrb[0].mxu0
        %2616 = vdwg.mxu0
        %v2617 = vadd.f32 %v2394, %v2614
        %v2618 = vld [vmem:[%s9] sm:$0x1]
        %v2619 = vld [vmem:[%s10] sm:$0x1]
        %v2620 = vsel %vm935, %v2617, 0.0
        %2621 = vadd.xlane.f32.xlu0 %v2620
        %v2622 = vpop.xlane.xlu0 %2621
        %v2623 = vmul.f32 %v2622, %v939
        %v2624 = vsub.f32 %v2617, %v2623
        %v2625 = vmul.f32 %v2624, %v2624
        %v2626 = vsel %vm935, %v2625, 0.0
        %2627 = vadd.xlane.f32.xlu0 %v2626
        %v2628 = vpop.xlane.xlu0 %2627
        %v2629 = vmul.f32 %v2628, %v939
        %v2630 = vadd.f32 %v2629, 1e-05
        %v2631 = vrsqrt.pop %v2630
        %v2632 = vmul.f32 %v2624, %v2631
        %v2634 = vlaneseq
        %v2635 = vshrl.u32 %v2634, 7
        %v2636 = vsub.s32 0, %v2635
        %v2637 = vrot.slane %v2618, %v2636
        %v2639 = vmul.f32 %v2632, %v2637
        %v2641 = vlaneseq
        %v2642 = vshrl.u32 %v2641, 7
        %v2643 = vsub.s32 0, %v2642
        %v2644 = vrot.slane %v2619, %v2643
        %v2646 = vadd.f32 %v2639, %v2644
        %v2647 = vld [vmem:[%s11] sm:$0xff]
        %v2648 = vld [vmem:[%s11 + $0x8] sm:$0xff]
        %v2649 = vld [vmem:[%s11 + $0x10] sm:$0xff]
        %v2650 = vld [vmem:[%s11 + $0x18] sm:$0xff]
        %v2651 = vld [vmem:[%s12] sm:$0x1]
        %v2653 = vsel %vm1009, %v2646, 0
        %2655 = vmatprep.subr.mxu0 0.0
        %2656 = vmatpush1.msra.mxu0 %v2647
        %2657 = vmatprep.subr.mxu0 0.0
        %2658 = vmatpush1.msra.mxu0 %v2648
        %2659 = vmatprep.subr.mxu0 0.0
        %2660 = vmatpush1.msra.mxu0 %v2649
        %2661 = vmatprep.subr.mxu0 0.0
        %2662 = vmatpush1.msra.mxu0 %v2650
        %2663 = vmatprep.subr.mxu0 0.0
        %2664 = vmatpush1.msra.mxu0 0.0
        %2665 = vmatprep.subr.mxu0 0.0
        %2666 = vmatpush1.msra.mxu0 0.0
        %2667 = vmatprep.subr.mxu0 0.0
        %2668 = vmatpush1.msra.mxu0 0.0
        %2669 = vmatprep.subr.mxu0 0.0
        %2670 = vmatpush1.msra.mxu0 0.0
        %2671 = vmatprep.subr.mxu0 0.0
        %2672 = vmatpush1.msra.mxu0 0.0
        %2673 = vmatprep.subr.mxu0 0.0
        %2674 = vmatpush1.msra.mxu0 0.0
        %2675 = vmatprep.subr.mxu0 0.0
        %2676 = vmatpush1.msra.mxu0 0.0
        %2677 = vmatprep.subr.mxu0 0.0
        %2678 = vmatpush1.msra.mxu0 0.0
        %2679 = vmatprep.subr.mxu0 0.0
        %2680 = vmatpush1.msra.mxu0 0.0
        %2681 = vmatprep.subr.mxu0 0.0
        %2682 = vmatpush1.msra.mxu0 0.0
        %2683 = vmatprep.subr.mxu0 0.0
        %2684 = vmatpush1.msra.mxu0 0.0
        %2685 = vmatprep.subr.mxu0 0.0
        %2686 = vmatpush1.msra.mxu0 0.0
        %2687 = vmatprep.subr.mxu0 0.0
        %2688 = vmatpush1.msra.mxu0 0.0
        %2689 = vmatprep.subr.mxu0 0.0
        %2690 = vmatpush1.msra.mxu0 0.0
        %2691 = vmatprep.subr.mxu0 0.0
        %2692 = vmatpush1.msra.mxu0 0.0
        %2693 = vmatprep.subr.mxu0 0.0
        %2694 = vmatpush1.msra.mxu0 0.0
        %2695 = vmatprep.subr.mxu0 0.0
        %2696 = vmatpush1.msra.mxu0 0.0
        %2697 = vmatprep.subr.mxu0 0.0
        %2698 = vmatpush1.msra.mxu0 0.0
        %2699 = vmatprep.subr.mxu0 0.0
        %2700 = vmatpush1.msra.mxu0 0.0
        %2701 = vmatprep.subr.mxu0 0.0
        %2702 = vmatpush1.msra.mxu0 0.0
        %2703 = vmatprep.subr.mxu0 0.0
        %2704 = vmatpush1.msra.mxu0 0.0
        %2705 = vmatprep.subr.mxu0 0.0
        %2706 = vmatpush1.msra.mxu0 0.0
        %2707 = vmatprep.subr.mxu0 0.0
        %2708 = vmatpush1.msra.mxu0 0.0
        %2709 = vmatprep.subr.mxu0 0.0
        %2710 = vmatpush1.msra.mxu0 0.0
        %2711 = vmatprep.subr.mxu0 0.0
        %2712 = vmatpush1.msra.mxu0 0.0
        %2713 = vmatprep.subr.mxu0 0.0
        %2714 = vmatpush1.msra.mxu0 0.0
        %2715 = vmatprep.subr.mxu0 0.0
        %2716 = vmatpush1.msra.mxu0 0.0
        %2717 = vmatprep.subr.mxu0 0.0
        %2718 = vmatpush1.msra.mxu0 0.0
        %2719 = vmatprep.mubr.f32.mxu0 0.0
        %2720 = vmatmul.mubr.f32.gmra.mrb[0].mxu0 %v2653
        %v2721 = vpop.f32.mrb[0].mxu0
        %v2722 = vadd.f32 %v2651, %v2721
        %v2723 = vpop.f32.mrb[0].mxu0
        %2724 = vdwg.mxu0
        %vm2725 = vcmask 73728
        %2726 = vst.msk [vmem:[%s757] sm:$0x1] %vm2725, %v2722
        %s2727 = sand.u32 %s557, 1
        %s2728 = scalar_lea.sflag [#allocation3], %s2727
        %s2729 = sand.u32 %s557, 1
        %s2730 = scalar_lea.vmem [#allocation2], %s2729
        %p2731 = scmp.lt.s32.totalorder %s40, 1
        %s2732 = scalar_select %p2731, %s40, 1
        %s2733 = smul.addr %s2732, 3
        %s2734 = smul.addr %s2733, 8
        %s2735 = scalar_lea.vmem %s25, %s2734
        // Predicated region
        $region117: #{recorder_forward.1} parent=115 // pred_check
          %p2736 = pneg %p567
        $region118: #{recorder_forward.1} parent=115 // pred_check_branch
          %2738 = sbr.rel (%p2736) target = $region120
        $region119: #{recorder_forward.1} parent=115 // pred_region
          %s2740 = ssub.s32 16, 16
          %2741 = vsyncadd %s2728, %s2740
          %s2742 = smul.addr %s40, 16
          %s2743 = scalar_lea.hbm %s24, %s2742
          %s2745 = sshll.u32 %s2730, 4
          %s2746 = int_to_ptr.vmem [resolvable:$true] %s2745
          %2748 = dma.vmem_to_hbm [thread:$0]  %s2746, 16, %s2743, %s2728
        $region120: #{recorder_forward.1} parent=115 // pred_fallthru
          _
        // Predicated region
        $region121: #{recorder_forward.1} parent=115 // pred_check
          %p2749 = pneg %p593
        $region122: #{recorder_forward.1} parent=115 // pred_check_branch
          %2751 = sbr.rel (%p2749) target = $region124
        $region123: #{recorder_forward.1} parent=115 // pred_region
          _
        $region124: #{recorder_forward.1} parent=115 // pred_fallthru
          _
      $region116: #{recorder_forward.1} parent=5 // pred_fallthru
        _
      %p2752 = scmp.le.s32.totalorder 2, %s35
      // Predicated region
      $region125: #{recorder_forward.1} parent=5 // pred_check
        %p2753 = pneg %p2752
      $region126: #{recorder_forward.1} parent=5 // pred_check_branch
        %2755 = sbr.rel (%p2753) target = $region128
      $region127: #{recorder_forward.1} parent=5 // pred_region
        %s2756 = ssub.s32 %s35, 2
        // Predicated region
        $region129: #{recorder_forward.1} parent=127 // pred_check
          %p2757 = pneg %p573
        $region130: #{recorder_forward.1} parent=127 // pred_check_branch
          %2759 = sbr.rel (%p2757) target = $region132
        $region131: #{recorder_forward.1} parent=127 // pred_region
          %s2760 = sand.u32 %s558, 1
          %s2761 = scalar_lea.sflag [#allocation3], %s2760
          %s2762 = sand.u32 %s558, 1
          %s2763 = scalar_lea.vmem [#allocation2], %s2762
          %2764 = dma.done %s2761, 16
        $region132: #{recorder_forward.1} parent=127 // pred_fallthru
          _
        // Predicated region
        $region133: #{recorder_forward.1} parent=127 // pred_check
          %p2765 = pneg %p599
        $region134: #{recorder_forward.1} parent=127 // pred_check_branch
          %2767 = sbr.rel (%p2765) target = $region136
        $region135: #{recorder_forward.1} parent=127 // pred_region
          %p2768 = scmp.lt.s32.totalorder %s41, 1
          %s2769 = scalar_select %p2768, %s41, 1
          %s2770 = smul.addr %s2769, 3
          %s2771 = smul.addr %s2770, 8
          %s2772 = scalar_lea.vmem %s25, %s2771
        $region136: #{recorder_forward.1} parent=127 // pred_fallthru
          _
      $region128: #{recorder_forward.1} parent=5 // pred_fallthru
        _
    $region6: #{recorder_forward.1} parent=1 // loop_footer
      %s39 = sadd.s32 1, %s35
    $region7: #{recorder_forward.1} parent=1 // loop_footer_branch
      %34 = sbr.rel target = $region3
    $region8: #{recorder_forward.1} parent=1 // loop_exit
      _
    %2773 = vsyncpa [#allocation3], 1
    %s2774 = scalar_lea.sflag [#allocation3], 1
    %2775 = vsyncpa %s2774, 1

</llo_original>
